<compile_context>
chip_gen: v7x
topology: tpu7x:2x2x1
jax: 0.10.0
libtpu: 0.0.40
codegen_flags: <defaults>
</compile_context>

<pallas_src>
import jax
import jax.numpy as jnp
from jax import lax
from jax.experimental import pallas as pl
from jax.experimental.pallas import tpu as pltpu

BN_EPS = 1e-3


def _fused_kernel(x_se_ref, x_main_ref, w1_ref, b1_ref, w2_ref,
                  gamma_ref, beta_ref, out_ref):
    # --- conv2d57 (1x1, 40->960, bias) on the squeezed SE input ---
    # se[c] = sum_k w1[c,k] * x_se[k] + b1[c]; done on VPU (mul) + XLU (lane
    # reduce) so the M=1 problem never touches the MXU.
    se = jnp.sum(w1_ref[...] * x_se_ref[...], axis=1, keepdims=True) \
        + b1_ref[...]                                                  # [960, 1]

    # --- sigmoid7 (EUP) ---
    gate = jax.nn.sigmoid(se)                                          # [960, 1]

    # --- mul: broadcast the per-channel gate over all spatial lanes ---
    y = x_main_ref[...] * gate                                         # [960, HW]

    # --- conv2d58 (1x1, 960->160, no bias): [160,960] @ [960,HW] on the MXU,
    #     bf16 operands, f32 accumulation ---
    z = jnp.dot(w2_ref[...].astype(jnp.bfloat16),
                y.astype(jnp.bfloat16),
                preferred_element_type=jnp.float32)                    # [160, HW]

    # --- batchnorm2d42: training-mode batch statistics over N*H*W
    #     (= lane axis here), biased variance.  Explicit sums / true count so
    #     the math stays correct even if HW were ever lane-padded. ---
    hw = z.shape[1]
    inv_hw = 1.0 / hw
    mean = jnp.sum(z, axis=1, keepdims=True) * inv_hw                  # [160, 1]
    zc = z - mean                                                      # centered once, reused
    var = jnp.sum(zc * zc, axis=1, keepdims=True) * inv_hw             # [160, 1]
    scale = lax.rsqrt(var + BN_EPS) * gamma_ref[...]                   # [160, 1]
    out_ref[...] = zc * scale + beta_ref[...]                          # [160, HW]


def fused_se_proj_bn(x182, x179, w1, b1, w2, gamma, beta):
    """x182: [N,40,1,1] NCHW, x179: [N,960,H,W] NCHW (N must be 1)."""
    n, c_se, _, _ = x182.shape
    _, c_mid, h, w = x179.shape
    assert n == 1
    c_out = w2.shape[0]
    hw = h * w

    # Every reshape below is a contiguity-preserving free view (no XLA copy).
    x_se = x182.reshape(1, c_se)              # [1, 40]
    x_main = x179.reshape(c_mid, hw)          # [960, HW]  (channel-major == NCHW)
    w1_m = w1.reshape(c_mid, c_se)            # [960, 40]  natural [out, in]
    b1_m = b1.reshape(c_mid, 1)               # [960, 1]
    w2_m = w2.reshape(c_out, c_mid)           # [160, 960] natural [out, in]
    gamma_m = gamma.reshape(c_out, 1)         # [160, 1]
    beta_m = beta.reshape(c_out, 1)           # [160, 1]

    flops = 2 * c_out * c_mid * hw + 2 * c_mid * c_se + 8 * c_out * hw + c_mid * hw
    bytes_accessed = 4 * (c_se + c_mid * hw + c_mid * c_se + c_mid
                          + c_out * c_mid + 2 * c_out + c_out * hw)

    vmem = pl.BlockSpec(memory_space=pltpu.MemorySpace.VMEM)
    out = pl.pallas_call(
        _fused_kernel,
        out_shape=jax.ShapeDtypeStruct((c_out, hw), jnp.float32),
        in_specs=[vmem] * 7,
        out_specs=vmem,
        cost_estimate=pl.CostEstimate(
            flops=flops,
            transcendentals=c_mid + c_out,        # sigmoid + rsqrt
            bytes_accessed=bytes_accessed),
    )(x_se, x_main, w1_m, b1_m, w2_m, gamma_m, beta_m)

    # [160, HW] -> NCHW is another free view.
    return out.reshape(n, c_out, h, w)


def _reference(x182, x179, w1, b1, w2, gamma, beta):
    """Pure-JAX f32 reference of the PyTorch forward (training-mode BN)."""
    n, c_se, _, _ = x182.shape
    _, c_mid, h, w = x179.shape
    se = jnp.einsum('nc,oc->no', x182.reshape(n, c_se),
                    w1.reshape(w1.shape[0], w1.shape[1])) + b1
    gate = jax.nn.sigmoid(se).reshape(n, -1, 1, 1)
    y = gate * x179
    z = jnp.einsum('nchw,oc->nohw', y, w2.reshape(w2.shape[0], w2.shape[1]))
    mean = jnp.mean(z, axis=(0, 2, 3), keepdims=True)
    var = jnp.mean((z - mean) ** 2, axis=(0, 2, 3), keepdims=True)
    z_hat = (z - mean) * lax.rsqrt(var + BN_EPS)
    return z_hat * gamma.reshape(1, -1, 1, 1) + beta.reshape(1, -1, 1, 1)


if __name__ == "__main__":
    C_SE, C_MID, C_OUT, H, W = 40, 960, 160, 14, 14

    key = jax.random.PRNGKey(0)
    k = jax.random.split(key, 7)
    x182 = jax.random.normal(k[0], (1, C_SE, 1, 1), jnp.float32)
    x179 = jax.random.normal(k[1], (1, C_MID, H, W), jnp.float32)

    # Deterministic parameter initialization (shapes per the module __init__)
    w1 = jax.random.normal(k[2], (C_MID, C_SE, 1, 1), jnp.float32) * 0.05   # conv2d57 weight
    b1 = jax.random.normal(k[3], (C_MID,), jnp.float32) * 0.05              # conv2d57 bias
    w2 = jax.random.normal(k[4], (C_OUT, C_MID, 1, 1), jnp.float32) * 0.02  # conv2d58 weight
    gamma = 1.0 + 0.1 * jax.random.normal(k[5], (C_OUT,), jnp.float32)      # BN weight
    beta = 0.1 * jax.random.normal(k[6], (C_OUT,), jnp.float32)             # BN bias

    out = fused_se_proj_bn(x182, x179, w1, b1, w2, gamma, beta)
    out = jax.block_until_ready(out)

    ref = _reference(x182, x179, w1, b1, w2, gamma, beta)
    assert out.shape == (1, C_OUT, H, W)
    # Tolerance widened vs. the pure-f32 version because the 960->160 matmul
    # now runs with bf16 operands (f32 accumulation); observed error is O(1e-2)
    # after BN renormalization.
    assert jnp.allclose(out, ref, atol=2e-2, rtol=2e-2)

    print("KERNEL_OK")
</pallas_src>

<mosaic_0001>
module attributes {stable_mosaic.version = 11 : i64} {
  func.func @_fused_kernel(%arg0: memref<1x40xf32, #tpu.memory_space<vmem>>, %arg1: memref<960x196xf32, #tpu.memory_space<vmem>>, %arg2: memref<960x40xf32, #tpu.memory_space<vmem>>, %arg3: memref<960x1xf32, #tpu.memory_space<vmem>>, %arg4: memref<160x960xf32, #tpu.memory_space<vmem>>, %arg5: memref<160x1xf32, #tpu.memory_space<vmem>>, %arg6: memref<160x1xf32, #tpu.memory_space<vmem>>, %arg7: memref<160x196xf32, #tpu.memory_space<vmem>>) attributes {dimension_semantics = [], scalar_prefetch = 0 : i64, scratch_operands = 0 : i64, tpu.core_type = #tpu.core_type<tc>} {
    %c0 = arith.constant 0 : index
    %c0_0 = arith.constant 0 : index
    %0 = vector.load %arg2[%c0, %c0_0] : memref<960x40xf32, #tpu.memory_space<vmem>>, vector<960x40xf32>
    %c0_1 = arith.constant 0 : index
    %c0_2 = arith.constant 0 : index
    %1 = vector.load %arg0[%c0_1, %c0_2] : memref<1x40xf32, #tpu.memory_space<vmem>>, vector<1x40xf32>
    %2 = vector.broadcast %1 : vector<1x40xf32> to vector<960x40xf32>
    %3 = arith.mulf %0, %2 : vector<960x40xf32>
    %cst = arith.constant dense<0.000000e+00> : vector<960xf32>
    %4 = vector.multi_reduction <add>, %3, %cst [1] : vector<960x40xf32> to vector<960xf32>
    %5 = vector.shape_cast %4 : vector<960xf32> to vector<960x1xf32>
    %c0_3 = arith.constant 0 : index
    %c0_4 = arith.constant 0 : index
    %6 = vector.load %arg3[%c0_3, %c0_4] : memref<960x1xf32, #tpu.memory_space<vmem>>, vector<960x1xf32>
    %7 = arith.addf %5, %6 : vector<960x1xf32>
    %8 = arith.negf %7 : vector<960x1xf32>
    %9 = math.exp %8 : vector<960x1xf32>
    %cst_5 = arith.constant 1.000000e+00 : f32
    %10 = vector.broadcast %cst_5 : f32 to vector<960x1xf32>
    %11 = arith.addf %10, %9 : vector<960x1xf32>
    %12 = arith.divf %10, %11 : vector<960x1xf32>
    %c0_6 = arith.constant 0 : index
    %c0_7 = arith.constant 0 : index
    %13 = vector.load %arg1[%c0_6, %c0_7] : memref<960x196xf32, #tpu.memory_space<vmem>>, vector<960x196xf32>
    %14 = vector.broadcast %12 : vector<960x1xf32> to vector<960x196xf32>
    %15 = arith.mulf %13, %14 : vector<960x196xf32>
    %c0_8 = arith.constant 0 : index
    %c0_9 = arith.constant 0 : index
    %16 = vector.load %arg4[%c0_8, %c0_9] : memref<160x960xf32, #tpu.memory_space<vmem>>, vector<160x960xf32>
    %17 = arith.truncf %16 : vector<160x960xf32> to vector<160x960xbf16>
    %18 = arith.truncf %15 : vector<960x196xf32> to vector<960x196xbf16>
    %cst_10 = arith.constant dense<0.000000e+00> : vector<160x196xf32>
    %19 = tpu.matmul %17, %18, %cst_10 {dimension_numbers = #tpu.dot_dimension_numbers<[1], [0], [0], [1], [0, 0, 1, 1], [], []>} : vector<160x960xbf16>, vector<960x196xbf16>, vector<160x196xf32> -> vector<160x196xf32>
    %cst_11 = arith.constant dense<0.000000e+00> : vector<160xf32>
    %20 = vector.multi_reduction <add>, %19, %cst_11 [1] : vector<160x196xf32> to vector<160xf32>
    %21 = vector.shape_cast %20 : vector<160xf32> to vector<160x1xf32>
    %cst_12 = arith.constant 0.00510204071 : f32
    %22 = vector.broadcast %cst_12 : f32 to vector<160x1xf32>
    %23 = arith.mulf %21, %22 : vector<160x1xf32>
    %24 = vector.broadcast %23 : vector<160x1xf32> to vector<160x196xf32>
    %25 = arith.subf %19, %24 : vector<160x196xf32>
    %26 = arith.mulf %25, %25 : vector<160x196xf32>
    %cst_13 = arith.constant dense<0.000000e+00> : vector<160xf32>
    %27 = vector.multi_reduction <add>, %26, %cst_13 [1] : vector<160x196xf32> to vector<160xf32>
    %28 = vector.shape_cast %27 : vector<160xf32> to vector<160x1xf32>
    %cst_14 = arith.constant 0.00510204071 : f32
    %29 = vector.broadcast %cst_14 : f32 to vector<160x1xf32>
    %30 = arith.mulf %28, %29 : vector<160x1xf32>
    %cst_15 = arith.constant 1.000000e-03 : f32
    %31 = vector.broadcast %cst_15 : f32 to vector<160x1xf32>
    %32 = arith.addf %30, %31 : vector<160x1xf32>
    %33 = math.rsqrt %32 : vector<160x1xf32>
    %c0_16 = arith.constant 0 : index
    %c0_17 = arith.constant 0 : index
    %34 = vector.load %arg5[%c0_16, %c0_17] : memref<160x1xf32, #tpu.memory_space<vmem>>, vector<160x1xf32>
    %35 = arith.mulf %33, %34 : vector<160x1xf32>
    %36 = vector.broadcast %35 : vector<160x1xf32> to vector<160x196xf32>
    %37 = arith.mulf %25, %36 : vector<160x196xf32>
    %c0_18 = arith.constant 0 : index
    %c0_19 = arith.constant 0 : index
    %38 = vector.load %arg6[%c0_18, %c0_19] : memref<160x1xf32, #tpu.memory_space<vmem>>, vector<160x1xf32>
    %39 = vector.broadcast %38 : vector<160x1xf32> to vector<160x196xf32>
    %40 = arith.addf %37, %39 : vector<160x196xf32>
    %c0_20 = arith.constant 0 : index
    %c0_21 = arith.constant 0 : index
    %41 = vector.load %arg7[%c0_20, %c0_21] : memref<160x196xf32, #tpu.memory_space<vmem>>, vector<160x196xf32>
    tpu.vector_store %arg7[%c0_20, %c0_21], %40 {strides = array<i32>} : memref<160x196xf32, #tpu.memory_space<vmem>>, vector<160x196xf32>,
    return
  }
}

</mosaic_0001>

<llo_original>
// kernel: tpu_custom_call.1
$region0: #{tpu_custom_call.1}
  #allocation0 [shape = 'u32[]', space=smem, size = 0x4, offset = 0x4, fixed_abs, tag = 'smem constant byte address 0x4 - core index']
  #allocation1 [shape = 'u32[144,128]{1,0:T(1,128)}', space=vmem, size = 0x12000, scoped, tag = 'internal scratch']
  %s0 = inlined_call_operand.vmem [shape: f32[1,40], index: 0, kind: input, shape index: {}]
  %s1 = inlined_call_operand.vmem [shape: f32[960,196], index: 1, kind: input, shape index: {}]
  %s2 = inlined_call_operand.vmem [shape: f32[960,40], index: 2, kind: input, shape index: {}]
  %s3 = inlined_call_operand.vmem [shape: f32[960,1], index: 3, kind: input, shape index: {}]
  %s4 = inlined_call_operand.vmem [shape: f32[160,960], index: 4, kind: input, shape index: {}]
  %s5 = inlined_call_operand.vmem [shape: f32[160,1], index: 5, kind: input, shape index: {}]
  %s6 = inlined_call_operand.vmem [shape: f32[160,1], index: 6, kind: input, shape index: {}]
  %s7 = inlined_call_operand.hbm [shape: f32[160,196], index: 7, kind: output, shape index: {}]
  %s8 = sld [smem:[#allocation0]]
  $region38: #{tpu_custom_call.1} parent=0
    _
  %s10 = ssub.s32 1, %s8
  %s11 = scalar_select 0, %s10, %s8
  $region1: #{tpu_custom_call.1} parent=0
    #allocation2 [shape = 'u8[163840]{0}', space=vmem, size = 0x28000, scoped, tag = 'output window, operand 0, single buffered']
    #allocation3 [shape = 's32[1]{0}', space=sflag, size = 0x4, scoped, tag = 'scoped memory for tpu_custom_call.1']
    %12 = vsyncpa [#allocation3], 0
    // Predicated region
    $region2: #{tpu_custom_call.1} parent=1 // pred_check
      _
    $region3: #{tpu_custom_call.1} parent=1 // pred_check_branch
      %14 = sbr.rel (0) target = $region5
    $region4: #{tpu_custom_call.1} parent=1 // pred_region
      _
    $region5: #{tpu_custom_call.1} parent=1 // pred_fallthru
      _
    // Predicated region
    $region6: #{tpu_custom_call.1} parent=1 // pred_check
      _
    $region7: #{tpu_custom_call.1} parent=1 // pred_check_branch
      %16 = sbr.rel (0) target = $region9
    $region8: #{tpu_custom_call.1} parent=1 // pred_region
      _
    $region9: #{tpu_custom_call.1} parent=1 // pred_fallthru
      _
    // Predicated region
    $region10: #{tpu_custom_call.1} parent=1 // pred_check
      _
    $region11: #{tpu_custom_call.1} parent=1 // pred_check_branch
      %18 = sbr.rel (0) target = $region13
    $region12: #{tpu_custom_call.1} parent=1 // pred_region
      _
    $region13: #{tpu_custom_call.1} parent=1 // pred_fallthru
      _
    // Predicated region
    $region14: #{tpu_custom_call.1} parent=1 // pred_check
      _
    $region15: #{tpu_custom_call.1} parent=1 // pred_check_branch
      %20 = sbr.rel (0) target = $region17
    $region16: #{tpu_custom_call.1} parent=1 // pred_region
      _
    $region17: #{tpu_custom_call.1} parent=1 // pred_fallthru
      _
    // Predicated region
    $region18: #{tpu_custom_call.1} parent=1 // pred_check
      _
    $region19: #{tpu_custom_call.1} parent=1 // pred_check_branch
      %22 = sbr.rel (0) target = $region21
    $region20: #{tpu_custom_call.1} parent=1 // pred_region
      _
    $region21: #{tpu_custom_call.1} parent=1 // pred_fallthru
      _
    // Predicated region
    $region22: #{tpu_custom_call.1} parent=1 // pred_check
      _
    $region23: #{tpu_custom_call.1} parent=1 // pred_check_branch
      %24 = sbr.rel (0) target = $region25
    $region24: #{tpu_custom_call.1} parent=1 // pred_region
      _
    $region25: #{tpu_custom_call.1} parent=1 // pred_fallthru
      _
    // Predicated region
    $region26: #{tpu_custom_call.1} parent=1 // pred_check
      _
    $region27: #{tpu_custom_call.1} parent=1 // pred_check_branch
      %26 = sbr.rel (0) target = $region29
    $region28: #{tpu_custom_call.1} parent=1 // pred_region
      _
    $region29: #{tpu_custom_call.1} parent=1 // pred_fallthru
      _
    %v28 = vld [vmem:[%s2] sm:$0xff]
    %v29 = vld [vmem:[%s2 + $0x8] sm:$0xff]
    %v30 = vld [vmem:[%s2 + $0x10] sm:$0xff]
    %v31 = vld [vmem:[%s2 + $0x18] sm:$0xff]
    %v32 = vld [vmem:[%s2 + $0x20] sm:$0xff]
    %v33 = vld [vmem:[%s2 + $0x28] sm:$0xff]
    %v34 = vld [vmem:[%s2 + $0x30] sm:$0xff]
    %v35 = vld [vmem:[%s2 + $0x38] sm:$0xff]
    %v36 = vld [vmem:[%s2 + $0x40] sm:$0xff]
    %v37 = vld [vmem:[%s2 + $0x48] sm:$0xff]
    %v38 = vld [vmem:[%s2 + $0x50] sm:$0xff]
    %v39 = vld [vmem:[%s2 + $0x58] sm:$0xff]
    %v40 = vld [vmem:[%s2 + $0x60] sm:$0xff]
    %v41 = vld [vmem:[%s2 + $0x68] sm:$0xff]
    %v42 = vld [vmem:[%s2 + $0x70] sm:$0xff]
    %v43 = vld [vmem:[%s2 + $0x78] sm:$0xff]
    %v44 = vld [vmem:[%s2 + $0x80] sm:$0xff]
    %v45 = vld [vmem:[%s2 + $0x88] sm:$0xff]
    %v46 = vld [vmem:[%s2 + $0x90] sm:$0xff]
    %v47 = vld [vmem:[%s2 + $0x98] sm:$0xff]
    %v48 = vld [vmem:[%s2 + $0xa0] sm:$0xff]
    %v49 = vld [vmem:[%s2 + $0xa8] sm:$0xff]
    %v50 = vld [vmem:[%s2 + $0xb0] sm:$0xff]
    %v51 = vld [vmem:[%s2 + $0xb8] sm:$0xff]
    %v52 = vld [vmem:[%s2 + $0xc0] sm:$0xff]
    %v53 = vld [vmem:[%s2 + $0xc8] sm:$0xff]
    %v54 = vld [vmem:[%s2 + $0xd0] sm:$0xff]
    %v55 = vld [vmem:[%s2 + $0xd8] sm:$0xff]
    %v56 = vld [vmem:[%s2 + $0xe0] sm:$0xff]
    %v57 = vld [vmem:[%s2 + $0xe8] sm:$0xff]
    %v58 = vld [vmem:[%s2 + $0xf0] sm:$0xff]
    %v59 = vld [vmem:[%s2 + $0xf8] sm:$0xff]
    %v60 = vld [vmem:[%s2 + $0x100] sm:$0xff]
    %v61 = vld [vmem:[%s2 + $0x108] sm:$0xff]
    %v62 = vld [vmem:[%s2 + $0x110] sm:$0xff]
    %v63 = vld [vmem:[%s2 + $0x118] sm:$0xff]
    %v64 = vld [vmem:[%s2 + $0x120] sm:$0xff]
    %v65 = vld [vmem:[%s2 + $0x128] sm:$0xff]
    %v66 = vld [vmem:[%s2 + $0x130] sm:$0xff]
    %v67 = vld [vmem:[%s2 + $0x138] sm:$0xff]
    %v68 = vld [vmem:[%s2 + $0x140] sm:$0xff]
    %v69 = vld [vmem:[%s2 + $0x148] sm:$0xff]
    %v70 = vld [vmem:[%s2 + $0x150] sm:$0xff]
    %v71 = vld [vmem:[%s2 + $0x158] sm:$0xff]
    %v72 = vld [vmem:[%s2 + $0x160] sm:$0xff]
    %v73 = vld [vmem:[%s2 + $0x168] sm:$0xff]
    %v74 = vld [vmem:[%s2 + $0x170] sm:$0xff]
    %v75 = vld [vmem:[%s2 + $0x178] sm:$0xff]
    %v76 = vld [vmem:[%s2 + $0x180] sm:$0xff]
    %v77 = vld [vmem:[%s2 + $0x188] sm:$0xff]
    %v78 = vld [vmem:[%s2 + $0x190] sm:$0xff]
    %v79 = vld [vmem:[%s2 + $0x198] sm:$0xff]
    %v80 = vld [vmem:[%s2 + $0x1a0] sm:$0xff]
    %v81 = vld [vmem:[%s2 + $0x1a8] sm:$0xff]
    %v82 = vld [vmem:[%s2 + $0x1b0] sm:$0xff]
    %v83 = vld [vmem:[%s2 + $0x1b8] sm:$0xff]
    %v84 = vld [vmem:[%s2 + $0x1c0] sm:$0xff]
    %v85 = vld [vmem:[%s2 + $0x1c8] sm:$0xff]
    %v86 = vld [vmem:[%s2 + $0x1d0] sm:$0xff]
    %v87 = vld [vmem:[%s2 + $0x1d8] sm:$0xff]
    %v88 = vld [vmem:[%s2 + $0x1e0] sm:$0xff]
    %v89 = vld [vmem:[%s2 + $0x1e8] sm:$0xff]
    %v90 = vld [vmem:[%s2 + $0x1f0] sm:$0xff]
    %v91 = vld [vmem:[%s2 + $0x1f8] sm:$0xff]
    %v92 = vld [vmem:[%s2 + $0x200] sm:$0xff]
    %v93 = vld [vmem:[%s2 + $0x208] sm:$0xff]
    %v94 = vld [vmem:[%s2 + $0x210] sm:$0xff]
    %v95 = vld [vmem:[%s2 + $0x218] sm:$0xff]
    %v96 = vld [vmem:[%s2 + $0x220] sm:$0xff]
    %v97 = vld [vmem:[%s2 + $0x228] sm:$0xff]
    %v98 = vld [vmem:[%s2 + $0x230] sm:$0xff]
    %v99 = vld [vmem:[%s2 + $0x238] sm:$0xff]
    %v100 = vld [vmem:[%s2 + $0x240] sm:$0xff]
    %v101 = vld [vmem:[%s2 + $0x248] sm:$0xff]
    %v102 = vld [vmem:[%s2 + $0x250] sm:$0xff]
    %v103 = vld [vmem:[%s2 + $0x258] sm:$0xff]
    %v104 = vld [vmem:[%s2 + $0x260] sm:$0xff]
    %v105 = vld [vmem:[%s2 + $0x268] sm:$0xff]
    %v106 = vld [vmem:[%s2 + $0x270] sm:$0xff]
    %v107 = vld [vmem:[%s2 + $0x278] sm:$0xff]
    %v108 = vld [vmem:[%s2 + $0x280] sm:$0xff]
    %v109 = vld [vmem:[%s2 + $0x288] sm:$0xff]
    %v110 = vld [vmem:[%s2 + $0x290] sm:$0xff]
    %v111 = vld [vmem:[%s2 + $0x298] sm:$0xff]
    %v112 = vld [vmem:[%s2 + $0x2a0] sm:$0xff]
    %v113 = vld [vmem:[%s2 + $0x2a8] sm:$0xff]
    %v114 = vld [vmem:[%s2 + $0x2b0] sm:$0xff]
    %v115 = vld [vmem:[%s2 + $0x2b8] sm:$0xff]
    %v116 = vld [vmem:[%s2 + $0x2c0] sm:$0xff]
    %v117 = vld [vmem:[%s2 + $0x2c8] sm:$0xff]
    %v118 = vld [vmem:[%s2 + $0x2d0] sm:$0xff]
    %v119 = vld [vmem:[%s2 + $0x2d8] sm:$0xff]
    %v120 = vld [vmem:[%s2 + $0x2e0] sm:$0xff]
    %v121 = vld [vmem:[%s2 + $0x2e8] sm:$0xff]
    %v122 = vld [vmem:[%s2 + $0x2f0] sm:$0xff]
    %v123 = vld [vmem:[%s2 + $0x2f8] sm:$0xff]
    %v124 = vld [vmem:[%s2 + $0x300] sm:$0xff]
    %v125 = vld [vmem:[%s2 + $0x308] sm:$0xff]
    %v126 = vld [vmem:[%s2 + $0x310] sm:$0xff]
    %v127 = vld [vmem:[%s2 + $0x318] sm:$0xff]
    %v128 = vld [vmem:[%s2 + $0x320] sm:$0xff]
    %v129 = vld [vmem:[%s2 + $0x328] sm:$0xff]
    %v130 = vld [vmem:[%s2 + $0x330] sm:$0xff]
    %v131 = vld [vmem:[%s2 + $0x338] sm:$0xff]
    %v132 = vld [vmem:[%s2 + $0x340] sm:$0xff]
    %v133 = vld [vmem:[%s2 + $0x348] sm:$0xff]
    %v134 = vld [vmem:[%s2 + $0x350] sm:$0xff]
    %v135 = vld [vmem:[%s2 + $0x358] sm:$0xff]
    %v136 = vld [vmem:[%s2 + $0x360] sm:$0xff]
    %v137 = vld [vmem:[%s2 + $0x368] sm:$0xff]
    %v138 = vld [vmem:[%s2 + $0x370] sm:$0xff]
    %v139 = vld [vmem:[%s2 + $0x378] sm:$0xff]
    %v140 = vld [vmem:[%s2 + $0x380] sm:$0xff]
    %v141 = vld [vmem:[%s2 + $0x388] sm:$0xff]
    %v142 = vld [vmem:[%s2 + $0x390] sm:$0xff]
    %v143 = vld [vmem:[%s2 + $0x398] sm:$0xff]
    %v144 = vld [vmem:[%s2 + $0x3a0] sm:$0xff]
    %v145 = vld [vmem:[%s2 + $0x3a8] sm:$0xff]
    %v146 = vld [vmem:[%s2 + $0x3b0] sm:$0xff]
    %v147 = vld [vmem:[%s2 + $0x3b8] sm:$0xff]
    %v148 = vld [vmem:[%s0] sm:$0x1]
    %v150 = vlaneseq
    %v151 = vshrl.u32 %v150, 7
    %v152 = vsub.s32 0, %v151
    %v153 = vrot.slane %v148, %v152
    %v155 = vmul.f32 %v28, %v153
    %v156 = vmul.f32 %v29, %v153
    %v157 = vmul.f32 %v30, %v153
    %v158 = vmul.f32 %v31, %v153
    %v159 = vmul.f32 %v32, %v153
    %v160 = vmul.f32 %v33, %v153
    %v161 = vmul.f32 %v34, %v153
    %v162 = vmul.f32 %v35, %v153
    %v163 = vmul.f32 %v36, %v153
    %v164 = vmul.f32 %v37, %v153
    %v165 = vmul.f32 %v38, %v153
    %v166 = vmul.f32 %v39, %v153
    %v167 = vmul.f32 %v40, %v153
    %v168 = vmul.f32 %v41, %v153
    %v169 = vmul.f32 %v42, %v153
    %v170 = vmul.f32 %v43, %v153
    %v171 = vmul.f32 %v44, %v153
    %v172 = vmul.f32 %v45, %v153
    %v173 = vmul.f32 %v46, %v153
    %v174 = vmul.f32 %v47, %v153
    %v175 = vmul.f32 %v48, %v153
    %v176 = vmul.f32 %v49, %v153
    %v177 = vmul.f32 %v50, %v153
    %v178 = vmul.f32 %v51, %v153
    %v179 = vmul.f32 %v52, %v153
    %v180 = vmul.f32 %v53, %v153
    %v181 = vmul.f32 %v54, %v153
    %v182 = vmul.f32 %v55, %v153
    %v183 = vmul.f32 %v56, %v153
    %v184 = vmul.f32 %v57, %v153
    %v185 = vmul.f32 %v58, %v153
    %v186 = vmul.f32 %v59, %v153
    %v187 = vmul.f32 %v60, %v153
    %v188 = vmul.f32 %v61, %v153
    %v189 = vmul.f32 %v62, %v153
    %v190 = vmul.f32 %v63, %v153
    %v191 = vmul.f32 %v64, %v153
    %v192 = vmul.f32 %v65, %v153
    %v193 = vmul.f32 %v66, %v153
    %v194 = vmul.f32 %v67, %v153
    %v195 = vmul.f32 %v68, %v153
    %v196 = vmul.f32 %v69, %v153
    %v197 = vmul.f32 %v70, %v153
    %v198 = vmul.f32 %v71, %v153
    %v199 = vmul.f32 %v72, %v153
    %v200 = vmul.f32 %v73, %v153
    %v201 = vmul.f32 %v74, %v153
    %v202 = vmul.f32 %v75, %v153
    %v203 = vmul.f32 %v76, %v153
    %v204 = vmul.f32 %v77, %v153
    %v205 = vmul.f32 %v78, %v153
    %v206 = vmul.f32 %v79, %v153
    %v207 = vmul.f32 %v80, %v153
    %v208 = vmul.f32 %v81, %v153
    %v209 = vmul.f32 %v82, %v153
    %v210 = vmul.f32 %v83, %v153
    %v211 = vmul.f32 %v84, %v153
    %v212 = vmul.f32 %v85, %v153
    %v213 = vmul.f32 %v86, %v153
    %v214 = vmul.f32 %v87, %v153
    %v215 = vmul.f32 %v88, %v153
    %v216 = vmul.f32 %v89, %v153
    %v217 = vmul.f32 %v90, %v153
    %v218 = vmul.f32 %v91, %v153
    %v219 = vmul.f32 %v92, %v153
    %v220 = vmul.f32 %v93, %v153
    %v221 = vmul.f32 %v94, %v153
    %v222 = vmul.f32 %v95, %v153
    %v223 = vmul.f32 %v96, %v153
    %v224 = vmul.f32 %v97, %v153
    %v225 = vmul.f32 %v98, %v153
    %v226 = vmul.f32 %v99, %v153
    %v227 = vmul.f32 %v100, %v153
    %v228 = vmul.f32 %v101, %v153
    %v229 = vmul.f32 %v102, %v153
    %v230 = vmul.f32 %v103, %v153
    %v231 = vmul.f32 %v104, %v153
    %v232 = vmul.f32 %v105, %v153
    %v233 = vmul.f32 %v106, %v153
    %v234 = vmul.f32 %v107, %v153
    %v235 = vmul.f32 %v108, %v153
    %v236 = vmul.f32 %v109, %v153
    %v237 = vmul.f32 %v110, %v153
    %v238 = vmul.f32 %v111, %v153
    %v239 = vmul.f32 %v112, %v153
    %v240 = vmul.f32 %v113, %v153
    %v241 = vmul.f32 %v114, %v153
    %v242 = vmul.f32 %v115, %v153
    %v243 = vmul.f32 %v116, %v153
    %v244 = vmul.f32 %v117, %v153
    %v245 = vmul.f32 %v118, %v153
    %v246 = vmul.f32 %v119, %v153
    %v247 = vmul.f32 %v120, %v153
    %v248 = vmul.f32 %v121, %v153
    %v249 = vmul.f32 %v122, %v153
    %v250 = vmul.f32 %v123, %v153
    %v251 = vmul.f32 %v124, %v153
    %v252 = vmul.f32 %v125, %v153
    %v253 = vmul.f32 %v126, %v153
    %v254 = vmul.f32 %v127, %v153
    %v255 = vmul.f32 %v128, %v153
    %v256 = vmul.f32 %v129, %v153
    %v257 = vmul.f32 %v130, %v153
    %v258 = vmul.f32 %v131, %v153
    %v259 = vmul.f32 %v132, %v153
    %v260 = vmul.f32 %v133, %v153
    %v261 = vmul.f32 %v134, %v153
    %v262 = vmul.f32 %v135, %v153
    %v263 = vmul.f32 %v136, %v153
    %v264 = vmul.f32 %v137, %v153
    %v265 = vmul.f32 %v138, %v153
    %v266 = vmul.f32 %v139, %v153
    %v267 = vmul.f32 %v140, %v153
    %v268 = vmul.f32 %v141, %v153
    %v269 = vmul.f32 %v142, %v153
    %v270 = vmul.f32 %v143, %v153
    %v271 = vmul.f32 %v144, %v153
    %v272 = vmul.f32 %v145, %v153
    %v273 = vmul.f32 %v146, %v153
    %v274 = vmul.f32 %v147, %v153
    %vm275 = vcmask 326656
    %v276 = vsel %vm275, %v155, 0.0
    %277 = vadd.xlane.f32.xlu0 %v276
    %v278 = vpop.xlane.xlu0 %277
    %v279 = vsel %vm275, %v156, 0.0
    %280 = vadd.xlane.f32.xlu0 %v279
    %v281 = vpop.xlane.xlu0 %280
    %v282 = vsel %vm275, %v157, 0.0
    %283 = vadd.xlane.f32.xlu0 %v282
    %v284 = vpop.xlane.xlu0 %283
    %v285 = vsel %vm275, %v158, 0.0
    %286 = vadd.xlane.f32.xlu0 %v285
    %v287 = vpop.xlane.xlu0 %286
    %v288 = vsel %vm275, %v159, 0.0
    %289 = vadd.xlane.f32.xlu0 %v288
    %v290 = vpop.xlane.xlu0 %289
    %v291 = vsel %vm275, %v160, 0.0
    %292 = vadd.xlane.f32.xlu0 %v291
    %v293 = vpop.xlane.xlu0 %292
    %v294 = vsel %vm275, %v161, 0.0
    %295 = vadd.xlane.f32.xlu0 %v294
    %v296 = vpop.xlane.xlu0 %295
    %v297 = vsel %vm275, %v162, 0.0
    %298 = vadd.xlane.f32.xlu0 %v297
    %v299 = vpop.xlane.xlu0 %298
    %v300 = vsel %vm275, %v163, 0.0
    %301 = vadd.xlane.f32.xlu0 %v300
    %v302 = vpop.xlane.xlu0 %301
    %v303 = vsel %vm275, %v164, 0.0
    %304 = vadd.xlane.f32.xlu0 %v303
    %v305 = vpop.xlane.xlu0 %304
    %v306 = vsel %vm275, %v165, 0.0
    %307 = vadd.xlane.f32.xlu0 %v306
    %v308 = vpop.xlane.xlu0 %307
    %v309 = vsel %vm275, %v166, 0.0
    %310 = vadd.xlane.f32.xlu0 %v309
    %v311 = vpop.xlane.xlu0 %310
    %v312 = vsel %vm275, %v167, 0.0
    %313 = vadd.xlane.f32.xlu0 %v312
    %v314 = vpop.xlane.xlu0 %313
    %v315 = vsel %vm275, %v168, 0.0
    %316 = vadd.xlane.f32.xlu0 %v315
    %v317 = vpop.xlane.xlu0 %316
    %v318 = vsel %vm275, %v169, 0.0
    %319 = vadd.xlane.f32.xlu0 %v318
    %v320 = vpop.xlane.xlu0 %319
    %v321 = vsel %vm275, %v170, 0.0
    %322 = vadd.xlane.f32.xlu0 %v321
    %v323 = vpop.xlane.xlu0 %322
    %v324 = vsel %vm275, %v171, 0.0
    %325 = vadd.xlane.f32.xlu0 %v324
    %v326 = vpop.xlane.xlu0 %325
    %v327 = vsel %vm275, %v172, 0.0
    %328 = vadd.xlane.f32.xlu0 %v327
    %v329 = vpop.xlane.xlu0 %328
    %v330 = vsel %vm275, %v173, 0.0
    %331 = vadd.xlane.f32.xlu0 %v330
    %v332 = vpop.xlane.xlu0 %331
    %v333 = vsel %vm275, %v174, 0.0
    %334 = vadd.xlane.f32.xlu0 %v333
    %v335 = vpop.xlane.xlu0 %334
    %v336 = vsel %vm275, %v175, 0.0
    %337 = vadd.xlane.f32.xlu0 %v336
    %v338 = vpop.xlane.xlu0 %337
    %v339 = vsel %vm275, %v176, 0.0
    %340 = vadd.xlane.f32.xlu0 %v339
    %v341 = vpop.xlane.xlu0 %340
    %v342 = vsel %vm275, %v177, 0.0
    %343 = vadd.xlane.f32.xlu0 %v342
    %v344 = vpop.xlane.xlu0 %343
    %v345 = vsel %vm275, %v178, 0.0
    %346 = vadd.xlane.f32.xlu0 %v345
    %v347 = vpop.xlane.xlu0 %346
    %v348 = vsel %vm275, %v179, 0.0
    %349 = vadd.xlane.f32.xlu0 %v348
    %v350 = vpop.xlane.xlu0 %349
    %v351 = vsel %vm275, %v180, 0.0
    %352 = vadd.xlane.f32.xlu0 %v351
    %v353 = vpop.xlane.xlu0 %352
    %v354 = vsel %vm275, %v181, 0.0
    %355 = vadd.xlane.f32.xlu0 %v354
    %v356 = vpop.xlane.xlu0 %355
    %v357 = vsel %vm275, %v182, 0.0
    %358 = vadd.xlane.f32.xlu0 %v357
    %v359 = vpop.xlane.xlu0 %358
    %v360 = vsel %vm275, %v183, 0.0
    %361 = vadd.xlane.f32.xlu0 %v360
    %v362 = vpop.xlane.xlu0 %361
    %v363 = vsel %vm275, %v184, 0.0
    %364 = vadd.xlane.f32.xlu0 %v363
    %v365 = vpop.xlane.xlu0 %364
    %v366 = vsel %vm275, %v185, 0.0
    %367 = vadd.xlane.f32.xlu0 %v366
    %v368 = vpop.xlane.xlu0 %367
    %v369 = vsel %vm275, %v186, 0.0
    %370 = vadd.xlane.f32.xlu0 %v369
    %v371 = vpop.xlane.xlu0 %370
    %v372 = vsel %vm275, %v187, 0.0
    %373 = vadd.xlane.f32.xlu0 %v372
    %v374 = vpop.xlane.xlu0 %373
    %v375 = vsel %vm275, %v188, 0.0
    %376 = vadd.xlane.f32.xlu0 %v375
    %v377 = vpop.xlane.xlu0 %376
    %v378 = vsel %vm275, %v189, 0.0
    %379 = vadd.xlane.f32.xlu0 %v378
    %v380 = vpop.xlane.xlu0 %379
    %v381 = vsel %vm275, %v190, 0.0
    %382 = vadd.xlane.f32.xlu0 %v381
    %v383 = vpop.xlane.xlu0 %382
    %v384 = vsel %vm275, %v191, 0.0
    %385 = vadd.xlane.f32.xlu0 %v384
    %v386 = vpop.xlane.xlu0 %385
    %v387 = vsel %vm275, %v192, 0.0
    %388 = vadd.xlane.f32.xlu0 %v387
    %v389 = vpop.xlane.xlu0 %388
    %v390 = vsel %vm275, %v193, 0.0
    %391 = vadd.xlane.f32.xlu0 %v390
    %v392 = vpop.xlane.xlu0 %391
    %v393 = vsel %vm275, %v194, 0.0
    %394 = vadd.xlane.f32.xlu0 %v393
    %v395 = vpop.xlane.xlu0 %394
    %v396 = vsel %vm275, %v195, 0.0
    %397 = vadd.xlane.f32.xlu0 %v396
    %v398 = vpop.xlane.xlu0 %397
    %v399 = vsel %vm275, %v196, 0.0
    %400 = vadd.xlane.f32.xlu0 %v399
    %v401 = vpop.xlane.xlu0 %400
    %v402 = vsel %vm275, %v197, 0.0
    %403 = vadd.xlane.f32.xlu0 %v402
    %v404 = vpop.xlane.xlu0 %403
    %v405 = vsel %vm275, %v198, 0.0
    %406 = vadd.xlane.f32.xlu0 %v405
    %v407 = vpop.xlane.xlu0 %406
    %v408 = vsel %vm275, %v199, 0.0
    %409 = vadd.xlane.f32.xlu0 %v408
    %v410 = vpop.xlane.xlu0 %409
    %v411 = vsel %vm275, %v200, 0.0
    %412 = vadd.xlane.f32.xlu0 %v411
    %v413 = vpop.xlane.xlu0 %412
    %v414 = vsel %vm275, %v201, 0.0
    %415 = vadd.xlane.f32.xlu0 %v414
    %v416 = vpop.xlane.xlu0 %415
    %v417 = vsel %vm275, %v202, 0.0
    %418 = vadd.xlane.f32.xlu0 %v417
    %v419 = vpop.xlane.xlu0 %418
    %v420 = vsel %vm275, %v203, 0.0
    %421 = vadd.xlane.f32.xlu0 %v420
    %v422 = vpop.xlane.xlu0 %421
    %v423 = vsel %vm275, %v204, 0.0
    %424 = vadd.xlane.f32.xlu0 %v423
    %v425 = vpop.xlane.xlu0 %424
    %v426 = vsel %vm275, %v205, 0.0
    %427 = vadd.xlane.f32.xlu0 %v426
    %v428 = vpop.xlane.xlu0 %427
    %v429 = vsel %vm275, %v206, 0.0
    %430 = vadd.xlane.f32.xlu0 %v429
    %v431 = vpop.xlane.xlu0 %430
    %v432 = vsel %vm275, %v207, 0.0
    %433 = vadd.xlane.f32.xlu0 %v432
    %v434 = vpop.xlane.xlu0 %433
    %v435 = vsel %vm275, %v208, 0.0
    %436 = vadd.xlane.f32.xlu0 %v435
    %v437 = vpop.xlane.xlu0 %436
    %v438 = vsel %vm275, %v209, 0.0
    %439 = vadd.xlane.f32.xlu0 %v438
    %v440 = vpop.xlane.xlu0 %439
    %v441 = vsel %vm275, %v210, 0.0
    %442 = vadd.xlane.f32.xlu0 %v441
    %v443 = vpop.xlane.xlu0 %442
    %v444 = vsel %vm275, %v211, 0.0
    %445 = vadd.xlane.f32.xlu0 %v444
    %v446 = vpop.xlane.xlu0 %445
    %v447 = vsel %vm275, %v212, 0.0
    %448 = vadd.xlane.f32.xlu0 %v447
    %v449 = vpop.xlane.xlu0 %448
    %v450 = vsel %vm275, %v213, 0.0
    %451 = vadd.xlane.f32.xlu0 %v450
    %v452 = vpop.xlane.xlu0 %451
    %v453 = vsel %vm275, %v214, 0.0
    %454 = vadd.xlane.f32.xlu0 %v453
    %v455 = vpop.xlane.xlu0 %454
    %v456 = vsel %vm275, %v215, 0.0
    %457 = vadd.xlane.f32.xlu0 %v456
    %v458 = vpop.xlane.xlu0 %457
    %v459 = vsel %vm275, %v216, 0.0
    %460 = vadd.xlane.f32.xlu0 %v459
    %v461 = vpop.xlane.xlu0 %460
    %v462 = vsel %vm275, %v217, 0.0
    %463 = vadd.xlane.f32.xlu0 %v462
    %v464 = vpop.xlane.xlu0 %463
    %v465 = vsel %vm275, %v218, 0.0
    %466 = vadd.xlane.f32.xlu0 %v465
    %v467 = vpop.xlane.xlu0 %466
    %v468 = vsel %vm275, %v219, 0.0
    %469 = vadd.xlane.f32.xlu0 %v468
    %v470 = vpop.xlane.xlu0 %469
    %v471 = vsel %vm275, %v220, 0.0
    %472 = vadd.xlane.f32.xlu0 %v471
    %v473 = vpop.xlane.xlu0 %472
    %v474 = vsel %vm275, %v221, 0.0
    %475 = vadd.xlane.f32.xlu0 %v474
    %v476 = vpop.xlane.xlu0 %475
    %v477 = vsel %vm275, %v222, 0.0
    %478 = vadd.xlane.f32.xlu0 %v477
    %v479 = vpop.xlane.xlu0 %478
    %v480 = vsel %vm275, %v223, 0.0
    %481 = vadd.xlane.f32.xlu0 %v480
    %v482 = vpop.xlane.xlu0 %481
    %v483 = vsel %vm275, %v224, 0.0
    %484 = vadd.xlane.f32.xlu0 %v483
    %v485 = vpop.xlane.xlu0 %484
    %v486 = vsel %vm275, %v225, 0.0
    %487 = vadd.xlane.f32.xlu0 %v486
    %v488 = vpop.xlane.xlu0 %487
    %v489 = vsel %vm275, %v226, 0.0
    %490 = vadd.xlane.f32.xlu0 %v489
    %v491 = vpop.xlane.xlu0 %490
    %v492 = vsel %vm275, %v227, 0.0
    %493 = vadd.xlane.f32.xlu0 %v492
    %v494 = vpop.xlane.xlu0 %493
    %v495 = vsel %vm275, %v228, 0.0
    %496 = vadd.xlane.f32.xlu0 %v495
    %v497 = vpop.xlane.xlu0 %496
    %v498 = vsel %vm275, %v229, 0.0
    %499 = vadd.xlane.f32.xlu0 %v498
    %v500 = vpop.xlane.xlu0 %499
    %v501 = vsel %vm275, %v230, 0.0
    %502 = vadd.xlane.f32.xlu0 %v501
    %v503 = vpop.xlane.xlu0 %502
    %v504 = vsel %vm275, %v231, 0.0
    %505 = vadd.xlane.f32.xlu0 %v504
    %v506 = vpop.xlane.xlu0 %505
    %v507 = vsel %vm275, %v232, 0.0
    %508 = vadd.xlane.f32.xlu0 %v507
    %v509 = vpop.xlane.xlu0 %508
    %v510 = vsel %vm275, %v233, 0.0
    %511 = vadd.xlane.f32.xlu0 %v510
    %v512 = vpop.xlane.xlu0 %511
    %v513 = vsel %vm275, %v234, 0.0
    %514 = vadd.xlane.f32.xlu0 %v513
    %v515 = vpop.xlane.xlu0 %514
    %v516 = vsel %vm275, %v235, 0.0
    %517 = vadd.xlane.f32.xlu0 %v516
    %v518 = vpop.xlane.xlu0 %517
    %v519 = vsel %vm275, %v236, 0.0
    %520 = vadd.xlane.f32.xlu0 %v519
    %v521 = vpop.xlane.xlu0 %520
    %v522 = vsel %vm275, %v237, 0.0
    %523 = vadd.xlane.f32.xlu0 %v522
    %v524 = vpop.xlane.xlu0 %523
    %v525 = vsel %vm275, %v238, 0.0
    %526 = vadd.xlane.f32.xlu0 %v525
    %v527 = vpop.xlane.xlu0 %526
    %v528 = vsel %vm275, %v239, 0.0
    %529 = vadd.xlane.f32.xlu0 %v528
    %v530 = vpop.xlane.xlu0 %529
    %v531 = vsel %vm275, %v240, 0.0
    %532 = vadd.xlane.f32.xlu0 %v531
    %v533 = vpop.xlane.xlu0 %532
    %v534 = vsel %vm275, %v241, 0.0
    %535 = vadd.xlane.f32.xlu0 %v534
    %v536 = vpop.xlane.xlu0 %535
    %v537 = vsel %vm275, %v242, 0.0
    %538 = vadd.xlane.f32.xlu0 %v537
    %v539 = vpop.xlane.xlu0 %538
    %v540 = vsel %vm275, %v243, 0.0
    %541 = vadd.xlane.f32.xlu0 %v540
    %v542 = vpop.xlane.xlu0 %541
    %v543 = vsel %vm275, %v244, 0.0
    %544 = vadd.xlane.f32.xlu0 %v543
    %v545 = vpop.xlane.xlu0 %544
    %v546 = vsel %vm275, %v245, 0.0
    %547 = vadd.xlane.f32.xlu0 %v546
    %v548 = vpop.xlane.xlu0 %547
    %v549 = vsel %vm275, %v246, 0.0
    %550 = vadd.xlane.f32.xlu0 %v549
    %v551 = vpop.xlane.xlu0 %550
    %v552 = vsel %vm275, %v247, 0.0
    %553 = vadd.xlane.f32.xlu0 %v552
    %v554 = vpop.xlane.xlu0 %553
    %v555 = vsel %vm275, %v248, 0.0
    %556 = vadd.xlane.f32.xlu0 %v555
    %v557 = vpop.xlane.xlu0 %556
    %v558 = vsel %vm275, %v249, 0.0
    %559 = vadd.xlane.f32.xlu0 %v558
    %v560 = vpop.xlane.xlu0 %559
    %v561 = vsel %vm275, %v250, 0.0
    %562 = vadd.xlane.f32.xlu0 %v561
    %v563 = vpop.xlane.xlu0 %562
    %v564 = vsel %vm275, %v251, 0.0
    %565 = vadd.xlane.f32.xlu0 %v564
    %v566 = vpop.xlane.xlu0 %565
    %v567 = vsel %vm275, %v252, 0.0
    %568 = vadd.xlane.f32.xlu0 %v567
    %v569 = vpop.xlane.xlu0 %568
    %v570 = vsel %vm275, %v253, 0.0
    %571 = vadd.xlane.f32.xlu0 %v570
    %v572 = vpop.xlane.xlu0 %571
    %v573 = vsel %vm275, %v254, 0.0
    %574 = vadd.xlane.f32.xlu0 %v573
    %v575 = vpop.xlane.xlu0 %574
    %v576 = vsel %vm275, %v255, 0.0
    %577 = vadd.xlane.f32.xlu0 %v576
    %v578 = vpop.xlane.xlu0 %577
    %v579 = vsel %vm275, %v256, 0.0
    %580 = vadd.xlane.f32.xlu0 %v579
    %v581 = vpop.xlane.xlu0 %580
    %v582 = vsel %vm275, %v257, 0.0
    %583 = vadd.xlane.f32.xlu0 %v582
    %v584 = vpop.xlane.xlu0 %583
    %v585 = vsel %vm275, %v258, 0.0
    %586 = vadd.xlane.f32.xlu0 %v585
    %v587 = vpop.xlane.xlu0 %586
    %v588 = vsel %vm275, %v259, 0.0
    %589 = vadd.xlane.f32.xlu0 %v588
    %v590 = vpop.xlane.xlu0 %589
    %v591 = vsel %vm275, %v260, 0.0
    %592 = vadd.xlane.f32.xlu0 %v591
    %v593 = vpop.xlane.xlu0 %592
    %v594 = vsel %vm275, %v261, 0.0
    %595 = vadd.xlane.f32.xlu0 %v594
    %v596 = vpop.xlane.xlu0 %595
    %v597 = vsel %vm275, %v262, 0.0
    %598 = vadd.xlane.f32.xlu0 %v597
    %v599 = vpop.xlane.xlu0 %598
    %v600 = vsel %vm275, %v263, 0.0
    %601 = vadd.xlane.f32.xlu0 %v600
    %v602 = vpop.xlane.xlu0 %601
    %v603 = vsel %vm275, %v264, 0.0
    %604 = vadd.xlane.f32.xlu0 %v603
    %v605 = vpop.xlane.xlu0 %604
    %v606 = vsel %vm275, %v265, 0.0
    %607 = vadd.xlane.f32.xlu0 %v606
    %v608 = vpop.xlane.xlu0 %607
    %v609 = vsel %vm275, %v266, 0.0
    %610 = vadd.xlane.f32.xlu0 %v609
    %v611 = vpop.xlane.xlu0 %610
    %v612 = vsel %vm275, %v267, 0.0
    %613 = vadd.xlane.f32.xlu0 %v612
    %v614 = vpop.xlane.xlu0 %613
    %v615 = vsel %vm275, %v268, 0.0
    %616 = vadd.xlane.f32.xlu0 %v615
    %v617 = vpop.xlane.xlu0 %616
    %v618 = vsel %vm275, %v269, 0.0
    %619 = vadd.xlane.f32.xlu0 %v618
    %v620 = vpop.xlane.xlu0 %619
    %v621 = vsel %vm275, %v270, 0.0
    %622 = vadd.xlane.f32.xlu0 %v621
    %v623 = vpop.xlane.xlu0 %622
    %v624 = vsel %vm275, %v271, 0.0
    %625 = vadd.xlane.f32.xlu0 %v624
    %v626 = vpop.xlane.xlu0 %625
    %v627 = vsel %vm275, %v272, 0.0
    %628 = vadd.xlane.f32.xlu0 %v627
    %v629 = vpop.xlane.xlu0 %628
    %v630 = vsel %vm275, %v273, 0.0
    %631 = vadd.xlane.f32.xlu0 %v630
    %v632 = vpop.xlane.xlu0 %631
    %v633 = vsel %vm275, %v274, 0.0
    %634 = vadd.xlane.f32.xlu0 %v633
    %v635 = vpop.xlane.xlu0 %634
    %v636 = vld [vmem:[%s3] sm:$0xff]
    %v637 = vld [vmem:[%s3 + $0x8] sm:$0xff]
    %v638 = vld [vmem:[%s3 + $0x10] sm:$0xff]
    %v639 = vld [vmem:[%s3 + $0x18] sm:$0xff]
    %v640 = vld [vmem:[%s3 + $0x20] sm:$0xff]
    %v641 = vld [vmem:[%s3 + $0x28] sm:$0xff]
    %v642 = vld [vmem:[%s3 + $0x30] sm:$0xff]
    %v643 = vld [vmem:[%s3 + $0x38] sm:$0xff]
    %v644 = vld [vmem:[%s3 + $0x40] sm:$0xff]
    %v645 = vld [vmem:[%s3 + $0x48] sm:$0xff]
    %v646 = vld [vmem:[%s3 + $0x50] sm:$0xff]
    %v647 = vld [vmem:[%s3 + $0x58] sm:$0xff]
    %v648 = vld [vmem:[%s3 + $0x60] sm:$0xff]
    %v649 = vld [vmem:[%s3 + $0x68] sm:$0xff]
    %v650 = vld [vmem:[%s3 + $0x70] sm:$0xff]
    %v651 = vld [vmem:[%s3 + $0x78] sm:$0xff]
    %v652 = vld [vmem:[%s3 + $0x80] sm:$0xff]
    %v653 = vld [vmem:[%s3 + $0x88] sm:$0xff]
    %v654 = vld [vmem:[%s3 + $0x90] sm:$0xff]
    %v655 = vld [vmem:[%s3 + $0x98] sm:$0xff]
    %v656 = vld [vmem:[%s3 + $0xa0] sm:$0xff]
    %v657 = vld [vmem:[%s3 + $0xa8] sm:$0xff]
    %v658 = vld [vmem:[%s3 + $0xb0] sm:$0xff]
    %v659 = vld [vmem:[%s3 + $0xb8] sm:$0xff]
    %v660 = vld [vmem:[%s3 + $0xc0] sm:$0xff]
    %v661 = vld [vmem:[%s3 + $0xc8] sm:$0xff]
    %v662 = vld [vmem:[%s3 + $0xd0] sm:$0xff]
    %v663 = vld [vmem:[%s3 + $0xd8] sm:$0xff]
    %v664 = vld [vmem:[%s3 + $0xe0] sm:$0xff]
    %v665 = vld [vmem:[%s3 + $0xe8] sm:$0xff]
    %v666 = vld [vmem:[%s3 + $0xf0] sm:$0xff]
    %v667 = vld [vmem:[%s3 + $0xf8] sm:$0xff]
    %v668 = vld [vmem:[%s3 + $0x100] sm:$0xff]
    %v669 = vld [vmem:[%s3 + $0x108] sm:$0xff]
    %v670 = vld [vmem:[%s3 + $0x110] sm:$0xff]
    %v671 = vld [vmem:[%s3 + $0x118] sm:$0xff]
    %v672 = vld [vmem:[%s3 + $0x120] sm:$0xff]
    %v673 = vld [vmem:[%s3 + $0x128] sm:$0xff]
    %v674 = vld [vmem:[%s3 + $0x130] sm:$0xff]
    %v675 = vld [vmem:[%s3 + $0x138] sm:$0xff]
    %v676 = vld [vmem:[%s3 + $0x140] sm:$0xff]
    %v677 = vld [vmem:[%s3 + $0x148] sm:$0xff]
    %v678 = vld [vmem:[%s3 + $0x150] sm:$0xff]
    %v679 = vld [vmem:[%s3 + $0x158] sm:$0xff]
    %v680 = vld [vmem:[%s3 + $0x160] sm:$0xff]
    %v681 = vld [vmem:[%s3 + $0x168] sm:$0xff]
    %v682 = vld [vmem:[%s3 + $0x170] sm:$0xff]
    %v683 = vld [vmem:[%s3 + $0x178] sm:$0xff]
    %v684 = vld [vmem:[%s3 + $0x180] sm:$0xff]
    %v685 = vld [vmem:[%s3 + $0x188] sm:$0xff]
    %v686 = vld [vmem:[%s3 + $0x190] sm:$0xff]
    %v687 = vld [vmem:[%s3 + $0x198] sm:$0xff]
    %v688 = vld [vmem:[%s3 + $0x1a0] sm:$0xff]
    %v689 = vld [vmem:[%s3 + $0x1a8] sm:$0xff]
    %v690 = vld [vmem:[%s3 + $0x1b0] sm:$0xff]
    %v691 = vld [vmem:[%s3 + $0x1b8] sm:$0xff]
    %v692 = vld [vmem:[%s3 + $0x1c0] sm:$0xff]
    %v693 = vld [vmem:[%s3 + $0x1c8] sm:$0xff]
    %v694 = vld [vmem:[%s3 + $0x1d0] sm:$0xff]
    %v695 = vld [vmem:[%s3 + $0x1d8] sm:$0xff]
    %v696 = vld [vmem:[%s3 + $0x1e0] sm:$0xff]
    %v697 = vld [vmem:[%s3 + $0x1e8] sm:$0xff]
    %v698 = vld [vmem:[%s3 + $0x1f0] sm:$0xff]
    %v699 = vld [vmem:[%s3 + $0x1f8] sm:$0xff]
    %v700 = vld [vmem:[%s3 + $0x200] sm:$0xff]
    %v701 = vld [vmem:[%s3 + $0x208] sm:$0xff]
    %v702 = vld [vmem:[%s3 + $0x210] sm:$0xff]
    %v703 = vld [vmem:[%s3 + $0x218] sm:$0xff]
    %v704 = vld [vmem:[%s3 + $0x220] sm:$0xff]
    %v705 = vld [vmem:[%s3 + $0x228] sm:$0xff]
    %v706 = vld [vmem:[%s3 + $0x230] sm:$0xff]
    %v707 = vld [vmem:[%s3 + $0x238] sm:$0xff]
    %v708 = vld [vmem:[%s3 + $0x240] sm:$0xff]
    %v709 = vld [vmem:[%s3 + $0x248] sm:$0xff]
    %v710 = vld [vmem:[%s3 + $0x250] sm:$0xff]
    %v711 = vld [vmem:[%s3 + $0x258] sm:$0xff]
    %v712 = vld [vmem:[%s3 + $0x260] sm:$0xff]
    %v713 = vld [vmem:[%s3 + $0x268] sm:$0xff]
    %v714 = vld [vmem:[%s3 + $0x270] sm:$0xff]
    %v715 = vld [vmem:[%s3 + $0x278] sm:$0xff]
    %v716 = vld [vmem:[%s3 + $0x280] sm:$0xff]
    %v717 = vld [vmem:[%s3 + $0x288] sm:$0xff]
    %v718 = vld [vmem:[%s3 + $0x290] sm:$0xff]
    %v719 = vld [vmem:[%s3 + $0x298] sm:$0xff]
    %v720 = vld [vmem:[%s3 + $0x2a0] sm:$0xff]
    %v721 = vld [vmem:[%s3 + $0x2a8] sm:$0xff]
    %v722 = vld [vmem:[%s3 + $0x2b0] sm:$0xff]
    %v723 = vld [vmem:[%s3 + $0x2b8] sm:$0xff]
    %v724 = vld [vmem:[%s3 + $0x2c0] sm:$0xff]
    %v725 = vld [vmem:[%s3 + $0x2c8] sm:$0xff]
    %v726 = vld [vmem:[%s3 + $0x2d0] sm:$0xff]
    %v727 = vld [vmem:[%s3 + $0x2d8] sm:$0xff]
    %v728 = vld [vmem:[%s3 + $0x2e0] sm:$0xff]
    %v729 = vld [vmem:[%s3 + $0x2e8] sm:$0xff]
    %v730 = vld [vmem:[%s3 + $0x2f0] sm:$0xff]
    %v731 = vld [vmem:[%s3 + $0x2f8] sm:$0xff]
    %v732 = vld [vmem:[%s3 + $0x300] sm:$0xff]
    %v733 = vld [vmem:[%s3 + $0x308] sm:$0xff]
    %v734 = vld [vmem:[%s3 + $0x310] sm:$0xff]
    %v735 = vld [vmem:[%s3 + $0x318] sm:$0xff]
    %v736 = vld [vmem:[%s3 + $0x320] sm:$0xff]
    %v737 = vld [vmem:[%s3 + $0x328] sm:$0xff]
    %v738 = vld [vmem:[%s3 + $0x330] sm:$0xff]
    %v739 = vld [vmem:[%s3 + $0x338] sm:$0xff]
    %v740 = vld [vmem:[%s3 + $0x340] sm:$0xff]
    %v741 = vld [vmem:[%s3 + $0x348] sm:$0xff]
    %v742 = vld [vmem:[%s3 + $0x350] sm:$0xff]
    %v743 = vld [vmem:[%s3 + $0x358] sm:$0xff]
    %v744 = vld [vmem:[%s3 + $0x360] sm:$0xff]
    %v745 = vld [vmem:[%s3 + $0x368] sm:$0xff]
    %v746 = vld [vmem:[%s3 + $0x370] sm:$0xff]
    %v747 = vld [vmem:[%s3 + $0x378] sm:$0xff]
    %v748 = vld [vmem:[%s3 + $0x380] sm:$0xff]
    %v749 = vld [vmem:[%s3 + $0x388] sm:$0xff]
    %v750 = vld [vmem:[%s3 + $0x390] sm:$0xff]
    %v751 = vld [vmem:[%s3 + $0x398] sm:$0xff]
    %v752 = vld [vmem:[%s3 + $0x3a0] sm:$0xff]
    %v753 = vld [vmem:[%s3 + $0x3a8] sm:$0xff]
    %v754 = vld [vmem:[%s3 + $0x3b0] sm:$0xff]
    %v755 = vld [vmem:[%s3 + $0x3b8] sm:$0xff]
    %v756 = vadd.f32 %v278, %v636
    %v757 = vadd.f32 %v281, %v637
    %v758 = vadd.f32 %v284, %v638
    %v759 = vadd.f32 %v287, %v639
    %v760 = vadd.f32 %v290, %v640
    %v761 = vadd.f32 %v293, %v641
    %v762 = vadd.f32 %v296, %v642
    %v763 = vadd.f32 %v299, %v643
    %v764 = vadd.f32 %v302, %v644
    %v765 = vadd.f32 %v305, %v645
    %v766 = vadd.f32 %v308, %v646
    %v767 = vadd.f32 %v311, %v647
    %v768 = vadd.f32 %v314, %v648
    %v769 = vadd.f32 %v317, %v649
    %v770 = vadd.f32 %v320, %v650
    %v771 = vadd.f32 %v323, %v651
    %v772 = vadd.f32 %v326, %v652
    %v773 = vadd.f32 %v329, %v653
    %v774 = vadd.f32 %v332, %v654
    %v775 = vadd.f32 %v335, %v655
    %v776 = vadd.f32 %v338, %v656
    %v777 = vadd.f32 %v341, %v657
    %v778 = vadd.f32 %v344, %v658
    %v779 = vadd.f32 %v347, %v659
    %v780 = vadd.f32 %v350, %v660
    %v781 = vadd.f32 %v353, %v661
    %v782 = vadd.f32 %v356, %v662
    %v783 = vadd.f32 %v359, %v663
    %v784 = vadd.f32 %v362, %v664
    %v785 = vadd.f32 %v365, %v665
    %v786 = vadd.f32 %v368, %v666
    %v787 = vadd.f32 %v371, %v667
    %v788 = vadd.f32 %v374, %v668
    %v789 = vadd.f32 %v377, %v669
    %v790 = vadd.f32 %v380, %v670
    %v791 = vadd.f32 %v383, %v671
    %v792 = vadd.f32 %v386, %v672
    %v793 = vadd.f32 %v389, %v673
    %v794 = vadd.f32 %v392, %v674
    %v795 = vadd.f32 %v395, %v675
    %v796 = vadd.f32 %v398, %v676
    %v797 = vadd.f32 %v401, %v677
    %v798 = vadd.f32 %v404, %v678
    %v799 = vadd.f32 %v407, %v679
    %v800 = vadd.f32 %v410, %v680
    %v801 = vadd.f32 %v413, %v681
    %v802 = vadd.f32 %v416, %v682
    %v803 = vadd.f32 %v419, %v683
    %v804 = vadd.f32 %v422, %v684
    %v805 = vadd.f32 %v425, %v685
    %v806 = vadd.f32 %v428, %v686
    %v807 = vadd.f32 %v431, %v687
    %v808 = vadd.f32 %v434, %v688
    %v809 = vadd.f32 %v437, %v689
    %v810 = vadd.f32 %v440, %v690
    %v811 = vadd.f32 %v443, %v691
    %v812 = vadd.f32 %v446, %v692
    %v813 = vadd.f32 %v449, %v693
    %v814 = vadd.f32 %v452, %v694
    %v815 = vadd.f32 %v455, %v695
    %v816 = vadd.f32 %v458, %v696
    %v817 = vadd.f32 %v461, %v697
    %v818 = vadd.f32 %v464, %v698
    %v819 = vadd.f32 %v467, %v699
    %v820 = vadd.f32 %v470, %v700
    %v821 = vadd.f32 %v473, %v701
    %v822 = vadd.f32 %v476, %v702
    %v823 = vadd.f32 %v479, %v703
    %v824 = vadd.f32 %v482, %v704
    %v825 = vadd.f32 %v485, %v705
    %v826 = vadd.f32 %v488, %v706
    %v827 = vadd.f32 %v491, %v707
    %v828 = vadd.f32 %v494, %v708
    %v829 = vadd.f32 %v497, %v709
    %v830 = vadd.f32 %v500, %v710
    %v831 = vadd.f32 %v503, %v711
    %v832 = vadd.f32 %v506, %v712
    %v833 = vadd.f32 %v509, %v713
    %v834 = vadd.f32 %v512, %v714
    %v835 = vadd.f32 %v515, %v715
    %v836 = vadd.f32 %v518, %v716
    %v837 = vadd.f32 %v521, %v717
    %v838 = vadd.f32 %v524, %v718
    %v839 = vadd.f32 %v527, %v719
    %v840 = vadd.f32 %v530, %v720
    %v841 = vadd.f32 %v533, %v721
    %v842 = vadd.f32 %v536, %v722
    %v843 = vadd.f32 %v539, %v723
    %v844 = vadd.f32 %v542, %v724
    %v845 = vadd.f32 %v545, %v725
    %v846 = vadd.f32 %v548, %v726
    %v847 = vadd.f32 %v551, %v727
    %v848 = vadd.f32 %v554, %v728
    %v849 = vadd.f32 %v557, %v729
    %v850 = vadd.f32 %v560, %v730
    %v851 = vadd.f32 %v563, %v731
    %v852 = vadd.f32 %v566, %v732
    %v853 = vadd.f32 %v569, %v733
    %v854 = vadd.f32 %v572, %v734
    %v855 = vadd.f32 %v575, %v735
    %v856 = vadd.f32 %v578, %v736
    %v857 = vadd.f32 %v581, %v737
    %v858 = vadd.f32 %v584, %v738
    %v859 = vadd.f32 %v587, %v739
    %v860 = vadd.f32 %v590, %v740
    %v861 = vadd.f32 %v593, %v741
    %v862 = vadd.f32 %v596, %v742
    %v863 = vadd.f32 %v599, %v743
    %v864 = vadd.f32 %v602, %v744
    %v865 = vadd.f32 %v605, %v745
    %v866 = vadd.f32 %v608, %v746
    %v867 = vadd.f32 %v611, %v747
    %v868 = vadd.f32 %v614, %v748
    %v869 = vadd.f32 %v617, %v749
    %v870 = vadd.f32 %v620, %v750
    %v871 = vadd.f32 %v623, %v751
    %v872 = vadd.f32 %v626, %v752
    %v873 = vadd.f32 %v629, %v753
    %v874 = vadd.f32 %v632, %v754
    %v875 = vadd.f32 %v635, %v755
    %v876 = vxor.u32 %v756, 2147483648
    %v877 = vxor.u32 %v757, 2147483648
    %v878 = vxor.u32 %v758, 2147483648
    %v879 = vxor.u32 %v759, 2147483648
    %v880 = vxor.u32 %v760, 2147483648
    %v881 = vxor.u32 %v761, 2147483648
    %v882 = vxor.u32 %v762, 2147483648
    %v883 = vxor.u32 %v763, 2147483648
    %v884 = vxor.u32 %v764, 2147483648
    %v885 = vxor.u32 %v765, 2147483648
    %v886 = vxor.u32 %v766, 2147483648
    %v887 = vxor.u32 %v767, 2147483648
    %v888 = vxor.u32 %v768, 2147483648
    %v889 = vxor.u32 %v769, 2147483648
    %v890 = vxor.u32 %v770, 2147483648
    %v891 = vxor.u32 %v771, 2147483648
    %v892 = vxor.u32 %v772, 2147483648
    %v893 = vxor.u32 %v773, 2147483648
    %v894 = vxor.u32 %v774, 2147483648
    %v895 = vxor.u32 %v775, 2147483648
    %v896 = vxor.u32 %v776, 2147483648
    %v897 = vxor.u32 %v777, 2147483648
    %v898 = vxor.u32 %v778, 2147483648
    %v899 = vxor.u32 %v779, 2147483648
    %v900 = vxor.u32 %v780, 2147483648
    %v901 = vxor.u32 %v781, 2147483648
    %v902 = vxor.u32 %v782, 2147483648
    %v903 = vxor.u32 %v783, 2147483648
    %v904 = vxor.u32 %v784, 2147483648
    %v905 = vxor.u32 %v785, 2147483648
    %v906 = vxor.u32 %v786, 2147483648
    %v907 = vxor.u32 %v787, 2147483648
    %v908 = vxor.u32 %v788, 2147483648
    %v909 = vxor.u32 %v789, 2147483648
    %v910 = vxor.u32 %v790, 2147483648
    %v911 = vxor.u32 %v791, 2147483648
    %v912 = vxor.u32 %v792, 2147483648
    %v913 = vxor.u32 %v793, 2147483648
    %v914 = vxor.u32 %v794, 2147483648
    %v915 = vxor.u32 %v795, 2147483648
    %v916 = vxor.u32 %v796, 2147483648
    %v917 = vxor.u32 %v797, 2147483648
    %v918 = vxor.u32 %v798, 2147483648
    %v919 = vxor.u32 %v799, 2147483648
    %v920 = vxor.u32 %v800, 2147483648
    %v921 = vxor.u32 %v801, 2147483648
    %v922 = vxor.u32 %v802, 2147483648
    %v923 = vxor.u32 %v803, 2147483648
    %v924 = vxor.u32 %v804, 2147483648
    %v925 = vxor.u32 %v805, 2147483648
    %v926 = vxor.u32 %v806, 2147483648
    %v927 = vxor.u32 %v807, 2147483648
    %v928 = vxor.u32 %v808, 2147483648
    %v929 = vxor.u32 %v809, 2147483648
    %v930 = vxor.u32 %v810, 2147483648
    %v931 = vxor.u32 %v811, 2147483648
    %v932 = vxor.u32 %v812, 2147483648
    %v933 = vxor.u32 %v813, 2147483648
    %v934 = vxor.u32 %v814, 2147483648
    %v935 = vxor.u32 %v815, 2147483648
    %v936 = vxor.u32 %v816, 2147483648
    %v937 = vxor.u32 %v817, 2147483648
    %v938 = vxor.u32 %v818, 2147483648
    %v939 = vxor.u32 %v819, 2147483648
    %v940 = vxor.u32 %v820, 2147483648
    %v941 = vxor.u32 %v821, 2147483648
    %v942 = vxor.u32 %v822, 2147483648
    %v943 = vxor.u32 %v823, 2147483648
    %v944 = vxor.u32 %v824, 2147483648
    %v945 = vxor.u32 %v825, 2147483648
    %v946 = vxor.u32 %v826, 2147483648
    %v947 = vxor.u32 %v827, 2147483648
    %v948 = vxor.u32 %v828, 2147483648
    %v949 = vxor.u32 %v829, 2147483648
    %v950 = vxor.u32 %v830, 2147483648
    %v951 = vxor.u32 %v831, 2147483648
    %v952 = vxor.u32 %v832, 2147483648
    %v953 = vxor.u32 %v833, 2147483648
    %v954 = vxor.u32 %v834, 2147483648
    %v955 = vxor.u32 %v835, 2147483648
    %v956 = vxor.u32 %v836, 2147483648
    %v957 = vxor.u32 %v837, 2147483648
    %v958 = vxor.u32 %v838, 2147483648
    %v959 = vxor.u32 %v839, 2147483648
    %v960 = vxor.u32 %v840, 2147483648
    %v961 = vxor.u32 %v841, 2147483648
    %v962 = vxor.u32 %v842, 2147483648
    %v963 = vxor.u32 %v843, 2147483648
    %v964 = vxor.u32 %v844, 2147483648
    %v965 = vxor.u32 %v845, 2147483648
    %v966 = vxor.u32 %v846, 2147483648
    %v967 = vxor.u32 %v847, 2147483648
    %v968 = vxor.u32 %v848, 2147483648
    %v969 = vxor.u32 %v849, 2147483648
    %v970 = vxor.u32 %v850, 2147483648
    %v971 = vxor.u32 %v851, 2147483648
    %v972 = vxor.u32 %v852, 2147483648
    %v973 = vxor.u32 %v853, 2147483648
    %v974 = vxor.u32 %v854, 2147483648
    %v975 = vxor.u32 %v855, 2147483648
    %v976 = vxor.u32 %v856, 2147483648
    %v977 = vxor.u32 %v857, 2147483648
    %v978 = vxor.u32 %v858, 2147483648
    %v979 = vxor.u32 %v859, 2147483648
    %v980 = vxor.u32 %v860, 2147483648
    %v981 = vxor.u32 %v861, 2147483648
    %v982 = vxor.u32 %v862, 2147483648
    %v983 = vxor.u32 %v863, 2147483648
    %v984 = vxor.u32 %v864, 2147483648
    %v985 = vxor.u32 %v865, 2147483648
    %v986 = vxor.u32 %v866, 2147483648
    %v987 = vxor.u32 %v867, 2147483648
    %v988 = vxor.u32 %v868, 2147483648
    %v989 = vxor.u32 %v869, 2147483648
    %v990 = vxor.u32 %v870, 2147483648
    %v991 = vxor.u32 %v871, 2147483648
    %v992 = vxor.u32 %v872, 2147483648
    %v993 = vxor.u32 %v873, 2147483648
    %v994 = vxor.u32 %v874, 2147483648
    %v995 = vxor.u32 %v875, 2147483648
    %v996 = vmul.f32 %v876, 1.442695
    %v997 = vpow.pop %v996
    %v998 = vmul.f32 %v877, 1.442695
    %v999 = vpow.pop %v998
    %v1000 = vmul.f32 %v878, 1.442695
    %v1001 = vpow.pop %v1000
    %v1002 = vmul.f32 %v879, 1.442695
    %v1003 = vpow.pop %v1002
    %v1004 = vmul.f32 %v880, 1.442695
    %v1005 = vpow.pop %v1004
    %v1006 = vmul.f32 %v881, 1.442695
    %v1007 = vpow.pop %v1006
    %v1008 = vmul.f32 %v882, 1.442695
    %v1009 = vpow.pop %v1008
    %v1010 = vmul.f32 %v883, 1.442695
    %v1011 = vpow.pop %v1010
    %v1012 = vmul.f32 %v884, 1.442695
    %v1013 = vpow.pop %v1012
    %v1014 = vmul.f32 %v885, 1.442695
    %v1015 = vpow.pop %v1014
    %v1016 = vmul.f32 %v886, 1.442695
    %v1017 = vpow.pop %v1016
    %v1018 = vmul.f32 %v887, 1.442695
    %v1019 = vpow.pop %v1018
    %v1020 = vmul.f32 %v888, 1.442695
    %v1021 = vpow.pop %v1020
    %v1022 = vmul.f32 %v889, 1.442695
    %v1023 = vpow.pop %v1022
    %v1024 = vmul.f32 %v890, 1.442695
    %v1025 = vpow.pop %v1024
    %v1026 = vmul.f32 %v891, 1.442695
    %v1027 = vpow.pop %v1026
    %v1028 = vmul.f32 %v892, 1.442695
    %v1029 = vpow.pop %v1028
    %v1030 = vmul.f32 %v893, 1.442695
    %v1031 = vpow.pop %v1030
    %v1032 = vmul.f32 %v894, 1.442695
    %v1033 = vpow.pop %v1032
    %v1034 = vmul.f32 %v895, 1.442695
    %v1035 = vpow.pop %v1034
    %v1036 = vmul.f32 %v896, 1.442695
    %v1037 = vpow.pop %v1036
    %v1038 = vmul.f32 %v897, 1.442695
    %v1039 = vpow.pop %v1038
    %v1040 = vmul.f32 %v898, 1.442695
    %v1041 = vpow.pop %v1040
    %v1042 = vmul.f32 %v899, 1.442695
    %v1043 = vpow.pop %v1042
    %v1044 = vmul.f32 %v900, 1.442695
    %v1045 = vpow.pop %v1044
    %v1046 = vmul.f32 %v901, 1.442695
    %v1047 = vpow.pop %v1046
    %v1048 = vmul.f32 %v902, 1.442695
    %v1049 = vpow.pop %v1048
    %v1050 = vmul.f32 %v903, 1.442695
    %v1051 = vpow.pop %v1050
    %v1052 = vmul.f32 %v904, 1.442695
    %v1053 = vpow.pop %v1052
    %v1054 = vmul.f32 %v905, 1.442695
    %v1055 = vpow.pop %v1054
    %v1056 = vmul.f32 %v906, 1.442695
    %v1057 = vpow.pop %v1056
    %v1058 = vmul.f32 %v907, 1.442695
    %v1059 = vpow.pop %v1058
    %v1060 = vmul.f32 %v908, 1.442695
    %v1061 = vpow.pop %v1060
    %v1062 = vmul.f32 %v909, 1.442695
    %v1063 = vpow.pop %v1062
    %v1064 = vmul.f32 %v910, 1.442695
    %v1065 = vpow.pop %v1064
    %v1066 = vmul.f32 %v911, 1.442695
    %v1067 = vpow.pop %v1066
    %v1068 = vmul.f32 %v912, 1.442695
    %v1069 = vpow.pop %v1068
    %v1070 = vmul.f32 %v913, 1.442695
    %v1071 = vpow.pop %v1070
    %v1072 = vmul.f32 %v914, 1.442695
    %v1073 = vpow.pop %v1072
    %v1074 = vmul.f32 %v915, 1.442695
    %v1075 = vpow.pop %v1074
    %v1076 = vmul.f32 %v916, 1.442695
    %v1077 = vpow.pop %v1076
    %v1078 = vmul.f32 %v917, 1.442695
    %v1079 = vpow.pop %v1078
    %v1080 = vmul.f32 %v918, 1.442695
    %v1081 = vpow.pop %v1080
    %v1082 = vmul.f32 %v919, 1.442695
    %v1083 = vpow.pop %v1082
    %v1084 = vmul.f32 %v920, 1.442695
    %v1085 = vpow.pop %v1084
    %v1086 = vmul.f32 %v921, 1.442695
    %v1087 = vpow.pop %v1086
    %v1088 = vmul.f32 %v922, 1.442695
    %v1089 = vpow.pop %v1088
    %v1090 = vmul.f32 %v923, 1.442695
    %v1091 = vpow.pop %v1090
    %v1092 = vmul.f32 %v924, 1.442695
    %v1093 = vpow.pop %v1092
    %v1094 = vmul.f32 %v925, 1.442695
    %v1095 = vpow.pop %v1094
    %v1096 = vmul.f32 %v926, 1.442695
    %v1097 = vpow.pop %v1096
    %v1098 = vmul.f32 %v927, 1.442695
    %v1099 = vpow.pop %v1098
    %v1100 = vmul.f32 %v928, 1.442695
    %v1101 = vpow.pop %v1100
    %v1102 = vmul.f32 %v929, 1.442695
    %v1103 = vpow.pop %v1102
    %v1104 = vmul.f32 %v930, 1.442695
    %v1105 = vpow.pop %v1104
    %v1106 = vmul.f32 %v931, 1.442695
    %v1107 = vpow.pop %v1106
    %v1108 = vmul.f32 %v932, 1.442695
    %v1109 = vpow.pop %v1108
    %v1110 = vmul.f32 %v933, 1.442695
    %v1111 = vpow.pop %v1110
    %v1112 = vmul.f32 %v934, 1.442695
    %v1113 = vpow.pop %v1112
    %v1114 = vmul.f32 %v935, 1.442695
    %v1115 = vpow.pop %v1114
    %v1116 = vmul.f32 %v936, 1.442695
    %v1117 = vpow.pop %v1116
    %v1118 = vmul.f32 %v937, 1.442695
    %v1119 = vpow.pop %v1118
    %v1120 = vmul.f32 %v938, 1.442695
    %v1121 = vpow.pop %v1120
    %v1122 = vmul.f32 %v939, 1.442695
    %v1123 = vpow.pop %v1122
    %v1124 = vmul.f32 %v940, 1.442695
    %v1125 = vpow.pop %v1124
    %v1126 = vmul.f32 %v941, 1.442695
    %v1127 = vpow.pop %v1126
    %v1128 = vmul.f32 %v942, 1.442695
    %v1129 = vpow.pop %v1128
    %v1130 = vmul.f32 %v943, 1.442695
    %v1131 = vpow.pop %v1130
    %v1132 = vmul.f32 %v944, 1.442695
    %v1133 = vpow.pop %v1132
    %v1134 = vmul.f32 %v945, 1.442695
    %v1135 = vpow.pop %v1134
    %v1136 = vmul.f32 %v946, 1.442695
    %v1137 = vpow.pop %v1136
    %v1138 = vmul.f32 %v947, 1.442695
    %v1139 = vpow.pop %v1138
    %v1140 = vmul.f32 %v948, 1.442695
    %v1141 = vpow.pop %v1140
    %v1142 = vmul.f32 %v949, 1.442695
    %v1143 = vpow.pop %v1142
    %v1144 = vmul.f32 %v950, 1.442695
    %v1145 = vpow.pop %v1144
    %v1146 = vmul.f32 %v951, 1.442695
    %v1147 = vpow.pop %v1146
    %v1148 = vmul.f32 %v952, 1.442695
    %v1149 = vpow.pop %v1148
    %v1150 = vmul.f32 %v953, 1.442695
    %v1151 = vpow.pop %v1150
    %v1152 = vmul.f32 %v954, 1.442695
    %v1153 = vpow.pop %v1152
    %v1154 = vmul.f32 %v955, 1.442695
    %v1155 = vpow.pop %v1154
    %v1156 = vmul.f32 %v956, 1.442695
    %v1157 = vpow.pop %v1156
    %v1158 = vmul.f32 %v957, 1.442695
    %v1159 = vpow.pop %v1158
    %v1160 = vmul.f32 %v958, 1.442695
    %v1161 = vpow.pop %v1160
    %v1162 = vmul.f32 %v959, 1.442695
    %v1163 = vpow.pop %v1162
    %v1164 = vmul.f32 %v960, 1.442695
    %v1165 = vpow.pop %v1164
    %v1166 = vmul.f32 %v961, 1.442695
    %v1167 = vpow.pop %v1166
    %v1168 = vmul.f32 %v962, 1.442695
    %v1169 = vpow.pop %v1168
    %v1170 = vmul.f32 %v963, 1.442695
    %v1171 = vpow.pop %v1170
    %v1172 = vmul.f32 %v964, 1.442695
    %v1173 = vpow.pop %v1172
    %v1174 = vmul.f32 %v965, 1.442695
    %v1175 = vpow.pop %v1174
    %v1176 = vmul.f32 %v966, 1.442695
    %v1177 = vpow.pop %v1176
    %v1178 = vmul.f32 %v967, 1.442695
    %v1179 = vpow.pop %v1178
    %v1180 = vmul.f32 %v968, 1.442695
    %v1181 = vpow.pop %v1180
    %v1182 = vmul.f32 %v969, 1.442695
    %v1183 = vpow.pop %v1182
    %v1184 = vmul.f32 %v970, 1.442695
    %v1185 = vpow.pop %v1184
    %v1186 = vmul.f32 %v971, 1.442695
    %v1187 = vpow.pop %v1186
    %v1188 = vmul.f32 %v972, 1.442695
    %v1189 = vpow.pop %v1188
    %v1190 = vmul.f32 %v973, 1.442695
    %v1191 = vpow.pop %v1190
    %v1192 = vmul.f32 %v974, 1.442695
    %v1193 = vpow.pop %v1192
    %v1194 = vmul.f32 %v975, 1.442695
    %v1195 = vpow.pop %v1194
    %v1196 = vmul.f32 %v976, 1.442695
    %v1197 = vpow.pop %v1196
    %v1198 = vmul.f32 %v977, 1.442695
    %v1199 = vpow.pop %v1198
    %v1200 = vmul.f32 %v978, 1.442695
    %v1201 = vpow.pop %v1200
    %v1202 = vmul.f32 %v979, 1.442695
    %v1203 = vpow.pop %v1202
    %v1204 = vmul.f32 %v980, 1.442695
    %v1205 = vpow.pop %v1204
    %v1206 = vmul.f32 %v981, 1.442695
    %v1207 = vpow.pop %v1206
    %v1208 = vmul.f32 %v982, 1.442695
    %v1209 = vpow.pop %v1208
    %v1210 = vmul.f32 %v983, 1.442695
    %v1211 = vpow.pop %v1210
    %v1212 = vmul.f32 %v984, 1.442695
    %v1213 = vpow.pop %v1212
    %v1214 = vmul.f32 %v985, 1.442695
    %v1215 = vpow.pop %v1214
    %v1216 = vmul.f32 %v986, 1.442695
    %v1217 = vpow.pop %v1216
    %v1218 = vmul.f32 %v987, 1.442695
    %v1219 = vpow.pop %v1218
    %v1220 = vmul.f32 %v988, 1.442695
    %v1221 = vpow.pop %v1220
    %v1222 = vmul.f32 %v989, 1.442695
    %v1223 = vpow.pop %v1222
    %v1224 = vmul.f32 %v990, 1.442695
    %v1225 = vpow.pop %v1224
    %v1226 = vmul.f32 %v991, 1.442695
    %v1227 = vpow.pop %v1226
    %v1228 = vmul.f32 %v992, 1.442695
    %v1229 = vpow.pop %v1228
    %v1230 = vmul.f32 %v993, 1.442695
    %v1231 = vpow.pop %v1230
    %v1232 = vmul.f32 %v994, 1.442695
    %v1233 = vpow.pop %v1232
    %v1234 = vmul.f32 %v995, 1.442695
    %v1235 = vpow.pop %v1234
    %v1236 = vadd.f32 %v997, 1.0
    %v1237 = vadd.f32 %v999, 1.0
    %v1238 = vadd.f32 %v1001, 1.0
    %v1239 = vadd.f32 %v1003, 1.0
    %v1240 = vadd.f32 %v1005, 1.0
    %v1241 = vadd.f32 %v1007, 1.0
    %v1242 = vadd.f32 %v1009, 1.0
    %v1243 = vadd.f32 %v1011, 1.0
    %v1244 = vadd.f32 %v1013, 1.0
    %v1245 = vadd.f32 %v1015, 1.0
    %v1246 = vadd.f32 %v1017, 1.0
    %v1247 = vadd.f32 %v1019, 1.0
    %v1248 = vadd.f32 %v1021, 1.0
    %v1249 = vadd.f32 %v1023, 1.0
    %v1250 = vadd.f32 %v1025, 1.0
    %v1251 = vadd.f32 %v1027, 1.0
    %v1252 = vadd.f32 %v1029, 1.0
    %v1253 = vadd.f32 %v1031, 1.0
    %v1254 = vadd.f32 %v1033, 1.0
    %v1255 = vadd.f32 %v1035, 1.0
    %v1256 = vadd.f32 %v1037, 1.0
    %v1257 = vadd.f32 %v1039, 1.0
    %v1258 = vadd.f32 %v1041, 1.0
    %v1259 = vadd.f32 %v1043, 1.0
    %v1260 = vadd.f32 %v1045, 1.0
    %v1261 = vadd.f32 %v1047, 1.0
    %v1262 = vadd.f32 %v1049, 1.0
    %v1263 = vadd.f32 %v1051, 1.0
    %v1264 = vadd.f32 %v1053, 1.0
    %v1265 = vadd.f32 %v1055, 1.0
    %v1266 = vadd.f32 %v1057, 1.0
    %v1267 = vadd.f32 %v1059, 1.0
    %v1268 = vadd.f32 %v1061, 1.0
    %v1269 = vadd.f32 %v1063, 1.0
    %v1270 = vadd.f32 %v1065, 1.0
    %v1271 = vadd.f32 %v1067, 1.0
    %v1272 = vadd.f32 %v1069, 1.0
    %v1273 = vadd.f32 %v1071, 1.0
    %v1274 = vadd.f32 %v1073, 1.0
    %v1275 = vadd.f32 %v1075, 1.0
    %v1276 = vadd.f32 %v1077, 1.0
    %v1277 = vadd.f32 %v1079, 1.0
    %v1278 = vadd.f32 %v1081, 1.0
    %v1279 = vadd.f32 %v1083, 1.0
    %v1280 = vadd.f32 %v1085, 1.0
    %v1281 = vadd.f32 %v1087, 1.0
    %v1282 = vadd.f32 %v1089, 1.0
    %v1283 = vadd.f32 %v1091, 1.0
    %v1284 = vadd.f32 %v1093, 1.0
    %v1285 = vadd.f32 %v1095, 1.0
    %v1286 = vadd.f32 %v1097, 1.0
    %v1287 = vadd.f32 %v1099, 1.0
    %v1288 = vadd.f32 %v1101, 1.0
    %v1289 = vadd.f32 %v1103, 1.0
    %v1290 = vadd.f32 %v1105, 1.0
    %v1291 = vadd.f32 %v1107, 1.0
    %v1292 = vadd.f32 %v1109, 1.0
    %v1293 = vadd.f32 %v1111, 1.0
    %v1294 = vadd.f32 %v1113, 1.0
    %v1295 = vadd.f32 %v1115, 1.0
    %v1296 = vadd.f32 %v1117, 1.0
    %v1297 = vadd.f32 %v1119, 1.0
    %v1298 = vadd.f32 %v1121, 1.0
    %v1299 = vadd.f32 %v1123, 1.0
    %v1300 = vadd.f32 %v1125, 1.0
    %v1301 = vadd.f32 %v1127, 1.0
    %v1302 = vadd.f32 %v1129, 1.0
    %v1303 = vadd.f32 %v1131, 1.0
    %v1304 = vadd.f32 %v1133, 1.0
    %v1305 = vadd.f32 %v1135, 1.0
    %v1306 = vadd.f32 %v1137, 1.0
    %v1307 = vadd.f32 %v1139, 1.0
    %v1308 = vadd.f32 %v1141, 1.0
    %v1309 = vadd.f32 %v1143, 1.0
    %v1310 = vadd.f32 %v1145, 1.0
    %v1311 = vadd.f32 %v1147, 1.0
    %v1312 = vadd.f32 %v1149, 1.0
    %v1313 = vadd.f32 %v1151, 1.0
    %v1314 = vadd.f32 %v1153, 1.0
    %v1315 = vadd.f32 %v1155, 1.0
    %v1316 = vadd.f32 %v1157, 1.0
    %v1317 = vadd.f32 %v1159, 1.0
    %v1318 = vadd.f32 %v1161, 1.0
    %v1319 = vadd.f32 %v1163, 1.0
    %v1320 = vadd.f32 %v1165, 1.0
    %v1321 = vadd.f32 %v1167, 1.0
    %v1322 = vadd.f32 %v1169, 1.0
    %v1323 = vadd.f32 %v1171, 1.0
    %v1324 = vadd.f32 %v1173, 1.0
    %v1325 = vadd.f32 %v1175, 1.0
    %v1326 = vadd.f32 %v1177, 1.0
    %v1327 = vadd.f32 %v1179, 1.0
    %v1328 = vadd.f32 %v1181, 1.0
    %v1329 = vadd.f32 %v1183, 1.0
    %v1330 = vadd.f32 %v1185, 1.0
    %v1331 = vadd.f32 %v1187, 1.0
    %v1332 = vadd.f32 %v1189, 1.0
    %v1333 = vadd.f32 %v1191, 1.0
    %v1334 = vadd.f32 %v1193, 1.0
    %v1335 = vadd.f32 %v1195, 1.0
    %v1336 = vadd.f32 %v1197, 1.0
    %v1337 = vadd.f32 %v1199, 1.0
    %v1338 = vadd.f32 %v1201, 1.0
    %v1339 = vadd.f32 %v1203, 1.0
    %v1340 = vadd.f32 %v1205, 1.0
    %v1341 = vadd.f32 %v1207, 1.0
    %v1342 = vadd.f32 %v1209, 1.0
    %v1343 = vadd.f32 %v1211, 1.0
    %v1344 = vadd.f32 %v1213, 1.0
    %v1345 = vadd.f32 %v1215, 1.0
    %v1346 = vadd.f32 %v1217, 1.0
    %v1347 = vadd.f32 %v1219, 1.0
    %v1348 = vadd.f32 %v1221, 1.0
    %v1349 = vadd.f32 %v1223, 1.0
    %v1350 = vadd.f32 %v1225, 1.0
    %v1351 = vadd.f32 %v1227, 1.0
    %v1352 = vadd.f32 %v1229, 1.0
    %v1353 = vadd.f32 %v1231, 1.0
    %v1354 = vadd.f32 %v1233, 1.0
    %v1355 = vadd.f32 %v1235, 1.0
    %v1356 = vrcp.pop %v1236
    %v1357 = vmul.f32 1.0, %v1356
    %v1358 = vrcp.pop %v1237
    %v1359 = vmul.f32 1.0, %v1358
    %v1360 = vrcp.pop %v1238
    %v1361 = vmul.f32 1.0, %v1360
    %v1362 = vrcp.pop %v1239
    %v1363 = vmul.f32 1.0, %v1362
    %v1364 = vrcp.pop %v1240
    %v1365 = vmul.f32 1.0, %v1364
    %v1366 = vrcp.pop %v1241
    %v1367 = vmul.f32 1.0, %v1366
    %v1368 = vrcp.pop %v1242
    %v1369 = vmul.f32 1.0, %v1368
    %v1370 = vrcp.pop %v1243
    %v1371 = vmul.f32 1.0, %v1370
    %v1372 = vrcp.pop %v1244
    %v1373 = vmul.f32 1.0, %v1372
    %v1374 = vrcp.pop %v1245
    %v1375 = vmul.f32 1.0, %v1374
    %v1376 = vrcp.pop %v1246
    %v1377 = vmul.f32 1.0, %v1376
    %v1378 = vrcp.pop %v1247
    %v1379 = vmul.f32 1.0, %v1378
    %v1380 = vrcp.pop %v1248
    %v1381 = vmul.f32 1.0, %v1380
    %v1382 = vrcp.pop %v1249
    %v1383 = vmul.f32 1.0, %v1382
    %v1384 = vrcp.pop %v1250
    %v1385 = vmul.f32 1.0, %v1384
    %v1386 = vrcp.pop %v1251
    %v1387 = vmul.f32 1.0, %v1386
    %v1388 = vrcp.pop %v1252
    %v1389 = vmul.f32 1.0, %v1388
    %v1390 = vrcp.pop %v1253
    %v1391 = vmul.f32 1.0, %v1390
    %v1392 = vrcp.pop %v1254
    %v1393 = vmul.f32 1.0, %v1392
    %v1394 = vrcp.pop %v1255
    %v1395 = vmul.f32 1.0, %v1394
    %v1396 = vrcp.pop %v1256
    %v1397 = vmul.f32 1.0, %v1396
    %v1398 = vrcp.pop %v1257
    %v1399 = vmul.f32 1.0, %v1398
    %v1400 = vrcp.pop %v1258
    %v1401 = vmul.f32 1.0, %v1400
    %v1402 = vrcp.pop %v1259
    %v1403 = vmul.f32 1.0, %v1402
    %v1404 = vrcp.pop %v1260
    %v1405 = vmul.f32 1.0, %v1404
    %v1406 = vrcp.pop %v1261
    %v1407 = vmul.f32 1.0, %v1406
    %v1408 = vrcp.pop %v1262
    %v1409 = vmul.f32 1.0, %v1408
    %v1410 = vrcp.pop %v1263
    %v1411 = vmul.f32 1.0, %v1410
    %v1412 = vrcp.pop %v1264
    %v1413 = vmul.f32 1.0, %v1412
    %v1414 = vrcp.pop %v1265
    %v1415 = vmul.f32 1.0, %v1414
    %v1416 = vrcp.pop %v1266
    %v1417 = vmul.f32 1.0, %v1416
    %v1418 = vrcp.pop %v1267
    %v1419 = vmul.f32 1.0, %v1418
    %v1420 = vrcp.pop %v1268
    %v1421 = vmul.f32 1.0, %v1420
    %v1422 = vrcp.pop %v1269
    %v1423 = vmul.f32 1.0, %v1422
    %v1424 = vrcp.pop %v1270
    %v1425 = vmul.f32 1.0, %v1424
    %v1426 = vrcp.pop %v1271
    %v1427 = vmul.f32 1.0, %v1426
    %v1428 = vrcp.pop %v1272
    %v1429 = vmul.f32 1.0, %v1428
    %v1430 = vrcp.pop %v1273
    %v1431 = vmul.f32 1.0, %v1430
    %v1432 = vrcp.pop %v1274
    %v1433 = vmul.f32 1.0, %v1432
    %v1434 = vrcp.pop %v1275
    %v1435 = vmul.f32 1.0, %v1434
    %v1436 = vrcp.pop %v1276
    %v1437 = vmul.f32 1.0, %v1436
    %v1438 = vrcp.pop %v1277
    %v1439 = vmul.f32 1.0, %v1438
    %v1440 = vrcp.pop %v1278
    %v1441 = vmul.f32 1.0, %v1440
    %v1442 = vrcp.pop %v1279
    %v1443 = vmul.f32 1.0, %v1442
    %v1444 = vrcp.pop %v1280
    %v1445 = vmul.f32 1.0, %v1444
    %v1446 = vrcp.pop %v1281
    %v1447 = vmul.f32 1.0, %v1446
    %v1448 = vrcp.pop %v1282
    %v1449 = vmul.f32 1.0, %v1448
    %v1450 = vrcp.pop %v1283
    %v1451 = vmul.f32 1.0, %v1450
    %v1452 = vrcp.pop %v1284
    %v1453 = vmul.f32 1.0, %v1452
    %v1454 = vrcp.pop %v1285
    %v1455 = vmul.f32 1.0, %v1454
    %v1456 = vrcp.pop %v1286
    %v1457 = vmul.f32 1.0, %v1456
    %v1458 = vrcp.pop %v1287
    %v1459 = vmul.f32 1.0, %v1458
    %v1460 = vrcp.pop %v1288
    %v1461 = vmul.f32 1.0, %v1460
    %v1462 = vrcp.pop %v1289
    %v1463 = vmul.f32 1.0, %v1462
    %v1464 = vrcp.pop %v1290
    %v1465 = vmul.f32 1.0, %v1464
    %v1466 = vrcp.pop %v1291
    %v1467 = vmul.f32 1.0, %v1466
    %v1468 = vrcp.pop %v1292
    %v1469 = vmul.f32 1.0, %v1468
    %v1470 = vrcp.pop %v1293
    %v1471 = vmul.f32 1.0, %v1470
    %v1472 = vrcp.pop %v1294
    %v1473 = vmul.f32 1.0, %v1472
    %v1474 = vrcp.pop %v1295
    %v1475 = vmul.f32 1.0, %v1474
    %v1476 = vrcp.pop %v1296
    %v1477 = vmul.f32 1.0, %v1476
    %v1478 = vrcp.pop %v1297
    %v1479 = vmul.f32 1.0, %v1478
    %v1480 = vrcp.pop %v1298
    %v1481 = vmul.f32 1.0, %v1480
    %v1482 = vrcp.pop %v1299
    %v1483 = vmul.f32 1.0, %v1482
    %v1484 = vrcp.pop %v1300
    %v1485 = vmul.f32 1.0, %v1484
    %v1486 = vrcp.pop %v1301
    %v1487 = vmul.f32 1.0, %v1486
    %v1488 = vrcp.pop %v1302
    %v1489 = vmul.f32 1.0, %v1488
    %v1490 = vrcp.pop %v1303
    %v1491 = vmul.f32 1.0, %v1490
    %v1492 = vrcp.pop %v1304
    %v1493 = vmul.f32 1.0, %v1492
    %v1494 = vrcp.pop %v1305
    %v1495 = vmul.f32 1.0, %v1494
    %v1496 = vrcp.pop %v1306
    %v1497 = vmul.f32 1.0, %v1496
    %v1498 = vrcp.pop %v1307
    %v1499 = vmul.f32 1.0, %v1498
    %v1500 = vrcp.pop %v1308
    %v1501 = vmul.f32 1.0, %v1500
    %v1502 = vrcp.pop %v1309
    %v1503 = vmul.f32 1.0, %v1502
    %v1504 = vrcp.pop %v1310
    %v1505 = vmul.f32 1.0, %v1504
    %v1506 = vrcp.pop %v1311
    %v1507 = vmul.f32 1.0, %v1506
    %v1508 = vrcp.pop %v1312
    %v1509 = vmul.f32 1.0, %v1508
    %v1510 = vrcp.pop %v1313
    %v1511 = vmul.f32 1.0, %v1510
    %v1512 = vrcp.pop %v1314
    %v1513 = vmul.f32 1.0, %v1512
    %v1514 = vrcp.pop %v1315
    %v1515 = vmul.f32 1.0, %v1514
    %v1516 = vrcp.pop %v1316
    %v1517 = vmul.f32 1.0, %v1516
    %v1518 = vrcp.pop %v1317
    %v1519 = vmul.f32 1.0, %v1518
    %v1520 = vrcp.pop %v1318
    %v1521 = vmul.f32 1.0, %v1520
    %v1522 = vrcp.pop %v1319
    %v1523 = vmul.f32 1.0, %v1522
    %v1524 = vrcp.pop %v1320
    %v1525 = vmul.f32 1.0, %v1524
    %v1526 = vrcp.pop %v1321
    %v1527 = vmul.f32 1.0, %v1526
    %v1528 = vrcp.pop %v1322
    %v1529 = vmul.f32 1.0, %v1528
    %v1530 = vrcp.pop %v1323
    %v1531 = vmul.f32 1.0, %v1530
    %v1532 = vrcp.pop %v1324
    %v1533 = vmul.f32 1.0, %v1532
    %v1534 = vrcp.pop %v1325
    %v1535 = vmul.f32 1.0, %v1534
    %v1536 = vrcp.pop %v1326
    %v1537 = vmul.f32 1.0, %v1536
    %v1538 = vrcp.pop %v1327
    %v1539 = vmul.f32 1.0, %v1538
    %v1540 = vrcp.pop %v1328
    %v1541 = vmul.f32 1.0, %v1540
    %v1542 = vrcp.pop %v1329
    %v1543 = vmul.f32 1.0, %v1542
    %v1544 = vrcp.pop %v1330
    %v1545 = vmul.f32 1.0, %v1544
    %v1546 = vrcp.pop %v1331
    %v1547 = vmul.f32 1.0, %v1546
    %v1548 = vrcp.pop %v1332
    %v1549 = vmul.f32 1.0, %v1548
    %v1550 = vrcp.pop %v1333
    %v1551 = vmul.f32 1.0, %v1550
    %v1552 = vrcp.pop %v1334
    %v1553 = vmul.f32 1.0, %v1552
    %v1554 = vrcp.pop %v1335
    %v1555 = vmul.f32 1.0, %v1554
    %v1556 = vrcp.pop %v1336
    %v1557 = vmul.f32 1.0, %v1556
    %v1558 = vrcp.pop %v1337
    %v1559 = vmul.f32 1.0, %v1558
    %v1560 = vrcp.pop %v1338
    %v1561 = vmul.f32 1.0, %v1560
    %v1562 = vrcp.pop %v1339
    %v1563 = vmul.f32 1.0, %v1562
    %v1564 = vrcp.pop %v1340
    %v1565 = vmul.f32 1.0, %v1564
    %v1566 = vrcp.pop %v1341
    %v1567 = vmul.f32 1.0, %v1566
    %v1568 = vrcp.pop %v1342
    %v1569 = vmul.f32 1.0, %v1568
    %v1570 = vrcp.pop %v1343
    %v1571 = vmul.f32 1.0, %v1570
    %v1572 = vrcp.pop %v1344
    %v1573 = vmul.f32 1.0, %v1572
    %v1574 = vrcp.pop %v1345
    %v1575 = vmul.f32 1.0, %v1574
    %v1576 = vrcp.pop %v1346
    %v1577 = vmul.f32 1.0, %v1576
    %v1578 = vrcp.pop %v1347
    %v1579 = vmul.f32 1.0, %v1578
    %v1580 = vrcp.pop %v1348
    %v1581 = vmul.f32 1.0, %v1580
    %v1582 = vrcp.pop %v1349
    %v1583 = vmul.f32 1.0, %v1582
    %v1584 = vrcp.pop %v1350
    %v1585 = vmul.f32 1.0, %v1584
    %v1586 = vrcp.pop %v1351
    %v1587 = vmul.f32 1.0, %v1586
    %v1588 = vrcp.pop %v1352
    %v1589 = vmul.f32 1.0, %v1588
    %v1590 = vrcp.pop %v1353
    %v1591 = vmul.f32 1.0, %v1590
    %v1592 = vrcp.pop %v1354
    %v1593 = vmul.f32 1.0, %v1592
    %v1594 = vrcp.pop %v1355
    %v1595 = vmul.f32 1.0, %v1594
    %v1596 = vld [vmem:[%s1] sm:$0xff]
    %v1597 = vld [vmem:[%s1 + $0x8] sm:$0xff]
    %v1598 = vld [vmem:[%s1 + $0x10] sm:$0xff]
    %v1599 = vld [vmem:[%s1 + $0x18] sm:$0xff]
    %v1600 = vld [vmem:[%s1 + $0x20] sm:$0xff]
    %v1601 = vld [vmem:[%s1 + $0x28] sm:$0xff]
    %v1602 = vld [vmem:[%s1 + $0x30] sm:$0xff]
    %v1603 = vld [vmem:[%s1 + $0x38] sm:$0xff]
    %v1604 = vld [vmem:[%s1 + $0x40] sm:$0xff]
    %v1605 = vld [vmem:[%s1 + $0x48] sm:$0xff]
    %v1606 = vld [vmem:[%s1 + $0x50] sm:$0xff]
    %v1607 = vld [vmem:[%s1 + $0x58] sm:$0xff]
    %v1608 = vld [vmem:[%s1 + $0x60] sm:$0xff]
    %v1609 = vld [vmem:[%s1 + $0x68] sm:$0xff]
    %v1610 = vld [vmem:[%s1 + $0x70] sm:$0xff]
    %v1611 = vld [vmem:[%s1 + $0x78] sm:$0xff]
    %v1612 = vld [vmem:[%s1 + $0x80] sm:$0xff]
    %v1613 = vld [vmem:[%s1 + $0x88] sm:$0xff]
    %v1614 = vld [vmem:[%s1 + $0x90] sm:$0xff]
    %v1615 = vld [vmem:[%s1 + $0x98] sm:$0xff]
    %v1616 = vld [vmem:[%s1 + $0xa0] sm:$0xff]
    %v1617 = vld [vmem:[%s1 + $0xa8] sm:$0xff]
    %v1618 = vld [vmem:[%s1 + $0xb0] sm:$0xff]
    %v1619 = vld [vmem:[%s1 + $0xb8] sm:$0xff]
    %v1620 = vld [vmem:[%s1 + $0xc0] sm:$0xff]
    %v1621 = vld [vmem:[%s1 + $0xc8] sm:$0xff]
    %v1622 = vld [vmem:[%s1 + $0xd0] sm:$0xff]
    %v1623 = vld [vmem:[%s1 + $0xd8] sm:$0xff]
    %v1624 = vld [vmem:[%s1 + $0xe0] sm:$0xff]
    %v1625 = vld [vmem:[%s1 + $0xe8] sm:$0xff]
    %v1626 = vld [vmem:[%s1 + $0xf0] sm:$0xff]
    %v1627 = vld [vmem:[%s1 + $0xf8] sm:$0xff]
    %v1628 = vld [vmem:[%s1 + $0x100] sm:$0xff]
    %v1629 = vld [vmem:[%s1 + $0x108] sm:$0xff]
    %v1630 = vld [vmem:[%s1 + $0x110] sm:$0xff]
    %v1631 = vld [vmem:[%s1 + $0x118] sm:$0xff]
    %v1632 = vld [vmem:[%s1 + $0x120] sm:$0xff]
    %v1633 = vld [vmem:[%s1 + $0x128] sm:$0xff]
    %v1634 = vld [vmem:[%s1 + $0x130] sm:$0xff]
    %v1635 = vld [vmem:[%s1 + $0x138] sm:$0xff]
    %v1636 = vld [vmem:[%s1 + $0x140] sm:$0xff]
    %v1637 = vld [vmem:[%s1 + $0x148] sm:$0xff]
    %v1638 = vld [vmem:[%s1 + $0x150] sm:$0xff]
    %v1639 = vld [vmem:[%s1 + $0x158] sm:$0xff]
    %v1640 = vld [vmem:[%s1 + $0x160] sm:$0xff]
    %v1641 = vld [vmem:[%s1 + $0x168] sm:$0xff]
    %v1642 = vld [vmem:[%s1 + $0x170] sm:$0xff]
    %v1643 = vld [vmem:[%s1 + $0x178] sm:$0xff]
    %v1644 = vld [vmem:[%s1 + $0x180] sm:$0xff]
    %v1645 = vld [vmem:[%s1 + $0x188] sm:$0xff]
    %v1646 = vld [vmem:[%s1 + $0x190] sm:$0xff]
    %v1647 = vld [vmem:[%s1 + $0x198] sm:$0xff]
    %v1648 = vld [vmem:[%s1 + $0x1a0] sm:$0xff]
    %v1649 = vld [vmem:[%s1 + $0x1a8] sm:$0xff]
    %v1650 = vld [vmem:[%s1 + $0x1b0] sm:$0xff]
    %v1651 = vld [vmem:[%s1 + $0x1b8] sm:$0xff]
    %v1652 = vld [vmem:[%s1 + $0x1c0] sm:$0xff]
    %v1653 = vld [vmem:[%s1 + $0x1c8] sm:$0xff]
    %v1654 = vld [vmem:[%s1 + $0x1d0] sm:$0xff]
    %v1655 = vld [vmem:[%s1 + $0x1d8] sm:$0xff]
    %v1656 = vld [vmem:[%s1 + $0x1e0] sm:$0xff]
    %v1657 = vld [vmem:[%s1 + $0x1e8] sm:$0xff]
    %v1658 = vld [vmem:[%s1 + $0x1f0] sm:$0xff]
    %v1659 = vld [vmem:[%s1 + $0x1f8] sm:$0xff]
    %v1660 = vld [vmem:[%s1 + $0x200] sm:$0xff]
    %v1661 = vld [vmem:[%s1 + $0x208] sm:$0xff]
    %v1662 = vld [vmem:[%s1 + $0x210] sm:$0xff]
    %v1663 = vld [vmem:[%s1 + $0x218] sm:$0xff]
    %v1664 = vld [vmem:[%s1 + $0x220] sm:$0xff]
    %v1665 = vld [vmem:[%s1 + $0x228] sm:$0xff]
    %v1666 = vld [vmem:[%s1 + $0x230] sm:$0xff]
    %v1667 = vld [vmem:[%s1 + $0x238] sm:$0xff]
    %v1668 = vld [vmem:[%s1 + $0x240] sm:$0xff]
    %v1669 = vld [vmem:[%s1 + $0x248] sm:$0xff]
    %v1670 = vld [vmem:[%s1 + $0x250] sm:$0xff]
    %v1671 = vld [vmem:[%s1 + $0x258] sm:$0xff]
    %v1672 = vld [vmem:[%s1 + $0x260] sm:$0xff]
    %v1673 = vld [vmem:[%s1 + $0x268] sm:$0xff]
    %v1674 = vld [vmem:[%s1 + $0x270] sm:$0xff]
    %v1675 = vld [vmem:[%s1 + $0x278] sm:$0xff]
    %v1676 = vld [vmem:[%s1 + $0x280] sm:$0xff]
    %v1677 = vld [vmem:[%s1 + $0x288] sm:$0xff]
    %v1678 = vld [vmem:[%s1 + $0x290] sm:$0xff]
    %v1679 = vld [vmem:[%s1 + $0x298] sm:$0xff]
    %v1680 = vld [vmem:[%s1 + $0x2a0] sm:$0xff]
    %v1681 = vld [vmem:[%s1 + $0x2a8] sm:$0xff]
    %v1682 = vld [vmem:[%s1 + $0x2b0] sm:$0xff]
    %v1683 = vld [vmem:[%s1 + $0x2b8] sm:$0xff]
    %v1684 = vld [vmem:[%s1 + $0x2c0] sm:$0xff]
    %v1685 = vld [vmem:[%s1 + $0x2c8] sm:$0xff]
    %v1686 = vld [vmem:[%s1 + $0x2d0] sm:$0xff]
    %v1687 = vld [vmem:[%s1 + $0x2d8] sm:$0xff]
    %v1688 = vld [vmem:[%s1 + $0x2e0] sm:$0xff]
    %v1689 = vld [vmem:[%s1 + $0x2e8] sm:$0xff]
    %v1690 = vld [vmem:[%s1 + $0x2f0] sm:$0xff]
    %v1691 = vld [vmem:[%s1 + $0x2f8] sm:$0xff]
    %v1692 = vld [vmem:[%s1 + $0x300] sm:$0xff]
    %v1693 = vld [vmem:[%s1 + $0x308] sm:$0xff]
    %v1694 = vld [vmem:[%s1 + $0x310] sm:$0xff]
    %v1695 = vld [vmem:[%s1 + $0x318] sm:$0xff]
    %v1696 = vld [vmem:[%s1 + $0x320] sm:$0xff]
    %v1697 = vld [vmem:[%s1 + $0x328] sm:$0xff]
    %v1698 = vld [vmem:[%s1 + $0x330] sm:$0xff]
    %v1699 = vld [vmem:[%s1 + $0x338] sm:$0xff]
    %v1700 = vld [vmem:[%s1 + $0x340] sm:$0xff]
    %v1701 = vld [vmem:[%s1 + $0x348] sm:$0xff]
    %v1702 = vld [vmem:[%s1 + $0x350] sm:$0xff]
    %v1703 = vld [vmem:[%s1 + $0x358] sm:$0xff]
    %v1704 = vld [vmem:[%s1 + $0x360] sm:$0xff]
    %v1705 = vld [vmem:[%s1 + $0x368] sm:$0xff]
    %v1706 = vld [vmem:[%s1 + $0x370] sm:$0xff]
    %v1707 = vld [vmem:[%s1 + $0x378] sm:$0xff]
    %v1708 = vld [vmem:[%s1 + $0x380] sm:$0xff]
    %v1709 = vld [vmem:[%s1 + $0x388] sm:$0xff]
    %v1710 = vld [vmem:[%s1 + $0x390] sm:$0xff]
    %v1711 = vld [vmem:[%s1 + $0x398] sm:$0xff]
    %v1712 = vld [vmem:[%s1 + $0x3a0] sm:$0xff]
    %v1713 = vld [vmem:[%s1 + $0x3a8] sm:$0xff]
    %v1714 = vld [vmem:[%s1 + $0x3b0] sm:$0xff]
    %v1715 = vld [vmem:[%s1 + $0x3b8] sm:$0xff]
    %v1716 = vld [vmem:[%s1 + $0x3c0] sm:$0xff]
    %v1717 = vld [vmem:[%s1 + $0x3c8] sm:$0xff]
    %v1718 = vld [vmem:[%s1 + $0x3d0] sm:$0xff]
    %v1719 = vld [vmem:[%s1 + $0x3d8] sm:$0xff]
    %v1720 = vld [vmem:[%s1 + $0x3e0] sm:$0xff]
    %v1721 = vld [vmem:[%s1 + $0x3e8] sm:$0xff]
    %v1722 = vld [vmem:[%s1 + $0x3f0] sm:$0xff]
    %v1723 = vld [vmem:[%s1 + $0x3f8] sm:$0xff]
    %v1724 = vld [vmem:[%s1 + $0x400] sm:$0xff]
    %v1725 = vld [vmem:[%s1 + $0x408] sm:$0xff]
    %v1726 = vld [vmem:[%s1 + $0x410] sm:$0xff]
    %v1727 = vld [vmem:[%s1 + $0x418] sm:$0xff]
    %v1728 = vld [vmem:[%s1 + $0x420] sm:$0xff]
    %v1729 = vld [vmem:[%s1 + $0x428] sm:$0xff]
    %v1730 = vld [vmem:[%s1 + $0x430] sm:$0xff]
    %v1731 = vld [vmem:[%s1 + $0x438] sm:$0xff]
    %v1732 = vld [vmem:[%s1 + $0x440] sm:$0xff]
    %v1733 = vld [vmem:[%s1 + $0x448] sm:$0xff]
    %v1734 = vld [vmem:[%s1 + $0x450] sm:$0xff]
    %v1735 = vld [vmem:[%s1 + $0x458] sm:$0xff]
    %v1736 = vld [vmem:[%s1 + $0x460] sm:$0xff]
    %v1737 = vld [vmem:[%s1 + $0x468] sm:$0xff]
    %v1738 = vld [vmem:[%s1 + $0x470] sm:$0xff]
    %v1739 = vld [vmem:[%s1 + $0x478] sm:$0xff]
    %v1740 = vld [vmem:[%s1 + $0x480] sm:$0xff]
    %v1741 = vld [vmem:[%s1 + $0x488] sm:$0xff]
    %v1742 = vld [vmem:[%s1 + $0x490] sm:$0xff]
    %v1743 = vld [vmem:[%s1 + $0x498] sm:$0xff]
    %v1744 = vld [vmem:[%s1 + $0x4a0] sm:$0xff]
    %v1745 = vld [vmem:[%s1 + $0x4a8] sm:$0xff]
    %v1746 = vld [vmem:[%s1 + $0x4b0] sm:$0xff]
    %v1747 = vld [vmem:[%s1 + $0x4b8] sm:$0xff]
    %v1748 = vld [vmem:[%s1 + $0x4c0] sm:$0xff]
    %v1749 = vld [vmem:[%s1 + $0x4c8] sm:$0xff]
    %v1750 = vld [vmem:[%s1 + $0x4d0] sm:$0xff]
    %v1751 = vld [vmem:[%s1 + $0x4d8] sm:$0xff]
    %v1752 = vld [vmem:[%s1 + $0x4e0] sm:$0xff]
    %v1753 = vld [vmem:[%s1 + $0x4e8] sm:$0xff]
    %v1754 = vld [vmem:[%s1 + $0x4f0] sm:$0xff]
    %v1755 = vld [vmem:[%s1 + $0x4f8] sm:$0xff]
    %v1756 = vld [vmem:[%s1 + $0x500] sm:$0xff]
    %v1757 = vld [vmem:[%s1 + $0x508] sm:$0xff]
    %v1758 = vld [vmem:[%s1 + $0x510] sm:$0xff]
    %v1759 = vld [vmem:[%s1 + $0x518] sm:$0xff]
    %v1760 = vld [vmem:[%s1 + $0x520] sm:$0xff]
    %v1761 = vld [vmem:[%s1 + $0x528] sm:$0xff]
    %v1762 = vld [vmem:[%s1 + $0x530] sm:$0xff]
    %v1763 = vld [vmem:[%s1 + $0x538] sm:$0xff]
    %v1764 = vld [vmem:[%s1 + $0x540] sm:$0xff]
    %v1765 = vld [vmem:[%s1 + $0x548] sm:$0xff]
    %v1766 = vld [vmem:[%s1 + $0x550] sm:$0xff]
    %v1767 = vld [vmem:[%s1 + $0x558] sm:$0xff]
    %v1768 = vld [vmem:[%s1 + $0x560] sm:$0xff]
    %v1769 = vld [vmem:[%s1 + $0x568] sm:$0xff]
    %v1770 = vld [vmem:[%s1 + $0x570] sm:$0xff]
    %v1771 = vld [vmem:[%s1 + $0x578] sm:$0xff]
    %v1772 = vld [vmem:[%s1 + $0x580] sm:$0xff]
    %v1773 = vld [vmem:[%s1 + $0x588] sm:$0xff]
    %v1774 = vld [vmem:[%s1 + $0x590] sm:$0xff]
    %v1775 = vld [vmem:[%s1 + $0x598] sm:$0xff]
    %v1776 = vld [vmem:[%s1 + $0x5a0] sm:$0xff]
    %v1777 = vld [vmem:[%s1 + $0x5a8] sm:$0xff]
    %v1778 = vld [vmem:[%s1 + $0x5b0] sm:$0xff]
    %v1779 = vld [vmem:[%s1 + $0x5b8] sm:$0xff]
    %v1780 = vld [vmem:[%s1 + $0x5c0] sm:$0xff]
    %v1781 = vld [vmem:[%s1 + $0x5c8] sm:$0xff]
    %v1782 = vld [vmem:[%s1 + $0x5d0] sm:$0xff]
    %v1783 = vld [vmem:[%s1 + $0x5d8] sm:$0xff]
    %v1784 = vld [vmem:[%s1 + $0x5e0] sm:$0xff]
    %v1785 = vld [vmem:[%s1 + $0x5e8] sm:$0xff]
    %v1786 = vld [vmem:[%s1 + $0x5f0] sm:$0xff]
    %v1787 = vld [vmem:[%s1 + $0x5f8] sm:$0xff]
    %v1788 = vld [vmem:[%s1 + $0x600] sm:$0xff]
    %v1789 = vld [vmem:[%s1 + $0x608] sm:$0xff]
    %v1790 = vld [vmem:[%s1 + $0x610] sm:$0xff]
    %v1791 = vld [vmem:[%s1 + $0x618] sm:$0xff]
    %v1792 = vld [vmem:[%s1 + $0x620] sm:$0xff]
    %v1793 = vld [vmem:[%s1 + $0x628] sm:$0xff]
    %v1794 = vld [vmem:[%s1 + $0x630] sm:$0xff]
    %v1795 = vld [vmem:[%s1 + $0x638] sm:$0xff]
    %v1796 = vld [vmem:[%s1 + $0x640] sm:$0xff]
    %v1797 = vld [vmem:[%s1 + $0x648] sm:$0xff]
    %v1798 = vld [vmem:[%s1 + $0x650] sm:$0xff]
    %v1799 = vld [vmem:[%s1 + $0x658] sm:$0xff]
    %v1800 = vld [vmem:[%s1 + $0x660] sm:$0xff]
    %v1801 = vld [vmem:[%s1 + $0x668] sm:$0xff]
    %v1802 = vld [vmem:[%s1 + $0x670] sm:$0xff]
    %v1803 = vld [vmem:[%s1 + $0x678] sm:$0xff]
    %v1804 = vld [vmem:[%s1 + $0x680] sm:$0xff]
    %v1805 = vld [vmem:[%s1 + $0x688] sm:$0xff]
    %v1806 = vld [vmem:[%s1 + $0x690] sm:$0xff]
    %v1807 = vld [vmem:[%s1 + $0x698] sm:$0xff]
    %v1808 = vld [vmem:[%s1 + $0x6a0] sm:$0xff]
    %v1809 = vld [vmem:[%s1 + $0x6a8] sm:$0xff]
    %v1810 = vld [vmem:[%s1 + $0x6b0] sm:$0xff]
    %v1811 = vld [vmem:[%s1 + $0x6b8] sm:$0xff]
    %v1812 = vld [vmem:[%s1 + $0x6c0] sm:$0xff]
    %v1813 = vld [vmem:[%s1 + $0x6c8] sm:$0xff]
    %v1814 = vld [vmem:[%s1 + $0x6d0] sm:$0xff]
    %v1815 = vld [vmem:[%s1 + $0x6d8] sm:$0xff]
    %v1816 = vld [vmem:[%s1 + $0x6e0] sm:$0xff]
    %v1817 = vld [vmem:[%s1 + $0x6e8] sm:$0xff]
    %v1818 = vld [vmem:[%s1 + $0x6f0] sm:$0xff]
    %v1819 = vld [vmem:[%s1 + $0x6f8] sm:$0xff]
    %v1820 = vld [vmem:[%s1 + $0x700] sm:$0xff]
    %v1821 = vld [vmem:[%s1 + $0x708] sm:$0xff]
    %v1822 = vld [vmem:[%s1 + $0x710] sm:$0xff]
    %v1823 = vld [vmem:[%s1 + $0x718] sm:$0xff]
    %v1824 = vld [vmem:[%s1 + $0x720] sm:$0xff]
    %v1825 = vld [vmem:[%s1 + $0x728] sm:$0xff]
    %v1826 = vld [vmem:[%s1 + $0x730] sm:$0xff]
    %v1827 = vld [vmem:[%s1 + $0x738] sm:$0xff]
    %v1828 = vld [vmem:[%s1 + $0x740] sm:$0xff]
    %v1829 = vld [vmem:[%s1 + $0x748] sm:$0xff]
    %v1830 = vld [vmem:[%s1 + $0x750] sm:$0xff]
    %v1831 = vld [vmem:[%s1 + $0x758] sm:$0xff]
    %v1832 = vld [vmem:[%s1 + $0x760] sm:$0xff]
    %v1833 = vld [vmem:[%s1 + $0x768] sm:$0xff]
    %v1834 = vld [vmem:[%s1 + $0x770] sm:$0xff]
    %v1835 = vld [vmem:[%s1 + $0x778] sm:$0xff]
    %1837 = vset.pattern.permute.xlu0 0
    %1838 = vperm.xlu0 %1837, %v1357
    %v1839 = vpop.permute.xlu0 %1838
    %1842 = vset.pattern.permute.xlu0 0
    %1843 = vperm.xlu0 %1842, %v1359
    %v1844 = vpop.permute.xlu0 %1843
    %1847 = vset.pattern.permute.xlu0 0
    %1848 = vperm.xlu0 %1847, %v1361
    %v1849 = vpop.permute.xlu0 %1848
    %1852 = vset.pattern.permute.xlu0 0
    %1853 = vperm.xlu0 %1852, %v1363
    %v1854 = vpop.permute.xlu0 %1853
    %1857 = vset.pattern.permute.xlu0 0
    %1858 = vperm.xlu0 %1857, %v1365
    %v1859 = vpop.permute.xlu0 %1858
    %1862 = vset.pattern.permute.xlu0 0
    %1863 = vperm.xlu0 %1862, %v1367
    %v1864 = vpop.permute.xlu0 %1863
    %1867 = vset.pattern.permute.xlu0 0
    %1868 = vperm.xlu0 %1867, %v1369
    %v1869 = vpop.permute.xlu0 %1868
    %1872 = vset.pattern.permute.xlu0 0
    %1873 = vperm.xlu0 %1872, %v1371
    %v1874 = vpop.permute.xlu0 %1873
    %1877 = vset.pattern.permute.xlu0 0
    %1878 = vperm.xlu0 %1877, %v1373
    %v1879 = vpop.permute.xlu0 %1878
    %1882 = vset.pattern.permute.xlu0 0
    %1883 = vperm.xlu0 %1882, %v1375
    %v1884 = vpop.permute.xlu0 %1883
    %1887 = vset.pattern.permute.xlu0 0
    %1888 = vperm.xlu0 %1887, %v1377
    %v1889 = vpop.permute.xlu0 %1888
    %1892 = vset.pattern.permute.xlu0 0
    %1893 = vperm.xlu0 %1892, %v1379
    %v1894 = vpop.permute.xlu0 %1893
    %1897 = vset.pattern.permute.xlu0 0
    %1898 = vperm.xlu0 %1897, %v1381
    %v1899 = vpop.permute.xlu0 %1898
    %1902 = vset.pattern.permute.xlu0 0
    %1903 = vperm.xlu0 %1902, %v1383
    %v1904 = vpop.permute.xlu0 %1903
    %1907 = vset.pattern.permute.xlu0 0
    %1908 = vperm.xlu0 %1907, %v1385
    %v1909 = vpop.permute.xlu0 %1908
    %1912 = vset.pattern.permute.xlu0 0
    %1913 = vperm.xlu0 %1912, %v1387
    %v1914 = vpop.permute.xlu0 %1913
    %1917 = vset.pattern.permute.xlu0 0
    %1918 = vperm.xlu0 %1917, %v1389
    %v1919 = vpop.permute.xlu0 %1918
    %1922 = vset.pattern.permute.xlu0 0
    %1923 = vperm.xlu0 %1922, %v1391
    %v1924 = vpop.permute.xlu0 %1923
    %1927 = vset.pattern.permute.xlu0 0
    %1928 = vperm.xlu0 %1927, %v1393
    %v1929 = vpop.permute.xlu0 %1928
    %1932 = vset.pattern.permute.xlu0 0
    %1933 = vperm.xlu0 %1932, %v1395
    %v1934 = vpop.permute.xlu0 %1933
    %1937 = vset.pattern.permute.xlu0 0
    %1938 = vperm.xlu0 %1937, %v1397
    %v1939 = vpop.permute.xlu0 %1938
    %1942 = vset.pattern.permute.xlu0 0
    %1943 = vperm.xlu0 %1942, %v1399
    %v1944 = vpop.permute.xlu0 %1943
    %1947 = vset.pattern.permute.xlu0 0
    %1948 = vperm.xlu0 %1947, %v1401
    %v1949 = vpop.permute.xlu0 %1948
    %1952 = vset.pattern.permute.xlu0 0
    %1953 = vperm.xlu0 %1952, %v1403
    %v1954 = vpop.permute.xlu0 %1953
    %1957 = vset.pattern.permute.xlu0 0
    %1958 = vperm.xlu0 %1957, %v1405
    %v1959 = vpop.permute.xlu0 %1958
    %1962 = vset.pattern.permute.xlu0 0
    %1963 = vperm.xlu0 %1962, %v1407
    %v1964 = vpop.permute.xlu0 %1963
    %1967 = vset.pattern.permute.xlu0 0
    %1968 = vperm.xlu0 %1967, %v1409
    %v1969 = vpop.permute.xlu0 %1968
    %1972 = vset.pattern.permute.xlu0 0
    %1973 = vperm.xlu0 %1972, %v1411
    %v1974 = vpop.permute.xlu0 %1973
    %1977 = vset.pattern.permute.xlu0 0
    %1978 = vperm.xlu0 %1977, %v1413
    %v1979 = vpop.permute.xlu0 %1978
    %1982 = vset.pattern.permute.xlu0 0
    %1983 = vperm.xlu0 %1982, %v1415
    %v1984 = vpop.permute.xlu0 %1983
    %1987 = vset.pattern.permute.xlu0 0
    %1988 = vperm.xlu0 %1987, %v1417
    %v1989 = vpop.permute.xlu0 %1988
    %1992 = vset.pattern.permute.xlu0 0
    %1993 = vperm.xlu0 %1992, %v1419
    %v1994 = vpop.permute.xlu0 %1993
    %1997 = vset.pattern.permute.xlu0 0
    %1998 = vperm.xlu0 %1997, %v1421
    %v1999 = vpop.permute.xlu0 %1998
    %2002 = vset.pattern.permute.xlu0 0
    %2003 = vperm.xlu0 %2002, %v1423
    %v2004 = vpop.permute.xlu0 %2003
    %2007 = vset.pattern.permute.xlu0 0
    %2008 = vperm.xlu0 %2007, %v1425
    %v2009 = vpop.permute.xlu0 %2008
    %2012 = vset.pattern.permute.xlu0 0
    %2013 = vperm.xlu0 %2012, %v1427
    %v2014 = vpop.permute.xlu0 %2013
    %2017 = vset.pattern.permute.xlu0 0
    %2018 = vperm.xlu0 %2017, %v1429
    %v2019 = vpop.permute.xlu0 %2018
    %2022 = vset.pattern.permute.xlu0 0
    %2023 = vperm.xlu0 %2022, %v1431
    %v2024 = vpop.permute.xlu0 %2023
    %2027 = vset.pattern.permute.xlu0 0
    %2028 = vperm.xlu0 %2027, %v1433
    %v2029 = vpop.permute.xlu0 %2028
    %2032 = vset.pattern.permute.xlu0 0
    %2033 = vperm.xlu0 %2032, %v1435
    %v2034 = vpop.permute.xlu0 %2033
    %2037 = vset.pattern.permute.xlu0 0
    %2038 = vperm.xlu0 %2037, %v1437
    %v2039 = vpop.permute.xlu0 %2038
    %2042 = vset.pattern.permute.xlu0 0
    %2043 = vperm.xlu0 %2042, %v1439
    %v2044 = vpop.permute.xlu0 %2043
    %2047 = vset.pattern.permute.xlu0 0
    %2048 = vperm.xlu0 %2047, %v1441
    %v2049 = vpop.permute.xlu0 %2048
    %2052 = vset.pattern.permute.xlu0 0
    %2053 = vperm.xlu0 %2052, %v1443
    %v2054 = vpop.permute.xlu0 %2053
    %2057 = vset.pattern.permute.xlu0 0
    %2058 = vperm.xlu0 %2057, %v1445
    %v2059 = vpop.permute.xlu0 %2058
    %2062 = vset.pattern.permute.xlu0 0
    %2063 = vperm.xlu0 %2062, %v1447
    %v2064 = vpop.permute.xlu0 %2063
    %2067 = vset.pattern.permute.xlu0 0
    %2068 = vperm.xlu0 %2067, %v1449
    %v2069 = vpop.permute.xlu0 %2068
    %2072 = vset.pattern.permute.xlu0 0
    %2073 = vperm.xlu0 %2072, %v1451
    %v2074 = vpop.permute.xlu0 %2073
    %2077 = vset.pattern.permute.xlu0 0
    %2078 = vperm.xlu0 %2077, %v1453
    %v2079 = vpop.permute.xlu0 %2078
    %2082 = vset.pattern.permute.xlu0 0
    %2083 = vperm.xlu0 %2082, %v1455
    %v2084 = vpop.permute.xlu0 %2083
    %2087 = vset.pattern.permute.xlu0 0
    %2088 = vperm.xlu0 %2087, %v1457
    %v2089 = vpop.permute.xlu0 %2088
    %2092 = vset.pattern.permute.xlu0 0
    %2093 = vperm.xlu0 %2092, %v1459
    %v2094 = vpop.permute.xlu0 %2093
    %2097 = vset.pattern.permute.xlu0 0
    %2098 = vperm.xlu0 %2097, %v1461
    %v2099 = vpop.permute.xlu0 %2098
    %2102 = vset.pattern.permute.xlu0 0
    %2103 = vperm.xlu0 %2102, %v1463
    %v2104 = vpop.permute.xlu0 %2103
    %2107 = vset.pattern.permute.xlu0 0
    %2108 = vperm.xlu0 %2107, %v1465
    %v2109 = vpop.permute.xlu0 %2108
    %2112 = vset.pattern.permute.xlu0 0
    %2113 = vperm.xlu0 %2112, %v1467
    %v2114 = vpop.permute.xlu0 %2113
    %2117 = vset.pattern.permute.xlu0 0
    %2118 = vperm.xlu0 %2117, %v1469
    %v2119 = vpop.permute.xlu0 %2118
    %2122 = vset.pattern.permute.xlu0 0
    %2123 = vperm.xlu0 %2122, %v1471
    %v2124 = vpop.permute.xlu0 %2123
    %2127 = vset.pattern.permute.xlu0 0
    %2128 = vperm.xlu0 %2127, %v1473
    %v2129 = vpop.permute.xlu0 %2128
    %2132 = vset.pattern.permute.xlu0 0
    %2133 = vperm.xlu0 %2132, %v1475
    %v2134 = vpop.permute.xlu0 %2133
    %2137 = vset.pattern.permute.xlu0 0
    %2138 = vperm.xlu0 %2137, %v1477
    %v2139 = vpop.permute.xlu0 %2138
    %2142 = vset.pattern.permute.xlu0 0
    %2143 = vperm.xlu0 %2142, %v1479
    %v2144 = vpop.permute.xlu0 %2143
    %2147 = vset.pattern.permute.xlu0 0
    %2148 = vperm.xlu0 %2147, %v1481
    %v2149 = vpop.permute.xlu0 %2148
    %2152 = vset.pattern.permute.xlu0 0
    %2153 = vperm.xlu0 %2152, %v1483
    %v2154 = vpop.permute.xlu0 %2153
    %2157 = vset.pattern.permute.xlu0 0
    %2158 = vperm.xlu0 %2157, %v1485
    %v2159 = vpop.permute.xlu0 %2158
    %2162 = vset.pattern.permute.xlu0 0
    %2163 = vperm.xlu0 %2162, %v1487
    %v2164 = vpop.permute.xlu0 %2163
    %2167 = vset.pattern.permute.xlu0 0
    %2168 = vperm.xlu0 %2167, %v1489
    %v2169 = vpop.permute.xlu0 %2168
    %2172 = vset.pattern.permute.xlu0 0
    %2173 = vperm.xlu0 %2172, %v1491
    %v2174 = vpop.permute.xlu0 %2173
    %2177 = vset.pattern.permute.xlu0 0
    %2178 = vperm.xlu0 %2177, %v1493
    %v2179 = vpop.permute.xlu0 %2178
    %2182 = vset.pattern.permute.xlu0 0
    %2183 = vperm.xlu0 %2182, %v1495
    %v2184 = vpop.permute.xlu0 %2183
    %2187 = vset.pattern.permute.xlu0 0
    %2188 = vperm.xlu0 %2187, %v1497
    %v2189 = vpop.permute.xlu0 %2188
    %2192 = vset.pattern.permute.xlu0 0
    %2193 = vperm.xlu0 %2192, %v1499
    %v2194 = vpop.permute.xlu0 %2193
    %2197 = vset.pattern.permute.xlu0 0
    %2198 = vperm.xlu0 %2197, %v1501
    %v2199 = vpop.permute.xlu0 %2198
    %2202 = vset.pattern.permute.xlu0 0
    %2203 = vperm.xlu0 %2202, %v1503
    %v2204 = vpop.permute.xlu0 %2203
    %2207 = vset.pattern.permute.xlu0 0
    %2208 = vperm.xlu0 %2207, %v1505
    %v2209 = vpop.permute.xlu0 %2208
    %2212 = vset.pattern.permute.xlu0 0
    %2213 = vperm.xlu0 %2212, %v1507
    %v2214 = vpop.permute.xlu0 %2213
    %2217 = vset.pattern.permute.xlu0 0
    %2218 = vperm.xlu0 %2217, %v1509
    %v2219 = vpop.permute.xlu0 %2218
    %2222 = vset.pattern.permute.xlu0 0
    %2223 = vperm.xlu0 %2222, %v1511
    %v2224 = vpop.permute.xlu0 %2223
    %2227 = vset.pattern.permute.xlu0 0
    %2228 = vperm.xlu0 %2227, %v1513
    %v2229 = vpop.permute.xlu0 %2228
    %2232 = vset.pattern.permute.xlu0 0
    %2233 = vperm.xlu0 %2232, %v1515
    %v2234 = vpop.permute.xlu0 %2233
    %2237 = vset.pattern.permute.xlu0 0
    %2238 = vperm.xlu0 %2237, %v1517
    %v2239 = vpop.permute.xlu0 %2238
    %2242 = vset.pattern.permute.xlu0 0
    %2243 = vperm.xlu0 %2242, %v1519
    %v2244 = vpop.permute.xlu0 %2243
    %2247 = vset.pattern.permute.xlu0 0
    %2248 = vperm.xlu0 %2247, %v1521
    %v2249 = vpop.permute.xlu0 %2248
    %2252 = vset.pattern.permute.xlu0 0
    %2253 = vperm.xlu0 %2252, %v1523
    %v2254 = vpop.permute.xlu0 %2253
    %2257 = vset.pattern.permute.xlu0 0
    %2258 = vperm.xlu0 %2257, %v1525
    %v2259 = vpop.permute.xlu0 %2258
    %2262 = vset.pattern.permute.xlu0 0
    %2263 = vperm.xlu0 %2262, %v1527
    %v2264 = vpop.permute.xlu0 %2263
    %2267 = vset.pattern.permute.xlu0 0
    %2268 = vperm.xlu0 %2267, %v1529
    %v2269 = vpop.permute.xlu0 %2268
    %2272 = vset.pattern.permute.xlu0 0
    %2273 = vperm.xlu0 %2272, %v1531
    %v2274 = vpop.permute.xlu0 %2273
    %2277 = vset.pattern.permute.xlu0 0
    %2278 = vperm.xlu0 %2277, %v1533
    %v2279 = vpop.permute.xlu0 %2278
    %2282 = vset.pattern.permute.xlu0 0
    %2283 = vperm.xlu0 %2282, %v1535
    %v2284 = vpop.permute.xlu0 %2283
    %2287 = vset.pattern.permute.xlu0 0
    %2288 = vperm.xlu0 %2287, %v1537
    %v2289 = vpop.permute.xlu0 %2288
    %2292 = vset.pattern.permute.xlu0 0
    %2293 = vperm.xlu0 %2292, %v1539
    %v2294 = vpop.permute.xlu0 %2293
    %2297 = vset.pattern.permute.xlu0 0
    %2298 = vperm.xlu0 %2297, %v1541
    %v2299 = vpop.permute.xlu0 %2298
    %2302 = vset.pattern.permute.xlu0 0
    %2303 = vperm.xlu0 %2302, %v1543
    %v2304 = vpop.permute.xlu0 %2303
    %2307 = vset.pattern.permute.xlu0 0
    %2308 = vperm.xlu0 %2307, %v1545
    %v2309 = vpop.permute.xlu0 %2308
    %2312 = vset.pattern.permute.xlu0 0
    %2313 = vperm.xlu0 %2312, %v1547
    %v2314 = vpop.permute.xlu0 %2313
    %2317 = vset.pattern.permute.xlu0 0
    %2318 = vperm.xlu0 %2317, %v1549
    %v2319 = vpop.permute.xlu0 %2318
    %2322 = vset.pattern.permute.xlu0 0
    %2323 = vperm.xlu0 %2322, %v1551
    %v2324 = vpop.permute.xlu0 %2323
    %2327 = vset.pattern.permute.xlu0 0
    %2328 = vperm.xlu0 %2327, %v1553
    %v2329 = vpop.permute.xlu0 %2328
    %2332 = vset.pattern.permute.xlu0 0
    %2333 = vperm.xlu0 %2332, %v1555
    %v2334 = vpop.permute.xlu0 %2333
    %2337 = vset.pattern.permute.xlu0 0
    %2338 = vperm.xlu0 %2337, %v1557
    %v2339 = vpop.permute.xlu0 %2338
    %2342 = vset.pattern.permute.xlu0 0
    %2343 = vperm.xlu0 %2342, %v1559
    %v2344 = vpop.permute.xlu0 %2343
    %2347 = vset.pattern.permute.xlu0 0
    %2348 = vperm.xlu0 %2347, %v1561
    %v2349 = vpop.permute.xlu0 %2348
    %2352 = vset.pattern.permute.xlu0 0
    %2353 = vperm.xlu0 %2352, %v1563
    %v2354 = vpop.permute.xlu0 %2353
    %2357 = vset.pattern.permute.xlu0 0
    %2358 = vperm.xlu0 %2357, %v1565
    %v2359 = vpop.permute.xlu0 %2358
    %2362 = vset.pattern.permute.xlu0 0
    %2363 = vperm.xlu0 %2362, %v1567
    %v2364 = vpop.permute.xlu0 %2363
    %2367 = vset.pattern.permute.xlu0 0
    %2368 = vperm.xlu0 %2367, %v1569
    %v2369 = vpop.permute.xlu0 %2368
    %2372 = vset.pattern.permute.xlu0 0
    %2373 = vperm.xlu0 %2372, %v1571
    %v2374 = vpop.permute.xlu0 %2373
    %2377 = vset.pattern.permute.xlu0 0
    %2378 = vperm.xlu0 %2377, %v1573
    %v2379 = vpop.permute.xlu0 %2378
    %2382 = vset.pattern.permute.xlu0 0
    %2383 = vperm.xlu0 %2382, %v1575
    %v2384 = vpop.permute.xlu0 %2383
    %2387 = vset.pattern.permute.xlu0 0
    %2388 = vperm.xlu0 %2387, %v1577
    %v2389 = vpop.permute.xlu0 %2388
    %2392 = vset.pattern.permute.xlu0 0
    %2393 = vperm.xlu0 %2392, %v1579
    %v2394 = vpop.permute.xlu0 %2393
    %2397 = vset.pattern.permute.xlu0 0
    %2398 = vperm.xlu0 %2397, %v1581
    %v2399 = vpop.permute.xlu0 %2398
    %2402 = vset.pattern.permute.xlu0 0
    %2403 = vperm.xlu0 %2402, %v1583
    %v2404 = vpop.permute.xlu0 %2403
    %2407 = vset.pattern.permute.xlu0 0
    %2408 = vperm.xlu0 %2407, %v1585
    %v2409 = vpop.permute.xlu0 %2408
    %2412 = vset.pattern.permute.xlu0 0
    %2413 = vperm.xlu0 %2412, %v1587
    %v2414 = vpop.permute.xlu0 %2413
    %2417 = vset.pattern.permute.xlu0 0
    %2418 = vperm.xlu0 %2417, %v1589
    %v2419 = vpop.permute.xlu0 %2418
    %2422 = vset.pattern.permute.xlu0 0
    %2423 = vperm.xlu0 %2422, %v1591
    %v2424 = vpop.permute.xlu0 %2423
    %2427 = vset.pattern.permute.xlu0 0
    %2428 = vperm.xlu0 %2427, %v1593
    %v2429 = vpop.permute.xlu0 %2428
    %2432 = vset.pattern.permute.xlu0 0
    %2433 = vperm.xlu0 %2432, %v1595
    %v2434 = vpop.permute.xlu0 %2433
    %v2436 = vmul.f32 %v1596, %v1839
    %v2437 = vmul.f32 %v1597, %v1839
    %v2438 = vmul.f32 %v1598, %v1844
    %v2439 = vmul.f32 %v1599, %v1844
    %v2440 = vmul.f32 %v1600, %v1849
    %v2441 = vmul.f32 %v1601, %v1849
    %v2442 = vmul.f32 %v1602, %v1854
    %v2443 = vmul.f32 %v1603, %v1854
    %v2444 = vmul.f32 %v1604, %v1859
    %v2445 = vmul.f32 %v1605, %v1859
    %v2446 = vmul.f32 %v1606, %v1864
    %v2447 = vmul.f32 %v1607, %v1864
    %v2448 = vmul.f32 %v1608, %v1869
    %v2449 = vmul.f32 %v1609, %v1869
    %v2450 = vmul.f32 %v1610, %v1874
    %v2451 = vmul.f32 %v1611, %v1874
    %v2452 = vmul.f32 %v1612, %v1879
    %v2453 = vmul.f32 %v1613, %v1879
    %v2454 = vmul.f32 %v1614, %v1884
    %v2455 = vmul.f32 %v1615, %v1884
    %v2456 = vmul.f32 %v1616, %v1889
    %v2457 = vmul.f32 %v1617, %v1889
    %v2458 = vmul.f32 %v1618, %v1894
    %v2459 = vmul.f32 %v1619, %v1894
    %v2460 = vmul.f32 %v1620, %v1899
    %v2461 = vmul.f32 %v1621, %v1899
    %v2462 = vmul.f32 %v1622, %v1904
    %v2463 = vmul.f32 %v1623, %v1904
    %v2464 = vmul.f32 %v1624, %v1909
    %v2465 = vmul.f32 %v1625, %v1909
    %v2466 = vmul.f32 %v1626, %v1914
    %v2467 = vmul.f32 %v1627, %v1914
    %v2468 = vmul.f32 %v1628, %v1919
    %v2469 = vmul.f32 %v1629, %v1919
    %v2470 = vmul.f32 %v1630, %v1924
    %v2471 = vmul.f32 %v1631, %v1924
    %v2472 = vmul.f32 %v1632, %v1929
    %v2473 = vmul.f32 %v1633, %v1929
    %v2474 = vmul.f32 %v1634, %v1934
    %v2475 = vmul.f32 %v1635, %v1934
    %v2476 = vmul.f32 %v1636, %v1939
    %v2477 = vmul.f32 %v1637, %v1939
    %v2478 = vmul.f32 %v1638, %v1944
    %v2479 = vmul.f32 %v1639, %v1944
    %v2480 = vmul.f32 %v1640, %v1949
    %v2481 = vmul.f32 %v1641, %v1949
    %v2482 = vmul.f32 %v1642, %v1954
    %v2483 = vmul.f32 %v1643, %v1954
    %v2484 = vmul.f32 %v1644, %v1959
    %v2485 = vmul.f32 %v1645, %v1959
    %v2486 = vmul.f32 %v1646, %v1964
    %v2487 = vmul.f32 %v1647, %v1964
    %v2488 = vmul.f32 %v1648, %v1969
    %v2489 = vmul.f32 %v1649, %v1969
    %v2490 = vmul.f32 %v1650, %v1974
    %v2491 = vmul.f32 %v1651, %v1974
    %v2492 = vmul.f32 %v1652, %v1979
    %v2493 = vmul.f32 %v1653, %v1979
    %v2494 = vmul.f32 %v1654, %v1984
    %v2495 = vmul.f32 %v1655, %v1984
    %v2496 = vmul.f32 %v1656, %v1989
    %v2497 = vmul.f32 %v1657, %v1989
    %v2498 = vmul.f32 %v1658, %v1994
    %v2499 = vmul.f32 %v1659, %v1994
    %v2500 = vmul.f32 %v1660, %v1999
    %v2501 = vmul.f32 %v1661, %v1999
    %v2502 = vmul.f32 %v1662, %v2004
    %v2503 = vmul.f32 %v1663, %v2004
    %v2504 = vmul.f32 %v1664, %v2009
    %v2505 = vmul.f32 %v1665, %v2009
    %v2506 = vmul.f32 %v1666, %v2014
    %v2507 = vmul.f32 %v1667, %v2014
    %v2508 = vmul.f32 %v1668, %v2019
    %v2509 = vmul.f32 %v1669, %v2019
    %v2510 = vmul.f32 %v1670, %v2024
    %v2511 = vmul.f32 %v1671, %v2024
    %v2512 = vmul.f32 %v1672, %v2029
    %v2513 = vmul.f32 %v1673, %v2029
    %v2514 = vmul.f32 %v1674, %v2034
    %v2515 = vmul.f32 %v1675, %v2034
    %v2516 = vmul.f32 %v1676, %v2039
    %v2517 = vmul.f32 %v1677, %v2039
    %v2518 = vmul.f32 %v1678, %v2044
    %v2519 = vmul.f32 %v1679, %v2044
    %v2520 = vmul.f32 %v1680, %v2049
    %v2521 = vmul.f32 %v1681, %v2049
    %v2522 = vmul.f32 %v1682, %v2054
    %v2523 = vmul.f32 %v1683, %v2054
    %v2524 = vmul.f32 %v1684, %v2059
    %v2525 = vmul.f32 %v1685, %v2059
    %v2526 = vmul.f32 %v1686, %v2064
    %v2527 = vmul.f32 %v1687, %v2064
    %v2528 = vmul.f32 %v1688, %v2069
    %v2529 = vmul.f32 %v1689, %v2069
    %v2530 = vmul.f32 %v1690, %v2074
    %v2531 = vmul.f32 %v1691, %v2074
    %v2532 = vmul.f32 %v1692, %v2079
    %v2533 = vmul.f32 %v1693, %v2079
    %v2534 = vmul.f32 %v1694, %v2084
    %v2535 = vmul.f32 %v1695, %v2084
    %v2536 = vmul.f32 %v1696, %v2089
    %v2537 = vmul.f32 %v1697, %v2089
    %v2538 = vmul.f32 %v1698, %v2094
    %v2539 = vmul.f32 %v1699, %v2094
    %v2540 = vmul.f32 %v1700, %v2099
    %v2541 = vmul.f32 %v1701, %v2099
    %v2542 = vmul.f32 %v1702, %v2104
    %v2543 = vmul.f32 %v1703, %v2104
    %v2544 = vmul.f32 %v1704, %v2109
    %v2545 = vmul.f32 %v1705, %v2109
    %v2546 = vmul.f32 %v1706, %v2114
    %v2547 = vmul.f32 %v1707, %v2114
    %v2548 = vmul.f32 %v1708, %v2119
    %v2549 = vmul.f32 %v1709, %v2119
    %v2550 = vmul.f32 %v1710, %v2124
    %v2551 = vmul.f32 %v1711, %v2124
    %v2552 = vmul.f32 %v1712, %v2129
    %v2553 = vmul.f32 %v1713, %v2129
    %v2554 = vmul.f32 %v1714, %v2134
    %v2555 = vmul.f32 %v1715, %v2134
    %v2556 = vmul.f32 %v1716, %v2139
    %v2557 = vmul.f32 %v1717, %v2139
    %v2558 = vmul.f32 %v1718, %v2144
    %v2559 = vmul.f32 %v1719, %v2144
    %v2560 = vmul.f32 %v1720, %v2149
    %v2561 = vmul.f32 %v1721, %v2149
    %v2562 = vmul.f32 %v1722, %v2154
    %v2563 = vmul.f32 %v1723, %v2154
    %v2564 = vmul.f32 %v1724, %v2159
    %v2565 = vmul.f32 %v1725, %v2159
    %v2566 = vmul.f32 %v1726, %v2164
    %v2567 = vmul.f32 %v1727, %v2164
    %v2568 = vmul.f32 %v1728, %v2169
    %v2569 = vmul.f32 %v1729, %v2169
    %v2570 = vmul.f32 %v1730, %v2174
    %v2571 = vmul.f32 %v1731, %v2174
    %v2572 = vmul.f32 %v1732, %v2179
    %v2573 = vmul.f32 %v1733, %v2179
    %v2574 = vmul.f32 %v1734, %v2184
    %v2575 = vmul.f32 %v1735, %v2184
    %v2576 = vmul.f32 %v1736, %v2189
    %v2577 = vmul.f32 %v1737, %v2189
    %v2578 = vmul.f32 %v1738, %v2194
    %v2579 = vmul.f32 %v1739, %v2194
    %v2580 = vmul.f32 %v1740, %v2199
    %v2581 = vmul.f32 %v1741, %v2199
    %v2582 = vmul.f32 %v1742, %v2204
    %v2583 = vmul.f32 %v1743, %v2204
    %v2584 = vmul.f32 %v1744, %v2209
    %v2585 = vmul.f32 %v1745, %v2209
    %v2586 = vmul.f32 %v1746, %v2214
    %v2587 = vmul.f32 %v1747, %v2214
    %v2588 = vmul.f32 %v1748, %v2219
    %v2589 = vmul.f32 %v1749, %v2219
    %v2590 = vmul.f32 %v1750, %v2224
    %v2591 = vmul.f32 %v1751, %v2224
    %v2592 = vmul.f32 %v1752, %v2229
    %v2593 = vmul.f32 %v1753, %v2229
    %v2594 = vmul.f32 %v1754, %v2234
    %v2595 = vmul.f32 %v1755, %v2234
    %v2596 = vmul.f32 %v1756, %v2239
    %v2597 = vmul.f32 %v1757, %v2239
    %v2598 = vmul.f32 %v1758, %v2244
    %v2599 = vmul.f32 %v1759, %v2244
    %v2600 = vmul.f32 %v1760, %v2249
    %v2601 = vmul.f32 %v1761, %v2249
    %v2602 = vmul.f32 %v1762, %v2254
    %v2603 = vmul.f32 %v1763, %v2254
    %v2604 = vmul.f32 %v1764, %v2259
    %v2605 = vmul.f32 %v1765, %v2259
    %v2606 = vmul.f32 %v1766, %v2264
    %v2607 = vmul.f32 %v1767, %v2264
    %v2608 = vmul.f32 %v1768, %v2269
    %v2609 = vmul.f32 %v1769, %v2269
    %v2610 = vmul.f32 %v1770, %v2274
    %v2611 = vmul.f32 %v1771, %v2274
    %v2612 = vmul.f32 %v1772, %v2279
    %v2613 = vmul.f32 %v1773, %v2279
    %v2614 = vmul.f32 %v1774, %v2284
    %v2615 = vmul.f32 %v1775, %v2284
    %v2616 = vmul.f32 %v1776, %v2289
    %v2617 = vmul.f32 %v1777, %v2289
    %v2618 = vmul.f32 %v1778, %v2294
    %v2619 = vmul.f32 %v1779, %v2294
    %v2620 = vmul.f32 %v1780, %v2299
    %v2621 = vmul.f32 %v1781, %v2299
    %v2622 = vmul.f32 %v1782, %v2304
    %v2623 = vmul.f32 %v1783, %v2304
    %v2624 = vmul.f32 %v1784, %v2309
    %v2625 = vmul.f32 %v1785, %v2309
    %v2626 = vmul.f32 %v1786, %v2314
    %v2627 = vmul.f32 %v1787, %v2314
    %v2628 = vmul.f32 %v1788, %v2319
    %v2629 = vmul.f32 %v1789, %v2319
    %v2630 = vmul.f32 %v1790, %v2324
    %v2631 = vmul.f32 %v1791, %v2324
    %v2632 = vmul.f32 %v1792, %v2329
    %v2633 = vmul.f32 %v1793, %v2329
    %v2634 = vmul.f32 %v1794, %v2334
    %v2635 = vmul.f32 %v1795, %v2334
    %v2636 = vmul.f32 %v1796, %v2339
    %v2637 = vmul.f32 %v1797, %v2339
    %v2638 = vmul.f32 %v1798, %v2344
    %v2639 = vmul.f32 %v1799, %v2344
    %v2640 = vmul.f32 %v1800, %v2349
    %v2641 = vmul.f32 %v1801, %v2349
    %v2642 = vmul.f32 %v1802, %v2354
    %v2643 = vmul.f32 %v1803, %v2354
    %v2644 = vmul.f32 %v1804, %v2359
    %v2645 = vmul.f32 %v1805, %v2359
    %v2646 = vmul.f32 %v1806, %v2364
    %v2647 = vmul.f32 %v1807, %v2364
    %v2648 = vmul.f32 %v1808, %v2369
    %v2649 = vmul.f32 %v1809, %v2369
    %v2650 = vmul.f32 %v1810, %v2374
    %v2651 = vmul.f32 %v1811, %v2374
    %v2652 = vmul.f32 %v1812, %v2379
    %v2653 = vmul.f32 %v1813, %v2379
    %v2654 = vmul.f32 %v1814, %v2384
    %v2655 = vmul.f32 %v1815, %v2384
    %v2656 = vmul.f32 %v1816, %v2389
    %v2657 = vmul.f32 %v1817, %v2389
    %v2658 = vmul.f32 %v1818, %v2394
    %v2659 = vmul.f32 %v1819, %v2394
    %v2660 = vmul.f32 %v1820, %v2399
    %v2661 = vmul.f32 %v1821, %v2399
    %v2662 = vmul.f32 %v1822, %v2404
    %v2663 = vmul.f32 %v1823, %v2404
    %v2664 = vmul.f32 %v1824, %v2409
    %v2665 = vmul.f32 %v1825, %v2409
    %v2666 = vmul.f32 %v1826, %v2414
    %v2667 = vmul.f32 %v1827, %v2414
    %v2668 = vmul.f32 %v1828, %v2419
    %v2669 = vmul.f32 %v1829, %v2419
    %v2670 = vmul.f32 %v1830, %v2424
    %v2671 = vmul.f32 %v1831, %v2424
    %v2672 = vmul.f32 %v1832, %v2429
    %v2673 = vmul.f32 %v1833, %v2429
    %v2674 = vmul.f32 %v1834, %v2434
    %v2675 = vmul.f32 %v1835, %v2434
    %v2676 = vld [vmem:[%s4] sm:$0xff]
    %v2677 = vld [vmem:[%s4 + $0x8] sm:$0xff]
    %v2678 = vld [vmem:[%s4 + $0x10] sm:$0xff]
    %v2679 = vld [vmem:[%s4 + $0x18] sm:$0xff]
    %v2680 = vld [vmem:[%s4 + $0x20] sm:$0xff]
    %v2681 = vld [vmem:[%s4 + $0x28] sm:$0xff]
    %v2682 = vld [vmem:[%s4 + $0x30] sm:$0xff]
    %v2683 = vld [vmem:[%s4 + $0x38] sm:$0xff]
    %v2684 = vld [vmem:[%s4 + $0x40] sm:$0xff]
    %v2685 = vld [vmem:[%s4 + $0x48] sm:$0xff]
    %v2686 = vld [vmem:[%s4 + $0x50] sm:$0xff]
    %v2687 = vld [vmem:[%s4 + $0x58] sm:$0xff]
    %v2688 = vld [vmem:[%s4 + $0x60] sm:$0xff]
    %v2689 = vld [vmem:[%s4 + $0x68] sm:$0xff]
    %v2690 = vld [vmem:[%s4 + $0x70] sm:$0xff]
    %v2691 = vld [vmem:[%s4 + $0x78] sm:$0xff]
    %v2692 = vld [vmem:[%s4 + $0x80] sm:$0xff]
    %v2693 = vld [vmem:[%s4 + $0x88] sm:$0xff]
    %v2694 = vld [vmem:[%s4 + $0x90] sm:$0xff]
    %v2695 = vld [vmem:[%s4 + $0x98] sm:$0xff]
    %v2696 = vld [vmem:[%s4 + $0xa0] sm:$0xff]
    %v2697 = vld [vmem:[%s4 + $0xa8] sm:$0xff]
    %v2698 = vld [vmem:[%s4 + $0xb0] sm:$0xff]
    %v2699 = vld [vmem:[%s4 + $0xb8] sm:$0xff]
    %v2700 = vld [vmem:[%s4 + $0xc0] sm:$0xff]
    %v2701 = vld [vmem:[%s4 + $0xc8] sm:$0xff]
    %v2702 = vld [vmem:[%s4 + $0xd0] sm:$0xff]
    %v2703 = vld [vmem:[%s4 + $0xd8] sm:$0xff]
    %v2704 = vld [vmem:[%s4 + $0xe0] sm:$0xff]
    %v2705 = vld [vmem:[%s4 + $0xe8] sm:$0xff]
    %v2706 = vld [vmem:[%s4 + $0xf0] sm:$0xff]
    %v2707 = vld [vmem:[%s4 + $0xf8] sm:$0xff]
    %v2708 = vld [vmem:[%s4 + $0x100] sm:$0xff]
    %v2709 = vld [vmem:[%s4 + $0x108] sm:$0xff]
    %v2710 = vld [vmem:[%s4 + $0x110] sm:$0xff]
    %v2711 = vld [vmem:[%s4 + $0x118] sm:$0xff]
    %v2712 = vld [vmem:[%s4 + $0x120] sm:$0xff]
    %v2713 = vld [vmem:[%s4 + $0x128] sm:$0xff]
    %v2714 = vld [vmem:[%s4 + $0x130] sm:$0xff]
    %v2715 = vld [vmem:[%s4 + $0x138] sm:$0xff]
    %v2716 = vld [vmem:[%s4 + $0x140] sm:$0xff]
    %v2717 = vld [vmem:[%s4 + $0x148] sm:$0xff]
    %v2718 = vld [vmem:[%s4 + $0x150] sm:$0xff]
    %v2719 = vld [vmem:[%s4 + $0x158] sm:$0xff]
    %v2720 = vld [vmem:[%s4 + $0x160] sm:$0xff]
    %v2721 = vld [vmem:[%s4 + $0x168] sm:$0xff]
    %v2722 = vld [vmem:[%s4 + $0x170] sm:$0xff]
    %v2723 = vld [vmem:[%s4 + $0x178] sm:$0xff]
    %v2724 = vld [vmem:[%s4 + $0x180] sm:$0xff]
    %v2725 = vld [vmem:[%s4 + $0x188] sm:$0xff]
    %v2726 = vld [vmem:[%s4 + $0x190] sm:$0xff]
    %v2727 = vld [vmem:[%s4 + $0x198] sm:$0xff]
    %v2728 = vld [vmem:[%s4 + $0x1a0] sm:$0xff]
    %v2729 = vld [vmem:[%s4 + $0x1a8] sm:$0xff]
    %v2730 = vld [vmem:[%s4 + $0x1b0] sm:$0xff]
    %v2731 = vld [vmem:[%s4 + $0x1b8] sm:$0xff]
    %v2732 = vld [vmem:[%s4 + $0x1c0] sm:$0xff]
    %v2733 = vld [vmem:[%s4 + $0x1c8] sm:$0xff]
    %v2734 = vld [vmem:[%s4 + $0x1d0] sm:$0xff]
    %v2735 = vld [vmem:[%s4 + $0x1d8] sm:$0xff]
    %v2736 = vld [vmem:[%s4 + $0x1e0] sm:$0xff]
    %v2737 = vld [vmem:[%s4 + $0x1e8] sm:$0xff]
    %v2738 = vld [vmem:[%s4 + $0x1f0] sm:$0xff]
    %v2739 = vld [vmem:[%s4 + $0x1f8] sm:$0xff]
    %v2740 = vld [vmem:[%s4 + $0x200] sm:$0xff]
    %v2741 = vld [vmem:[%s4 + $0x208] sm:$0xff]
    %v2742 = vld [vmem:[%s4 + $0x210] sm:$0xff]
    %v2743 = vld [vmem:[%s4 + $0x218] sm:$0xff]
    %v2744 = vld [vmem:[%s4 + $0x220] sm:$0xff]
    %v2745 = vld [vmem:[%s4 + $0x228] sm:$0xff]
    %v2746 = vld [vmem:[%s4 + $0x230] sm:$0xff]
    %v2747 = vld [vmem:[%s4 + $0x238] sm:$0xff]
    %v2748 = vld [vmem:[%s4 + $0x240] sm:$0xff]
    %v2749 = vld [vmem:[%s4 + $0x248] sm:$0xff]
    %v2750 = vld [vmem:[%s4 + $0x250] sm:$0xff]
    %v2751 = vld [vmem:[%s4 + $0x258] sm:$0xff]
    %v2752 = vld [vmem:[%s4 + $0x260] sm:$0xff]
    %v2753 = vld [vmem:[%s4 + $0x268] sm:$0xff]
    %v2754 = vld [vmem:[%s4 + $0x270] sm:$0xff]
    %v2755 = vld [vmem:[%s4 + $0x278] sm:$0xff]
    %v2756 = vld [vmem:[%s4 + $0x280] sm:$0xff]
    %v2757 = vld [vmem:[%s4 + $0x288] sm:$0xff]
    %v2758 = vld [vmem:[%s4 + $0x290] sm:$0xff]
    %v2759 = vld [vmem:[%s4 + $0x298] sm:$0xff]
    %v2760 = vld [vmem:[%s4 + $0x2a0] sm:$0xff]
    %v2761 = vld [vmem:[%s4 + $0x2a8] sm:$0xff]
    %v2762 = vld [vmem:[%s4 + $0x2b0] sm:$0xff]
    %v2763 = vld [vmem:[%s4 + $0x2b8] sm:$0xff]
    %v2764 = vld [vmem:[%s4 + $0x2c0] sm:$0xff]
    %v2765 = vld [vmem:[%s4 + $0x2c8] sm:$0xff]
    %v2766 = vld [vmem:[%s4 + $0x2d0] sm:$0xff]
    %v2767 = vld [vmem:[%s4 + $0x2d8] sm:$0xff]
    %v2768 = vld [vmem:[%s4 + $0x2e0] sm:$0xff]
    %v2769 = vld [vmem:[%s4 + $0x2e8] sm:$0xff]
    %v2770 = vld [vmem:[%s4 + $0x2f0] sm:$0xff]
    %v2771 = vld [vmem:[%s4 + $0x2f8] sm:$0xff]
    %v2772 = vld [vmem:[%s4 + $0x300] sm:$0xff]
    %v2773 = vld [vmem:[%s4 + $0x308] sm:$0xff]
    %v2774 = vld [vmem:[%s4 + $0x310] sm:$0xff]
    %v2775 = vld [vmem:[%s4 + $0x318] sm:$0xff]
    %v2776 = vld [vmem:[%s4 + $0x320] sm:$0xff]
    %v2777 = vld [vmem:[%s4 + $0x328] sm:$0xff]
    %v2778 = vld [vmem:[%s4 + $0x330] sm:$0xff]
    %v2779 = vld [vmem:[%s4 + $0x338] sm:$0xff]
    %v2780 = vld [vmem:[%s4 + $0x340] sm:$0xff]
    %v2781 = vld [vmem:[%s4 + $0x348] sm:$0xff]
    %v2782 = vld [vmem:[%s4 + $0x350] sm:$0xff]
    %v2783 = vld [vmem:[%s4 + $0x358] sm:$0xff]
    %v2784 = vld [vmem:[%s4 + $0x360] sm:$0xff]
    %v2785 = vld [vmem:[%s4 + $0x368] sm:$0xff]
    %v2786 = vld [vmem:[%s4 + $0x370] sm:$0xff]
    %v2787 = vld [vmem:[%s4 + $0x378] sm:$0xff]
    %v2788 = vld [vmem:[%s4 + $0x380] sm:$0xff]
    %v2789 = vld [vmem:[%s4 + $0x388] sm:$0xff]
    %v2790 = vld [vmem:[%s4 + $0x390] sm:$0xff]
    %v2791 = vld [vmem:[%s4 + $0x398] sm:$0xff]
    %v2792 = vld [vmem:[%s4 + $0x3a0] sm:$0xff]
    %v2793 = vld [vmem:[%s4 + $0x3a8] sm:$0xff]
    %v2794 = vld [vmem:[%s4 + $0x3b0] sm:$0xff]
    %v2795 = vld [vmem:[%s4 + $0x3b8] sm:$0xff]
    %v2796 = vld [vmem:[%s4 + $0x3c0] sm:$0xff]
    %v2797 = vld [vmem:[%s4 + $0x3c8] sm:$0xff]
    %v2798 = vld [vmem:[%s4 + $0x3d0] sm:$0xff]
    %v2799 = vld [vmem:[%s4 + $0x3d8] sm:$0xff]
    %v2800 = vld [vmem:[%s4 + $0x3e0] sm:$0xff]
    %v2801 = vld [vmem:[%s4 + $0x3e8] sm:$0xff]
    %v2802 = vld [vmem:[%s4 + $0x3f0] sm:$0xff]
    %v2803 = vld [vmem:[%s4 + $0x3f8] sm:$0xff]
    %v2804 = vld [vmem:[%s4 + $0x400] sm:$0xff]
    %v2805 = vld [vmem:[%s4 + $0x408] sm:$0xff]
    %v2806 = vld [vmem:[%s4 + $0x410] sm:$0xff]
    %v2807 = vld [vmem:[%s4 + $0x418] sm:$0xff]
    %v2808 = vld [vmem:[%s4 + $0x420] sm:$0xff]
    %v2809 = vld [vmem:[%s4 + $0x428] sm:$0xff]
    %v2810 = vld [vmem:[%s4 + $0x430] sm:$0xff]
    %v2811 = vld [vmem:[%s4 + $0x438] sm:$0xff]
    %v2812 = vld [vmem:[%s4 + $0x440] sm:$0xff]
    %v2813 = vld [vmem:[%s4 + $0x448] sm:$0xff]
    %v2814 = vld [vmem:[%s4 + $0x450] sm:$0xff]
    %v2815 = vld [vmem:[%s4 + $0x458] sm:$0xff]
    %v2816 = vld [vmem:[%s4 + $0x460] sm:$0xff]
    %v2817 = vld [vmem:[%s4 + $0x468] sm:$0xff]
    %v2818 = vld [vmem:[%s4 + $0x470] sm:$0xff]
    %v2819 = vld [vmem:[%s4 + $0x478] sm:$0xff]
    %v2820 = vld [vmem:[%s4 + $0x480] sm:$0xff]
    %v2821 = vld [vmem:[%s4 + $0x488] sm:$0xff]
    %v2822 = vld [vmem:[%s4 + $0x490] sm:$0xff]
    %v2823 = vld [vmem:[%s4 + $0x498] sm:$0xff]
    %v2824 = vld [vmem:[%s4 + $0x4a0] sm:$0xff]
    %v2825 = vld [vmem:[%s4 + $0x4a8] sm:$0xff]
    %v2826 = vld [vmem:[%s4 + $0x4b0] sm:$0xff]
    %v2827 = vld [vmem:[%s4 + $0x4b8] sm:$0xff]
    %v2828 = vld [vmem:[%s4 + $0x4c0] sm:$0xff]
    %v2829 = vld [vmem:[%s4 + $0x4c8] sm:$0xff]
    %v2830 = vld [vmem:[%s4 + $0x4d0] sm:$0xff]
    %v2831 = vld [vmem:[%s4 + $0x4d8] sm:$0xff]
    %v2832 = vld [vmem:[%s4 + $0x4e0] sm:$0xff]
    %v2833 = vld [vmem:[%s4 + $0x4e8] sm:$0xff]
    %v2834 = vld [vmem:[%s4 + $0x4f0] sm:$0xff]
    %v2835 = vld [vmem:[%s4 + $0x4f8] sm:$0xff]
    %v2836 = vpack.c.bf16 %v2684, %v2676
    %v2837 = vpack.c.bf16 %v2685, %v2677
    %v2838 = vpack.c.bf16 %v2686, %v2678
    %v2839 = vpack.c.bf16 %v2687, %v2679
    %v2840 = vpack.c.bf16 %v2688, %v2680
    %v2841 = vpack.c.bf16 %v2689, %v2681
    %v2842 = vpack.c.bf16 %v2690, %v2682
    %v2843 = vpack.c.bf16 %v2691, %v2683
    %v2844 = vpack.c.bf16 %v2700, %v2692
    %v2845 = vpack.c.bf16 %v2701, %v2693
    %v2846 = vpack.c.bf16 %v2702, %v2694
    %v2847 = vpack.c.bf16 %v2703, %v2695
    %v2848 = vpack.c.bf16 %v2704, %v2696
    %v2849 = vpack.c.bf16 %v2705, %v2697
    %v2850 = vpack.c.bf16 %v2706, %v2698
    %v2851 = vpack.c.bf16 %v2707, %v2699
    %v2852 = vpack.c.bf16 %v2716, %v2708
    %v2853 = vpack.c.bf16 %v2717, %v2709
    %v2854 = vpack.c.bf16 %v2718, %v2710
    %v2855 = vpack.c.bf16 %v2719, %v2711
    %v2856 = vpack.c.bf16 %v2720, %v2712
    %v2857 = vpack.c.bf16 %v2721, %v2713
    %v2858 = vpack.c.bf16 %v2722, %v2714
    %v2859 = vpack.c.bf16 %v2723, %v2715
    %v2860 = vpack.c.bf16 %v2732, %v2724
    %v2861 = vpack.c.bf16 %v2733, %v2725
    %v2862 = vpack.c.bf16 %v2734, %v2726
    %v2863 = vpack.c.bf16 %v2735, %v2727
    %v2864 = vpack.c.bf16 %v2736, %v2728
    %v2865 = vpack.c.bf16 %v2737, %v2729
    %v2866 = vpack.c.bf16 %v2738, %v2730
    %v2867 = vpack.c.bf16 %v2739, %v2731
    %v2868 = vpack.c.bf16 %v2748, %v2740
    %v2869 = vpack.c.bf16 %v2749, %v2741
    %v2870 = vpack.c.bf16 %v2750, %v2742
    %v2871 = vpack.c.bf16 %v2751, %v2743
    %v2872 = vpack.c.bf16 %v2752, %v2744
    %v2873 = vpack.c.bf16 %v2753, %v2745
    %v2874 = vpack.c.bf16 %v2754, %v2746
    %v2875 = vpack.c.bf16 %v2755, %v2747
    %v2876 = vpack.c.bf16 %v2764, %v2756
    %v2877 = vpack.c.bf16 %v2765, %v2757
    %v2878 = vpack.c.bf16 %v2766, %v2758
    %v2879 = vpack.c.bf16 %v2767, %v2759
    %v2880 = vpack.c.bf16 %v2768, %v2760
    %v2881 = vpack.c.bf16 %v2769, %v2761
    %v2882 = vpack.c.bf16 %v2770, %v2762
    %v2883 = vpack.c.bf16 %v2771, %v2763
    %v2884 = vpack.c.bf16 %v2780, %v2772
    %v2885 = vpack.c.bf16 %v2781, %v2773
    %v2886 = vpack.c.bf16 %v2782, %v2774
    %v2887 = vpack.c.bf16 %v2783, %v2775
    %v2888 = vpack.c.bf16 %v2784, %v2776
    %v2889 = vpack.c.bf16 %v2785, %v2777
    %v2890 = vpack.c.bf16 %v2786, %v2778
    %v2891 = vpack.c.bf16 %v2787, %v2779
    %v2892 = vpack.c.bf16 %v2796, %v2788
    %v2893 = vpack.c.bf16 %v2797, %v2789
    %v2894 = vpack.c.bf16 %v2798, %v2790
    %v2895 = vpack.c.bf16 %v2799, %v2791
    %v2896 = vpack.c.bf16 %v2800, %v2792
    %v2897 = vpack.c.bf16 %v2801, %v2793
    %v2898 = vpack.c.bf16 %v2802, %v2794
    %v2899 = vpack.c.bf16 %v2803, %v2795
    %v2900 = vpack.c.bf16 %v2812, %v2804
    %v2901 = vpack.c.bf16 %v2813, %v2805
    %v2902 = vpack.c.bf16 %v2814, %v2806
    %v2903 = vpack.c.bf16 %v2815, %v2807
    %v2904 = vpack.c.bf16 %v2816, %v2808
    %v2905 = vpack.c.bf16 %v2817, %v2809
    %v2906 = vpack.c.bf16 %v2818, %v2810
    %v2907 = vpack.c.bf16 %v2819, %v2811
    %v2908 = vpack.c.bf16 %v2828, %v2820
    %v2909 = vpack.c.bf16 %v2829, %v2821
    %v2910 = vpack.c.bf16 %v2830, %v2822
    %v2911 = vpack.c.bf16 %v2831, %v2823
    %v2912 = vpack.c.bf16 %v2832, %v2824
    %v2913 = vpack.c.bf16 %v2833, %v2825
    %v2914 = vpack.c.bf16 %v2834, %v2826
    %v2915 = vpack.c.bf16 %v2835, %v2827
    %v2916 = vpack.c.bf16 %v2438, %v2436
    %v2917 = vpack.c.bf16 %v2439, %v2437
    %v2918 = vpack.c.bf16 %v2442, %v2440
    %v2919 = vpack.c.bf16 %v2443, %v2441
    %v2920 = vpack.c.bf16 %v2446, %v2444
    %v2921 = vpack.c.bf16 %v2447, %v2445
    %v2922 = vpack.c.bf16 %v2450, %v2448
    %v2923 = vpack.c.bf16 %v2451, %v2449
    %v2924 = vpack.c.bf16 %v2454, %v2452
    %v2925 = vpack.c.bf16 %v2455, %v2453
    %v2926 = vpack.c.bf16 %v2458, %v2456
    %v2927 = vpack.c.bf16 %v2459, %v2457
    %v2928 = vpack.c.bf16 %v2462, %v2460
    %v2929 = vpack.c.bf16 %v2463, %v2461
    %v2930 = vpack.c.bf16 %v2466, %v2464
    %v2931 = vpack.c.bf16 %v2467, %v2465
    %v2932 = vpack.c.bf16 %v2470, %v2468
    %v2933 = vpack.c.bf16 %v2471, %v2469
    %v2934 = vpack.c.bf16 %v2474, %v2472
    %v2935 = vpack.c.bf16 %v2475, %v2473
    %v2936 = vpack.c.bf16 %v2478, %v2476
    %v2937 = vpack.c.bf16 %v2479, %v2477
    %v2938 = vpack.c.bf16 %v2482, %v2480
    %v2939 = vpack.c.bf16 %v2483, %v2481
    %v2940 = vpack.c.bf16 %v2486, %v2484
    %v2941 = vpack.c.bf16 %v2487, %v2485
    %v2942 = vpack.c.bf16 %v2490, %v2488
    %v2943 = vpack.c.bf16 %v2491, %v2489
    %v2944 = vpack.c.bf16 %v2494, %v2492
    %v2945 = vpack.c.bf16 %v2495, %v2493
    %v2946 = vpack.c.bf16 %v2498, %v2496
    %v2947 = vpack.c.bf16 %v2499, %v2497
    %v2948 = vpack.c.bf16 %v2502, %v2500
    %v2949 = vpack.c.bf16 %v2503, %v2501
    %v2950 = vpack.c.bf16 %v2506, %v2504
    %v2951 = vpack.c.bf16 %v2507, %v2505
    %v2952 = vpack.c.bf16 %v2510, %v2508
    %v2953 = vpack.c.bf16 %v2511, %v2509
    %v2954 = vpack.c.bf16 %v2514, %v2512
    %v2955 = vpack.c.bf16 %v2515, %v2513
    %v2956 = vpack.c.bf16 %v2518, %v2516
    %v2957 = vpack.c.bf16 %v2519, %v2517
    %v2958 = vpack.c.bf16 %v2522, %v2520
    %v2959 = vpack.c.bf16 %v2523, %v2521
    %v2960 = vpack.c.bf16 %v2526, %v2524
    %v2961 = vpack.c.bf16 %v2527, %v2525
    %v2962 = vpack.c.bf16 %v2530, %v2528
    %v2963 = vpack.c.bf16 %v2531, %v2529
    %v2964 = vpack.c.bf16 %v2534, %v2532
    %v2965 = vpack.c.bf16 %v2535, %v2533
    %v2966 = vpack.c.bf16 %v2538, %v2536
    %v2967 = vpack.c.bf16 %v2539, %v2537
    %v2968 = vpack.c.bf16 %v2542, %v2540
    %v2969 = vpack.c.bf16 %v2543, %v2541
    %v2970 = vpack.c.bf16 %v2546, %v2544
    %v2971 = vpack.c.bf16 %v2547, %v2545
    %v2972 = vpack.c.bf16 %v2550, %v2548
    %v2973 = vpack.c.bf16 %v2551, %v2549
    %v2974 = vpack.c.bf16 %v2554, %v2552
    %v2975 = vpack.c.bf16 %v2555, %v2553
    %v2976 = vpack.c.bf16 %v2558, %v2556
    %v2977 = vpack.c.bf16 %v2559, %v2557
    %v2978 = vpack.c.bf16 %v2562, %v2560
    %v2979 = vpack.c.bf16 %v2563, %v2561
    %v2980 = vpack.c.bf16 %v2566, %v2564
    %v2981 = vpack.c.bf16 %v2567, %v2565
    %v2982 = vpack.c.bf16 %v2570, %v2568
    %v2983 = vpack.c.bf16 %v2571, %v2569
    %v2984 = vpack.c.bf16 %v2574, %v2572
    %v2985 = vpack.c.bf16 %v2575, %v2573
    %v2986 = vpack.c.bf16 %v2578, %v2576
    %v2987 = vpack.c.bf16 %v2579, %v2577
    %v2988 = vpack.c.bf16 %v2582, %v2580
    %v2989 = vpack.c.bf16 %v2583, %v2581
    %v2990 = vpack.c.bf16 %v2586, %v2584
    %v2991 = vpack.c.bf16 %v2587, %v2585
    %v2992 = vpack.c.bf16 %v2590, %v2588
    %v2993 = vpack.c.bf16 %v2591, %v2589
    %v2994 = vpack.c.bf16 %v2594, %v2592
    %v2995 = vpack.c.bf16 %v2595, %v2593
    %v2996 = vpack.c.bf16 %v2598, %v2596
    %v2997 = vpack.c.bf16 %v2599, %v2597
    %v2998 = vpack.c.bf16 %v2602, %v2600
    %v2999 = vpack.c.bf16 %v2603, %v2601
    %v3000 = vpack.c.bf16 %v2606, %v2604
    %v3001 = vpack.c.bf16 %v2607, %v2605
    %v3002 = vpack.c.bf16 %v2610, %v2608
    %v3003 = vpack.c.bf16 %v2611, %v2609
    %v3004 = vpack.c.bf16 %v2614, %v2612
    %v3005 = vpack.c.bf16 %v2615, %v2613
    %v3006 = vpack.c.bf16 %v2618, %v2616
    %v3007 = vpack.c.bf16 %v2619, %v2617
    %v3008 = vpack.c.bf16 %v2622, %v2620
    %v3009 = vpack.c.bf16 %v2623, %v2621
    %v3010 = vpack.c.bf16 %v2626, %v2624
    %v3011 = vpack.c.bf16 %v2627, %v2625
    %v3012 = vpack.c.bf16 %v2630, %v2628
    %v3013 = vpack.c.bf16 %v2631, %v2629
    %v3014 = vpack.c.bf16 %v2634, %v2632
    %v3015 = vpack.c.bf16 %v2635, %v2633
    %v3016 = vpack.c.bf16 %v2638, %v2636
    %v3017 = vpack.c.bf16 %v2639, %v2637
    %v3018 = vpack.c.bf16 %v2642, %v2640
    %v3019 = vpack.c.bf16 %v2643, %v2641
    %v3020 = vpack.c.bf16 %v2646, %v2644
    %v3021 = vpack.c.bf16 %v2647, %v2645
    %v3022 = vpack.c.bf16 %v2650, %v2648
    %v3023 = vpack.c.bf16 %v2651, %v2649
    %v3024 = vpack.c.bf16 %v2654, %v2652
    %v3025 = vpack.c.bf16 %v2655, %v2653
    %v3026 = vpack.c.bf16 %v2658, %v2656
    %v3027 = vpack.c.bf16 %v2659, %v2657
    %v3028 = vpack.c.bf16 %v2662, %v2660
    %v3029 = vpack.c.bf16 %v2663, %v2661
    %v3030 = vpack.c.bf16 %v2666, %v2664
    %v3031 = vpack.c.bf16 %v2667, %v2665
    %v3032 = vpack.c.bf16 %v2670, %v2668
    %v3033 = vpack.c.bf16 %v2671, %v2669
    %v3034 = vpack.c.bf16 %v2674, %v2672
    %v3035 = vpack.c.bf16 %v2675, %v2673
    %vm3036 = vcmask 523264
    %v3038 = vsel %vm3036, %v2843, 0
    %v3041 = vsel %vm3036, %v2851, 0
    %v3044 = vsel %vm3036, %v2859, 0
    %v3047 = vsel %vm3036, %v2867, 0
    %v3050 = vsel %vm3036, %v2875, 0
    %v3053 = vsel %vm3036, %v2883, 0
    %v3056 = vsel %vm3036, %v2891, 0
    %v3059 = vsel %vm3036, %v2899, 0
    %v3062 = vsel %vm3036, %v2907, 0
    %v3065 = vsel %vm3036, %v2915, 0
    %3067 = vmatprep.subr.bf16.mxu0 %v2917
    %3068 = vmatpush1.bf16.msra.mxu0 %v2916
    %3069 = vmatprep.subr.bf16.mxu0 %v2919
    %3070 = vmatpush1.bf16.msra.mxu0 %v2918
    %3071 = vmatprep.subr.bf16.mxu0 %v2921
    %3072 = vmatpush1.bf16.msra.mxu0 %v2920
    %3073 = vmatprep.subr.bf16.mxu0 %v2923
    %3074 = vmatpush1.bf16.msra.mxu0 %v2922
    %3075 = vmatprep.subr.bf16.mxu0 %v2925
    %3076 = vmatpush1.bf16.msra.mxu0 %v2924
    %3077 = vmatprep.subr.bf16.mxu0 %v2927
    %3078 = vmatpush1.bf16.msra.mxu0 %v2926
    %3079 = vmatprep.subr.bf16.mxu0 %v2929
    %3080 = vmatpush1.bf16.msra.mxu0 %v2928
    %3081 = vmatprep.subr.bf16.mxu0 %v2931
    %3082 = vmatpush1.bf16.msra.mxu0 %v2930
    %3083 = vmatprep.subr.bf16.mxu0 %v2933
    %3084 = vmatpush1.bf16.msra.mxu0 %v2932
    %3085 = vmatprep.subr.bf16.mxu0 %v2935
    %3086 = vmatpush1.bf16.msra.mxu0 %v2934
    %3087 = vmatprep.subr.bf16.mxu0 %v2937
    %3088 = vmatpush1.bf16.msra.mxu0 %v2936
    %3089 = vmatprep.subr.bf16.mxu0 %v2939
    %3090 = vmatpush1.bf16.msra.mxu0 %v2938
    %3091 = vmatprep.subr.bf16.mxu0 %v2941
    %3092 = vmatpush1.bf16.msra.mxu0 %v2940
    %3093 = vmatprep.subr.bf16.mxu0 %v2943
    %3094 = vmatpush1.bf16.msra.mxu0 %v2942
    %3095 = vmatprep.subr.bf16.mxu0 %v2945
    %3096 = vmatpush1.bf16.msra.mxu0 %v2944
    %3097 = vmatprep.subr.bf16.mxu0 %v2947
    %3098 = vmatpush1.bf16.msra.mxu0 %v2946
    %3099 = vmatprep.mubr.bf16.mxu0 %v2837
    %3100 = vmatmul.mubr.bf16.gmra.mrb[0].mxu0 %v2836
    %v3101 = vpop.f32.mrb[0].mxu0
    %v3102 = vadd.f32 0.0, %v3101
    %v3103 = vpop.f32.mrb[0].mxu0
    %v3104 = vadd.f32 0.0, %v3103
    %v3105 = vpop.f32.mrb[0].mxu0
    %v3106 = vadd.f32 0.0, %v3105
    %v3107 = vpop.f32.mrb[0].mxu0
    %v3108 = vadd.f32 0.0, %v3107
    %3109 = vmatprep.mubr.bf16.mxu0 %v2845
    %3110 = vmatmul.mubr.bf16.gmra.mrb[0].mxu0 %v2844
    %v3111 = vpop.f32.mrb[0].mxu0
    %v3112 = vadd.f32 0.0, %v3111
    %v3113 = vpop.f32.mrb[0].mxu0
    %v3114 = vadd.f32 0.0, %v3113
    %v3115 = vpop.f32.mrb[0].mxu0
    %v3116 = vadd.f32 0.0, %v3115
    %v3117 = vpop.f32.mrb[0].mxu0
    %v3118 = vadd.f32 0.0, %v3117
    %3119 = vmatprep.mubr.bf16.mxu0 %v2853
    %3120 = vmatmul.mubr.bf16.gmra.mrb[0].mxu0 %v2852
    %v3121 = vpop.f32.mrb[0].mxu0
    %v3122 = vadd.f32 0.0, %v3121
    %v3123 = vpop.f32.mrb[0].mxu0
    %v3124 = vadd.f32 0.0, %v3123
    %v3125 = vpop.f32.mrb[0].mxu0
    %v3126 = vadd.f32 0.0, %v3125
    %v3127 = vpop.f32.mrb[0].mxu0
    %v3128 = vadd.f32 0.0, %v3127
    %3129 = vmatprep.mubr.bf16.mxu0 %v2861
    %3130 = vmatmul.mubr.bf16.gmra.mrb[0].mxu0 %v2860
    %v3131 = vpop.f32.mrb[0].mxu0
    %v3132 = vadd.f32 0.0, %v3131
    %v3133 = vpop.f32.mrb[0].mxu0
    %v3134 = vadd.f32 0.0, %v3133
    %v3135 = vpop.f32.mrb[0].mxu0
    %v3136 = vadd.f32 0.0, %v3135
    %v3137 = vpop.f32.mrb[0].mxu0
    %v3138 = vadd.f32 0.0, %v3137
    %3139 = vmatprep.mubr.bf16.mxu0 %v2869
    %3140 = vmatmul.mubr.bf16.gmra.mrb[0].mxu0 %v2868
    %v3141 = vpop.f32.mrb[0].mxu0
    %v3142 = vadd.f32 0.0, %v3141
    %v3143 = vpop.f32.mrb[0].mxu0
    %v3144 = vadd.f32 0.0, %v3143
    %v3145 = vpop.f32.mrb[0].mxu0
    %v3146 = vadd.f32 0.0, %v3145
    %v3147 = vpop.f32.mrb[0].mxu0
    %v3148 = vadd.f32 0.0, %v3147
    %3149 = vmatprep.mubr.bf16.mxu0 %v2877
    %3150 = vmatmul.mubr.bf16.gmra.mrb[0].mxu0 %v2876
    %v3151 = vpop.f32.mrb[0].mxu0
    %v3152 = vadd.f32 0.0, %v3151
    %v3153 = vpop.f32.mrb[0].mxu0
    %v3154 = vadd.f32 0.0, %v3153
    %v3155 = vpop.f32.mrb[0].mxu0
    %v3156 = vadd.f32 0.0, %v3155
    %v3157 = vpop.f32.mrb[0].mxu0
    %v3158 = vadd.f32 0.0, %v3157
    %3159 = vmatprep.mubr.bf16.mxu0 %v2885
    %3160 = vmatmul.mubr.bf16.gmra.mrb[0].mxu0 %v2884
    %v3161 = vpop.f32.mrb[0].mxu0
    %v3162 = vadd.f32 0.0, %v3161
    %v3163 = vpop.f32.mrb[0].mxu0
    %v3164 = vadd.f32 0.0, %v3163
    %v3165 = vpop.f32.mrb[0].mxu0
    %v3166 = vadd.f32 0.0, %v3165
    %v3167 = vpop.f32.mrb[0].mxu0
    %v3168 = vadd.f32 0.0, %v3167
    %3169 = vmatprep.mubr.bf16.mxu0 %v2893
    %3170 = vmatmul.mubr.bf16.gmra.mrb[0].mxu0 %v2892
    %v3171 = vpop.f32.mrb[0].mxu0
    %v3172 = vadd.f32 0.0, %v3171
    %v3173 = vpop.f32.mrb[0].mxu0
    %v3174 = vadd.f32 0.0, %v3173
    %v3175 = vpop.f32.mrb[0].mxu0
    %v3176 = vadd.f32 0.0, %v3175
    %v3177 = vpop.f32.mrb[0].mxu0
    %v3178 = vadd.f32 0.0, %v3177
    %3179 = vmatprep.mubr.bf16.mxu0 %v2901
    %3180 = vmatmul.mubr.bf16.gmra.mrb[0].mxu0 %v2900
    %v3181 = vpop.f32.mrb[0].mxu0
    %v3182 = vadd.f32 0.0, %v3181
    %v3183 = vpop.f32.mrb[0].mxu0
    %v3184 = vadd.f32 0.0, %v3183
    %v3185 = vpop.f32.mrb[0].mxu0
    %v3186 = vadd.f32 0.0, %v3185
    %v3187 = vpop.f32.mrb[0].mxu0
    %v3188 = vadd.f32 0.0, %v3187
    %3189 = vmatprep.mubr.bf16.mxu0 %v2909
    %3190 = vmatmul.mubr.bf16.gmra.mrb[0].mxu0 %v2908
    %v3191 = vpop.f32.mrb[0].mxu0
    %v3192 = vadd.f32 0.0, %v3191
    %v3193 = vpop.f32.mrb[0].mxu0
    %v3194 = vadd.f32 0.0, %v3193
    %v3195 = vpop.f32.mrb[0].mxu0
    %v3196 = vadd.f32 0.0, %v3195
    %v3197 = vpop.f32.mrb[0].mxu0
    %v3198 = vadd.f32 0.0, %v3197
    %3199 = vdwg.mxu0
    %3200 = vmatprep.subr.bf16.mxu0 %v2949
    %3201 = vmatpush1.bf16.msra.mxu0 %v2948
    %3202 = vmatprep.subr.bf16.mxu0 %v2951
    %3203 = vmatpush1.bf16.msra.mxu0 %v2950
    %3204 = vmatprep.subr.bf16.mxu0 %v2953
    %3205 = vmatpush1.bf16.msra.mxu0 %v2952
    %3206 = vmatprep.subr.bf16.mxu0 %v2955
    %3207 = vmatpush1.bf16.msra.mxu0 %v2954
    %3208 = vmatprep.subr.bf16.mxu0 %v2957
    %3209 = vmatpush1.bf16.msra.mxu0 %v2956
    %3210 = vmatprep.subr.bf16.mxu0 %v2959
    %3211 = vmatpush1.bf16.msra.mxu0 %v2958
    %3212 = vmatprep.subr.bf16.mxu0 %v2961
    %3213 = vmatpush1.bf16.msra.mxu0 %v2960
    %3214 = vmatprep.subr.bf16.mxu0 %v2963
    %3215 = vmatpush1.bf16.msra.mxu0 %v2962
    %3216 = vmatprep.subr.bf16.mxu0 %v2965
    %3217 = vmatpush1.bf16.msra.mxu0 %v2964
    %3218 = vmatprep.subr.bf16.mxu0 %v2967
    %3219 = vmatpush1.bf16.msra.mxu0 %v2966
    %3220 = vmatprep.subr.bf16.mxu0 %v2969
    %3221 = vmatpush1.bf16.msra.mxu0 %v2968
    %3222 = vmatprep.subr.bf16.mxu0 %v2971
    %3223 = vmatpush1.bf16.msra.mxu0 %v2970
    %3224 = vmatprep.subr.bf16.mxu0 %v2973
    %3225 = vmatpush1.bf16.msra.mxu0 %v2972
    %3226 = vmatprep.subr.bf16.mxu0 %v2975
    %3227 = vmatpush1.bf16.msra.mxu0 %v2974
    %3228 = vmatprep.subr.bf16.mxu0 %v2977
    %3229 = vmatpush1.bf16.msra.mxu0 %v2976
    %3230 = vmatprep.subr.bf16.mxu0 %v2979
    %3231 = vmatpush1.bf16.msra.mxu0 %v2978
    %3232 = vmatprep.mubr.bf16.mxu0 %v2839
    %3233 = vmatmul.mubr.bf16.gmra.mrb[0].mxu0 %v2838
    %v3234 = vpop.f32.mrb[0].mxu0
    %v3235 = vadd.f32 %v3102, %v3234
    %v3236 = vpop.f32.mrb[0].mxu0
    %v3237 = vadd.f32 %v3104, %v3236
    %v3238 = vpop.f32.mrb[0].mxu0
    %v3239 = vadd.f32 %v3106, %v3238
    %v3240 = vpop.f32.mrb[0].mxu0
    %v3241 = vadd.f32 %v3108, %v3240
    %3242 = vmatprep.mubr.bf16.mxu0 %v2847
    %3243 = vmatmul.mubr.bf16.gmra.mrb[0].mxu0 %v2846
    %v3244 = vpop.f32.mrb[0].mxu0
    %v3245 = vadd.f32 %v3112, %v3244
    %v3246 = vpop.f32.mrb[0].mxu0
    %v3247 = vadd.f32 %v3114, %v3246
    %v3248 = vpop.f32.mrb[0].mxu0
    %v3249 = vadd.f32 %v3116, %v3248
    %v3250 = vpop.f32.mrb[0].mxu0
    %v3251 = vadd.f32 %v3118, %v3250
    %3252 = vmatprep.mubr.bf16.mxu0 %v2855
    %3253 = vmatmul.mubr.bf16.gmra.mrb[0].mxu0 %v2854
    %v3254 = vpop.f32.mrb[0].mxu0
    %v3255 = vadd.f32 %v3122, %v3254
    %v3256 = vpop.f32.mrb[0].mxu0
    %v3257 = vadd.f32 %v3124, %v3256
    %v3258 = vpop.f32.mrb[0].mxu0
    %v3259 = vadd.f32 %v3126, %v3258
    %v3260 = vpop.f32.mrb[0].mxu0
    %v3261 = vadd.f32 %v3128, %v3260
    %3262 = vmatprep.mubr.bf16.mxu0 %v2863
    %3263 = vmatmul.mubr.bf16.gmra.mrb[0].mxu0 %v2862
    %v3264 = vpop.f32.mrb[0].mxu0
    %v3265 = vadd.f32 %v3132, %v3264
    %v3266 = vpop.f32.mrb[0].mxu0
    %v3267 = vadd.f32 %v3134, %v3266
    %v3268 = vpop.f32.mrb[0].mxu0
    %v3269 = vadd.f32 %v3136, %v3268
    %v3270 = vpop.f32.mrb[0].mxu0
    %v3271 = vadd.f32 %v3138, %v3270
    %3272 = vmatprep.mubr.bf16.mxu0 %v2871
    %3273 = vmatmul.mubr.bf16.gmra.mrb[0].mxu0 %v2870
    %v3274 = vpop.f32.mrb[0].mxu0
    %v3275 = vadd.f32 %v3142, %v3274
    %v3276 = vpop.f32.mrb[0].mxu0
    %v3277 = vadd.f32 %v3144, %v3276
    %v3278 = vpop.f32.mrb[0].mxu0
    %v3279 = vadd.f32 %v3146, %v3278
    %v3280 = vpop.f32.mrb[0].mxu0
    %v3281 = vadd.f32 %v3148, %v3280
    %3282 = vmatprep.mubr.bf16.mxu0 %v2879
    %3283 = vmatmul.mubr.bf16.gmra.mrb[0].mxu0 %v2878
    %v3284 = vpop.f32.mrb[0].mxu0
    %v3285 = vadd.f32 %v3152, %v3284
    %v3286 = vpop.f32.mrb[0].mxu0
    %v3287 = vadd.f32 %v3154, %v3286
    %v3288 = vpop.f32.mrb[0].mxu0
    %v3289 = vadd.f32 %v3156, %v3288
    %v3290 = vpop.f32.mrb[0].mxu0
    %v3291 = vadd.f32 %v3158, %v3290
    %3292 = vmatprep.mubr.bf16.mxu0 %v2887
    %3293 = vmatmul.mubr.bf16.gmra.mrb[0].mxu0 %v2886
    %v3294 = vpop.f32.mrb[0].mxu0
    %v3295 = vadd.f32 %v3162, %v3294
    %v3296 = vpop.f32.mrb[0].mxu0
    %v3297 = vadd.f32 %v3164, %v3296
    %v3298 = vpop.f32.mrb[0].mxu0
    %v3299 = vadd.f32 %v3166, %v3298
    %v3300 = vpop.f32.mrb[0].mxu0
    %v3301 = vadd.f32 %v3168, %v3300
    %3302 = vmatprep.mubr.bf16.mxu0 %v2895
    %3303 = vmatmul.mubr.bf16.gmra.mrb[0].mxu0 %v2894
    %v3304 = vpop.f32.mrb[0].mxu0
    %v3305 = vadd.f32 %v3172, %v3304
    %v3306 = vpop.f32.mrb[0].mxu0
    %v3307 = vadd.f32 %v3174, %v3306
    %v3308 = vpop.f32.mrb[0].mxu0
    %v3309 = vadd.f32 %v3176, %v3308
    %v3310 = vpop.f32.mrb[0].mxu0
    %v3311 = vadd.f32 %v3178, %v3310
    %3312 = vmatprep.mubr.bf16.mxu0 %v2903
    %3313 = vmatmul.mubr.bf16.gmra.mrb[0].mxu0 %v2902
    %v3314 = vpop.f32.mrb[0].mxu0
    %v3315 = vadd.f32 %v3182, %v3314
    %v3316 = vpop.f32.mrb[0].mxu0
    %v3317 = vadd.f32 %v3184, %v3316
    %v3318 = vpop.f32.mrb[0].mxu0
    %v3319 = vadd.f32 %v3186, %v3318
    %v3320 = vpop.f32.mrb[0].mxu0
    %v3321 = vadd.f32 %v3188, %v3320
    %3322 = vmatprep.mubr.bf16.mxu0 %v2911
    %3323 = vmatmul.mubr.bf16.gmra.mrb[0].mxu0 %v2910
    %v3324 = vpop.f32.mrb[0].mxu0
    %v3325 = vadd.f32 %v3192, %v3324
    %v3326 = vpop.f32.mrb[0].mxu0
    %v3327 = vadd.f32 %v3194, %v3326
    %v3328 = vpop.f32.mrb[0].mxu0
    %v3329 = vadd.f32 %v3196, %v3328
    %v3330 = vpop.f32.mrb[0].mxu0
    %v3331 = vadd.f32 %v3198, %v3330
    %3332 = vdwg.mxu0
    %3333 = vmatprep.subr.bf16.mxu0 %v2981
    %3334 = vmatpush1.bf16.msra.mxu0 %v2980
    %3335 = vmatprep.subr.bf16.mxu0 %v2983
    %3336 = vmatpush1.bf16.msra.mxu0 %v2982
    %3337 = vmatprep.subr.bf16.mxu0 %v2985
    %3338 = vmatpush1.bf16.msra.mxu0 %v2984
    %3339 = vmatprep.subr.bf16.mxu0 %v2987
    %3340 = vmatpush1.bf16.msra.mxu0 %v2986
    %3341 = vmatprep.subr.bf16.mxu0 %v2989
    %3342 = vmatpush1.bf16.msra.mxu0 %v2988
    %3343 = vmatprep.subr.bf16.mxu0 %v2991
    %3344 = vmatpush1.bf16.msra.mxu0 %v2990
    %3345 = vmatprep.subr.bf16.mxu0 %v2993
    %3346 = vmatpush1.bf16.msra.mxu0 %v2992
    %3347 = vmatprep.subr.bf16.mxu0 %v2995
    %3348 = vmatpush1.bf16.msra.mxu0 %v2994
    %3349 = vmatprep.subr.bf16.mxu0 %v2997
    %3350 = vmatpush1.bf16.msra.mxu0 %v2996
    %3351 = vmatprep.subr.bf16.mxu0 %v2999
    %3352 = vmatpush1.bf16.msra.mxu0 %v2998
    %3353 = vmatprep.subr.bf16.mxu0 %v3001
    %3354 = vmatpush1.bf16.msra.mxu0 %v3000
    %3355 = vmatprep.subr.bf16.mxu0 %v3003
    %3356 = vmatpush1.bf16.msra.mxu0 %v3002
    %3357 = vmatprep.subr.bf16.mxu0 %v3005
    %3358 = vmatpush1.bf16.msra.mxu0 %v3004
    %3359 = vmatprep.subr.bf16.mxu0 %v3007
    %3360 = vmatpush1.bf16.msra.mxu0 %v3006
    %3361 = vmatprep.subr.bf16.mxu0 %v3009
    %3362 = vmatpush1.bf16.msra.mxu0 %v3008
    %3363 = vmatprep.subr.bf16.mxu0 %v3011
    %3364 = vmatpush1.bf16.msra.mxu0 %v3010
    %3365 = vmatprep.mubr.bf16.mxu0 %v2841
    %3366 = vmatmul.mubr.bf16.gmra.mrb[0].mxu0 %v2840
    %v3367 = vpop.f32.mrb[0].mxu0
    %v3368 = vadd.f32 %v3235, %v3367
    %v3369 = vpop.f32.mrb[0].mxu0
    %v3370 = vadd.f32 %v3237, %v3369
    %v3371 = vpop.f32.mrb[0].mxu0
    %v3372 = vadd.f32 %v3239, %v3371
    %v3373 = vpop.f32.mrb[0].mxu0
    %v3374 = vadd.f32 %v3241, %v3373
    %3375 = vmatprep.mubr.bf16.mxu0 %v2849
    %3376 = vmatmul.mubr.bf16.gmra.mrb[0].mxu0 %v2848
    %v3377 = vpop.f32.mrb[0].mxu0
    %v3378 = vadd.f32 %v3245, %v3377
    %v3379 = vpop.f32.mrb[0].mxu0
    %v3380 = vadd.f32 %v3247, %v3379
    %v3381 = vpop.f32.mrb[0].mxu0
    %v3382 = vadd.f32 %v3249, %v3381
    %v3383 = vpop.f32.mrb[0].mxu0
    %v3384 = vadd.f32 %v3251, %v3383
    %3385 = vmatprep.mubr.bf16.mxu0 %v2857
    %3386 = vmatmul.mubr.bf16.gmra.mrb[0].mxu0 %v2856
    %v3387 = vpop.f32.mrb[0].mxu0
    %v3388 = vadd.f32 %v3255, %v3387
    %v3389 = vpop.f32.mrb[0].mxu0
    %v3390 = vadd.f32 %v3257, %v3389
    %v3391 = vpop.f32.mrb[0].mxu0
    %v3392 = vadd.f32 %v3259, %v3391
    %v3393 = vpop.f32.mrb[0].mxu0
    %v3394 = vadd.f32 %v3261, %v3393
    %3395 = vmatprep.mubr.bf16.mxu0 %v2865
    %3396 = vmatmul.mubr.bf16.gmra.mrb[0].mxu0 %v2864
    %v3397 = vpop.f32.mrb[0].mxu0
    %v3398 = vadd.f32 %v3265, %v3397
    %v3399 = vpop.f32.mrb[0].mxu0
    %v3400 = vadd.f32 %v3267, %v3399
    %v3401 = vpop.f32.mrb[0].mxu0
    %v3402 = vadd.f32 %v3269, %v3401
    %v3403 = vpop.f32.mrb[0].mxu0
    %v3404 = vadd.f32 %v3271, %v3403
    %3405 = vmatprep.mubr.bf16.mxu0 %v2873
    %3406 = vmatmul.mubr.bf16.gmra.mrb[0].mxu0 %v2872
    %v3407 = vpop.f32.mrb[0].mxu0
    %v3408 = vadd.f32 %v3275, %v3407
    %v3409 = vpop.f32.mrb[0].mxu0
    %v3410 = vadd.f32 %v3277, %v3409
    %v3411 = vpop.f32.mrb[0].mxu0
    %v3412 = vadd.f32 %v3279, %v3411
    %v3413 = vpop.f32.mrb[0].mxu0
    %v3414 = vadd.f32 %v3281, %v3413
    %3415 = vmatprep.mubr.bf16.mxu0 %v2881
    %3416 = vmatmul.mubr.bf16.gmra.mrb[0].mxu0 %v2880
    %v3417 = vpop.f32.mrb[0].mxu0
    %v3418 = vadd.f32 %v3285, %v3417
    %v3419 = vpop.f32.mrb[0].mxu0
    %v3420 = vadd.f32 %v3287, %v3419
    %v3421 = vpop.f32.mrb[0].mxu0
    %v3422 = vadd.f32 %v3289, %v3421
    %v3423 = vpop.f32.mrb[0].mxu0
    %v3424 = vadd.f32 %v3291, %v3423
    %3425 = vmatprep.mubr.bf16.mxu0 %v2889
    %3426 = vmatmul.mubr.bf16.gmra.mrb[0].mxu0 %v2888
    %v3427 = vpop.f32.mrb[0].mxu0
    %v3428 = vadd.f32 %v3295, %v3427
    %v3429 = vpop.f32.mrb[0].mxu0
    %v3430 = vadd.f32 %v3297, %v3429
    %v3431 = vpop.f32.mrb[0].mxu0
    %v3432 = vadd.f32 %v3299, %v3431
    %v3433 = vpop.f32.mrb[0].mxu0
    %v3434 = vadd.f32 %v3301, %v3433
    %3435 = vmatprep.mubr.bf16.mxu0 %v2897
    %3436 = vmatmul.mubr.bf16.gmra.mrb[0].mxu0 %v2896
    %v3437 = vpop.f32.mrb[0].mxu0
    %v3438 = vadd.f32 %v3305, %v3437
    %v3439 = vpop.f32.mrb[0].mxu0
    %v3440 = vadd.f32 %v3307, %v3439
    %v3441 = vpop.f32.mrb[0].mxu0
    %v3442 = vadd.f32 %v3309, %v3441
    %v3443 = vpop.f32.mrb[0].mxu0
    %v3444 = vadd.f32 %v3311, %v3443
    %3445 = vmatprep.mubr.bf16.mxu0 %v2905
    %3446 = vmatmul.mubr.bf16.gmra.mrb[0].mxu0 %v2904
    %v3447 = vpop.f32.mrb[0].mxu0
    %v3448 = vadd.f32 %v3315, %v3447
    %v3449 = vpop.f32.mrb[0].mxu0
    %v3450 = vadd.f32 %v3317, %v3449
    %v3451 = vpop.f32.mrb[0].mxu0
    %v3452 = vadd.f32 %v3319, %v3451
    %v3453 = vpop.f32.mrb[0].mxu0
    %v3454 = vadd.f32 %v3321, %v3453
    %3455 = vmatprep.mubr.bf16.mxu0 %v2913
    %3456 = vmatmul.mubr.bf16.gmra.mrb[0].mxu0 %v2912
    %v3457 = vpop.f32.mrb[0].mxu0
    %v3458 = vadd.f32 %v3325, %v3457
    %v3459 = vpop.f32.mrb[0].mxu0
    %v3460 = vadd.f32 %v3327, %v3459
    %v3461 = vpop.f32.mrb[0].mxu0
    %v3462 = vadd.f32 %v3329, %v3461
    %v3463 = vpop.f32.mrb[0].mxu0
    %v3464 = vadd.f32 %v3331, %v3463
    %3465 = vdwg.mxu0
    %3466 = vmatprep.subr.bf16.mxu0 %v3013
    %3467 = vmatpush1.bf16.msra.mxu0 %v3012
    %3468 = vmatprep.subr.bf16.mxu0 %v3015
    %3469 = vmatpush1.bf16.msra.mxu0 %v3014
    %3470 = vmatprep.subr.bf16.mxu0 %v3017
    %3471 = vmatpush1.bf16.msra.mxu0 %v3016
    %3472 = vmatprep.subr.bf16.mxu0 %v3019
    %3473 = vmatpush1.bf16.msra.mxu0 %v3018
    %3474 = vmatprep.subr.bf16.mxu0 %v3021
    %3475 = vmatpush1.bf16.msra.mxu0 %v3020
    %3476 = vmatprep.subr.bf16.mxu0 %v3023
    %3477 = vmatpush1.bf16.msra.mxu0 %v3022
    %3478 = vmatprep.subr.bf16.mxu0 %v3025
    %3479 = vmatpush1.bf16.msra.mxu0 %v3024
    %3480 = vmatprep.subr.bf16.mxu0 %v3027
    %3481 = vmatpush1.bf16.msra.mxu0 %v3026
    %3482 = vmatprep.subr.bf16.mxu0 %v3029
    %3483 = vmatpush1.bf16.msra.mxu0 %v3028
    %3484 = vmatprep.subr.bf16.mxu0 %v3031
    %3485 = vmatpush1.bf16.msra.mxu0 %v3030
    %3486 = vmatprep.subr.bf16.mxu0 %v3033
    %3487 = vmatpush1.bf16.msra.mxu0 %v3032
    %3488 = vmatprep.subr.bf16.mxu0 %v3035
    %3489 = vmatpush1.bf16.msra.mxu0 %v3034
    %3490 = vmatprep.subr.bf16.mxu0 0
    %3491 = vmatpush1.bf16.msra.mxu0 0
    %3492 = vmatprep.subr.bf16.mxu0 0
    %3493 = vmatpush1.bf16.msra.mxu0 0
    %3494 = vmatprep.subr.bf16.mxu0 0
    %3495 = vmatpush1.bf16.msra.mxu0 0
    %3496 = vmatprep.subr.bf16.mxu0 0
    %3497 = vmatpush1.bf16.msra.mxu0 0
    %3498 = vmatprep.mubr.bf16.mxu0 %v3038
    %3499 = vmatmul.mubr.bf16.gmra.mrb[0].mxu0 %v2842
    %v3500 = vpop.f32.mrb[0].mxu0
    %v3501 = vadd.f32 %v3368, %v3500
    %v3502 = vpop.f32.mrb[0].mxu0
    %v3503 = vadd.f32 %v3370, %v3502
    %v3504 = vpop.f32.mrb[0].mxu0
    %v3505 = vadd.f32 %v3372, %v3504
    %v3506 = vpop.f32.mrb[0].mxu0
    %v3507 = vadd.f32 %v3374, %v3506
    %3508 = vmatprep.mubr.bf16.mxu0 %v3041
    %3509 = vmatmul.mubr.bf16.gmra.mrb[0].mxu0 %v2850
    %v3510 = vpop.f32.mrb[0].mxu0
    %v3511 = vadd.f32 %v3378, %v3510
    %v3512 = vpop.f32.mrb[0].mxu0
    %v3513 = vadd.f32 %v3380, %v3512
    %v3514 = vpop.f32.mrb[0].mxu0
    %v3515 = vadd.f32 %v3382, %v3514
    %v3516 = vpop.f32.mrb[0].mxu0
    %v3517 = vadd.f32 %v3384, %v3516
    %3518 = vmatprep.mubr.bf16.mxu0 %v3044
    %3519 = vmatmul.mubr.bf16.gmra.mrb[0].mxu0 %v2858
    %v3520 = vpop.f32.mrb[0].mxu0
    %v3521 = vadd.f32 %v3388, %v3520
    %v3522 = vpop.f32.mrb[0].mxu0
    %v3523 = vadd.f32 %v3390, %v3522
    %v3524 = vpop.f32.mrb[0].mxu0
    %v3525 = vadd.f32 %v3392, %v3524
    %v3526 = vpop.f32.mrb[0].mxu0
    %v3527 = vadd.f32 %v3394, %v3526
    %3528 = vmatprep.mubr.bf16.mxu0 %v3047
    %3529 = vmatmul.mubr.bf16.gmra.mrb[0].mxu0 %v2866
    %v3530 = vpop.f32.mrb[0].mxu0
    %v3531 = vadd.f32 %v3398, %v3530
    %v3532 = vpop.f32.mrb[0].mxu0
    %v3533 = vadd.f32 %v3400, %v3532
    %v3534 = vpop.f32.mrb[0].mxu0
    %v3535 = vadd.f32 %v3402, %v3534
    %v3536 = vpop.f32.mrb[0].mxu0
    %v3537 = vadd.f32 %v3404, %v3536
    %3538 = vmatprep.mubr.bf16.mxu0 %v3050
    %3539 = vmatmul.mubr.bf16.gmra.mrb[0].mxu0 %v2874
    %v3540 = vpop.f32.mrb[0].mxu0
    %v3541 = vadd.f32 %v3408, %v3540
    %v3542 = vpop.f32.mrb[0].mxu0
    %v3543 = vadd.f32 %v3410, %v3542
    %v3544 = vpop.f32.mrb[0].mxu0
    %v3545 = vadd.f32 %v3412, %v3544
    %v3546 = vpop.f32.mrb[0].mxu0
    %v3547 = vadd.f32 %v3414, %v3546
    %3548 = vmatprep.mubr.bf16.mxu0 %v3053
    %3549 = vmatmul.mubr.bf16.gmra.mrb[0].mxu0 %v2882
    %v3550 = vpop.f32.mrb[0].mxu0
    %v3551 = vadd.f32 %v3418, %v3550
    %v3552 = vpop.f32.mrb[0].mxu0
    %v3553 = vadd.f32 %v3420, %v3552
    %v3554 = vpop.f32.mrb[0].mxu0
    %v3555 = vadd.f32 %v3422, %v3554
    %v3556 = vpop.f32.mrb[0].mxu0
    %v3557 = vadd.f32 %v3424, %v3556
    %3558 = vmatprep.mubr.bf16.mxu0 %v3056
    %3559 = vmatmul.mubr.bf16.gmra.mrb[0].mxu0 %v2890
    %v3560 = vpop.f32.mrb[0].mxu0
    %v3561 = vadd.f32 %v3428, %v3560
    %v3562 = vpop.f32.mrb[0].mxu0
    %v3563 = vadd.f32 %v3430, %v3562
    %v3564 = vpop.f32.mrb[0].mxu0
    %v3565 = vadd.f32 %v3432, %v3564
    %v3566 = vpop.f32.mrb[0].mxu0
    %v3567 = vadd.f32 %v3434, %v3566
    %3568 = vmatprep.mubr.bf16.mxu0 %v3059
    %3569 = vmatmul.mubr.bf16.gmra.mrb[0].mxu0 %v2898
    %v3570 = vpop.f32.mrb[0].mxu0
    %v3571 = vadd.f32 %v3438, %v3570
    %v3572 = vpop.f32.mrb[0].mxu0
    %v3573 = vadd.f32 %v3440, %v3572
    %v3574 = vpop.f32.mrb[0].mxu0
    %v3575 = vadd.f32 %v3442, %v3574
    %v3576 = vpop.f32.mrb[0].mxu0
    %v3577 = vadd.f32 %v3444, %v3576
    %3578 = vmatprep.mubr.bf16.mxu0 %v3062
    %3579 = vmatmul.mubr.bf16.gmra.mrb[0].mxu0 %v2906
    %v3580 = vpop.f32.mrb[0].mxu0
    %v3581 = vadd.f32 %v3448, %v3580
    %v3582 = vpop.f32.mrb[0].mxu0
    %v3583 = vadd.f32 %v3450, %v3582
    %v3584 = vpop.f32.mrb[0].mxu0
    %v3585 = vadd.f32 %v3452, %v3584
    %v3586 = vpop.f32.mrb[0].mxu0
    %v3587 = vadd.f32 %v3454, %v3586
    %3588 = vmatprep.mubr.bf16.mxu0 %v3065
    %3589 = vmatmul.mubr.bf16.gmra.mrb[0].mxu0 %v2914
    %v3590 = vpop.f32.mrb[0].mxu0
    %v3591 = vadd.f32 %v3458, %v3590
    %v3592 = vpop.f32.mrb[0].mxu0
    %v3593 = vadd.f32 %v3460, %v3592
    %v3594 = vpop.f32.mrb[0].mxu0
    %v3595 = vadd.f32 %v3462, %v3594
    %v3596 = vpop.f32.mrb[0].mxu0
    %v3597 = vadd.f32 %v3464, %v3596
    %3598 = vdwg.mxu0
    %vm3599 = vcmask 556032
    %v3600 = vsel %vm3599, %v3503, 0.0
    %v3601 = vadd.f32 %v3501, %v3600
    %3602 = vadd.xlane.f32.xlu0 %v3601
    %v3603 = vpop.xlane.xlu0 %3602
    %v3604 = vsel %vm3599, %v3507, 0.0
    %v3605 = vadd.f32 %v3505, %v3604
    %3606 = vadd.xlane.f32.xlu0 %v3605
    %v3607 = vpop.xlane.xlu0 %3606
    %v3608 = vsel %vm3599, %v3513, 0.0
    %v3609 = vadd.f32 %v3511, %v3608
    %3610 = vadd.xlane.f32.xlu0 %v3609
    %v3611 = vpop.xlane.xlu0 %3610
    %v3612 = vsel %vm3599, %v3517, 0.0
    %v3613 = vadd.f32 %v3515, %v3612
    %3614 = vadd.xlane.f32.xlu0 %v3613
    %v3615 = vpop.xlane.xlu0 %3614
    %v3616 = vsel %vm3599, %v3523, 0.0
    %v3617 = vadd.f32 %v3521, %v3616
    %3618 = vadd.xlane.f32.xlu0 %v3617
    %v3619 = vpop.xlane.xlu0 %3618
    %v3620 = vsel %vm3599, %v3527, 0.0
    %v3621 = vadd.f32 %v3525, %v3620
    %3622 = vadd.xlane.f32.xlu0 %v3621
    %v3623 = vpop.xlane.xlu0 %3622
    %v3624 = vsel %vm3599, %v3533, 0.0
    %v3625 = vadd.f32 %v3531, %v3624
    %3626 = vadd.xlane.f32.xlu0 %v3625
    %v3627 = vpop.xlane.xlu0 %3626
    %v3628 = vsel %vm3599, %v3537, 0.0
    %v3629 = vadd.f32 %v3535, %v3628
    %3630 = vadd.xlane.f32.xlu0 %v3629
    %v3631 = vpop.xlane.xlu0 %3630
    %v3632 = vsel %vm3599, %v3543, 0.0
    %v3633 = vadd.f32 %v3541, %v3632
    %3634 = vadd.xlane.f32.xlu0 %v3633
    %v3635 = vpop.xlane.xlu0 %3634
    %v3636 = vsel %vm3599, %v3547, 0.0
    %v3637 = vadd.f32 %v3545, %v3636
    %3638 = vadd.xlane.f32.xlu0 %v3637
    %v3639 = vpop.xlane.xlu0 %3638
    %v3640 = vsel %vm3599, %v3553, 0.0
    %v3641 = vadd.f32 %v3551, %v3640
    %3642 = vadd.xlane.f32.xlu0 %v3641
    %v3643 = vpop.xlane.xlu0 %3642
    %v3644 = vsel %vm3599, %v3557, 0.0
    %v3645 = vadd.f32 %v3555, %v3644
    %3646 = vadd.xlane.f32.xlu0 %v3645
    %v3647 = vpop.xlane.xlu0 %3646
    %v3648 = vsel %vm3599, %v3563, 0.0
    %v3649 = vadd.f32 %v3561, %v3648
    %3650 = vadd.xlane.f32.xlu0 %v3649
    %v3651 = vpop.xlane.xlu0 %3650
    %v3652 = vsel %vm3599, %v3567, 0.0
    %v3653 = vadd.f32 %v3565, %v3652
    %3654 = vadd.xlane.f32.xlu0 %v3653
    %v3655 = vpop.xlane.xlu0 %3654
    %v3656 = vsel %vm3599, %v3573, 0.0
    %v3657 = vadd.f32 %v3571, %v3656
    %3658 = vadd.xlane.f32.xlu0 %v3657
    %v3659 = vpop.xlane.xlu0 %3658
    %v3660 = vsel %vm3599, %v3577, 0.0
    %v3661 = vadd.f32 %v3575, %v3660
    %3662 = vadd.xlane.f32.xlu0 %v3661
    %v3663 = vpop.xlane.xlu0 %3662
    %v3664 = vsel %vm3599, %v3583, 0.0
    %v3665 = vadd.f32 %v3581, %v3664
    %3666 = vadd.xlane.f32.xlu0 %v3665
    %v3667 = vpop.xlane.xlu0 %3666
    %v3668 = vsel %vm3599, %v3587, 0.0
    %v3669 = vadd.f32 %v3585, %v3668
    %3670 = vadd.xlane.f32.xlu0 %v3669
    %v3671 = vpop.xlane.xlu0 %3670
    %v3672 = vsel %vm3599, %v3593, 0.0
    %v3673 = vadd.f32 %v3591, %v3672
    %3674 = vadd.xlane.f32.xlu0 %v3673
    %v3675 = vpop.xlane.xlu0 %3674
    %v3676 = vsel %vm3599, %v3597, 0.0
    %v3677 = vadd.f32 %v3595, %v3676
    %3678 = vadd.xlane.f32.xlu0 %v3677
    %v3679 = vpop.xlane.xlu0 %3678
    %v3680 = vmul.f32 %v3603, 0.0051020407
    %v3681 = vmul.f32 %v3607, 0.0051020407
    %v3682 = vmul.f32 %v3611, 0.0051020407
    %v3683 = vmul.f32 %v3615, 0.0051020407
    %v3684 = vmul.f32 %v3619, 0.0051020407
    %v3685 = vmul.f32 %v3623, 0.0051020407
    %v3686 = vmul.f32 %v3627, 0.0051020407
    %v3687 = vmul.f32 %v3631, 0.0051020407
    %v3688 = vmul.f32 %v3635, 0.0051020407
    %v3689 = vmul.f32 %v3639, 0.0051020407
    %v3690 = vmul.f32 %v3643, 0.0051020407
    %v3691 = vmul.f32 %v3647, 0.0051020407
    %v3692 = vmul.f32 %v3651, 0.0051020407
    %v3693 = vmul.f32 %v3655, 0.0051020407
    %v3694 = vmul.f32 %v3659, 0.0051020407
    %v3695 = vmul.f32 %v3663, 0.0051020407
    %v3696 = vmul.f32 %v3667, 0.0051020407
    %v3697 = vmul.f32 %v3671, 0.0051020407
    %v3698 = vmul.f32 %v3675, 0.0051020407
    %v3699 = vmul.f32 %v3679, 0.0051020407
    %v3700 = vsub.f32 %v3501, %v3680
    %v3701 = vsub.f32 %v3503, %v3680
    %v3702 = vsub.f32 %v3505, %v3681
    %v3703 = vsub.f32 %v3507, %v3681
    %v3704 = vsub.f32 %v3511, %v3682
    %v3705 = vsub.f32 %v3513, %v3682
    %v3706 = vsub.f32 %v3515, %v3683
    %v3707 = vsub.f32 %v3517, %v3683
    %v3708 = vsub.f32 %v3521, %v3684
    %v3709 = vsub.f32 %v3523, %v3684
    %v3710 = vsub.f32 %v3525, %v3685
    %v3711 = vsub.f32 %v3527, %v3685
    %v3712 = vsub.f32 %v3531, %v3686
    %v3713 = vsub.f32 %v3533, %v3686
    %v3714 = vsub.f32 %v3535, %v3687
    %v3715 = vsub.f32 %v3537, %v3687
    %v3716 = vsub.f32 %v3541, %v3688
    %v3717 = vsub.f32 %v3543, %v3688
    %v3718 = vsub.f32 %v3545, %v3689
    %v3719 = vsub.f32 %v3547, %v3689
    %v3720 = vsub.f32 %v3551, %v3690
    %v3721 = vsub.f32 %v3553, %v3690
    %v3722 = vsub.f32 %v3555, %v3691
    %v3723 = vsub.f32 %v3557, %v3691
    %v3724 = vsub.f32 %v3561, %v3692
    %v3725 = vsub.f32 %v3563, %v3692
    %v3726 = vsub.f32 %v3565, %v3693
    %v3727 = vsub.f32 %v3567, %v3693
    %v3728 = vsub.f32 %v3571, %v3694
    %v3729 = vsub.f32 %v3573, %v3694
    %v3730 = vsub.f32 %v3575, %v3695
    %v3731 = vsub.f32 %v3577, %v3695
    %v3732 = vsub.f32 %v3581, %v3696
    %v3733 = vsub.f32 %v3583, %v3696
    %v3734 = vsub.f32 %v3585, %v3697
    %v3735 = vsub.f32 %v3587, %v3697
    %v3736 = vsub.f32 %v3591, %v3698
    %v3737 = vsub.f32 %v3593, %v3698
    %v3738 = vsub.f32 %v3595, %v3699
    %v3739 = vsub.f32 %v3597, %v3699
    %v3740 = vmul.f32 %v3700, %v3700
    %v3741 = vmul.f32 %v3701, %v3701
    %v3742 = vmul.f32 %v3702, %v3702
    %v3743 = vmul.f32 %v3703, %v3703
    %v3744 = vmul.f32 %v3704, %v3704
    %v3745 = vmul.f32 %v3705, %v3705
    %v3746 = vmul.f32 %v3706, %v3706
    %v3747 = vmul.f32 %v3707, %v3707
    %v3748 = vmul.f32 %v3708, %v3708
    %v3749 = vmul.f32 %v3709, %v3709
    %v3750 = vmul.f32 %v3710, %v3710
    %v3751 = vmul.f32 %v3711, %v3711
    %v3752 = vmul.f32 %v3712, %v3712
    %v3753 = vmul.f32 %v3713, %v3713
    %v3754 = vmul.f32 %v3714, %v3714
    %v3755 = vmul.f32 %v3715, %v3715
    %v3756 = vmul.f32 %v3716, %v3716
    %v3757 = vmul.f32 %v3717, %v3717
    %v3758 = vmul.f32 %v3718, %v3718
    %v3759 = vmul.f32 %v3719, %v3719
    %v3760 = vmul.f32 %v3720, %v3720
    %v3761 = vmul.f32 %v3721, %v3721
    %v3762 = vmul.f32 %v3722, %v3722
    %v3763 = vmul.f32 %v3723, %v3723
    %v3764 = vmul.f32 %v3724, %v3724
    %v3765 = vmul.f32 %v3725, %v3725
    %v3766 = vmul.f32 %v3726, %v3726
    %v3767 = vmul.f32 %v3727, %v3727
    %v3768 = vmul.f32 %v3728, %v3728
    %v3769 = vmul.f32 %v3729, %v3729
    %v3770 = vmul.f32 %v3730, %v3730
    %v3771 = vmul.f32 %v3731, %v3731
    %v3772 = vmul.f32 %v3732, %v3732
    %v3773 = vmul.f32 %v3733, %v3733
    %v3774 = vmul.f32 %v3734, %v3734
    %v3775 = vmul.f32 %v3735, %v3735
    %v3776 = vmul.f32 %v3736, %v3736
    %v3777 = vmul.f32 %v3737, %v3737
    %v3778 = vmul.f32 %v3738, %v3738
    %v3779 = vmul.f32 %v3739, %v3739
    %v3780 = vsel %vm3599, %v3741, 0.0
    %v3781 = vadd.f32 %v3740, %v3780
    %3782 = vadd.xlane.f32.xlu0 %v3781
    %v3783 = vpop.xlane.xlu0 %3782
    %v3784 = vsel %vm3599, %v3743, 0.0
    %v3785 = vadd.f32 %v3742, %v3784
    %3786 = vadd.xlane.f32.xlu0 %v3785
    %v3787 = vpop.xlane.xlu0 %3786
    %v3788 = vsel %vm3599, %v3745, 0.0
    %v3789 = vadd.f32 %v3744, %v3788
    %3790 = vadd.xlane.f32.xlu0 %v3789
    %v3791 = vpop.xlane.xlu0 %3790
    %v3792 = vsel %vm3599, %v3747, 0.0
    %v3793 = vadd.f32 %v3746, %v3792
    %3794 = vadd.xlane.f32.xlu0 %v3793
    %v3795 = vpop.xlane.xlu0 %3794
    %v3796 = vsel %vm3599, %v3749, 0.0
    %v3797 = vadd.f32 %v3748, %v3796
    %3798 = vadd.xlane.f32.xlu0 %v3797
    %v3799 = vpop.xlane.xlu0 %3798
    %v3800 = vsel %vm3599, %v3751, 0.0
    %v3801 = vadd.f32 %v3750, %v3800
    %3802 = vadd.xlane.f32.xlu0 %v3801
    %v3803 = vpop.xlane.xlu0 %3802
    %v3804 = vsel %vm3599, %v3753, 0.0
    %v3805 = vadd.f32 %v3752, %v3804
    %3806 = vadd.xlane.f32.xlu0 %v3805
    %v3807 = vpop.xlane.xlu0 %3806
    %v3808 = vsel %vm3599, %v3755, 0.0
    %v3809 = vadd.f32 %v3754, %v3808
    %3810 = vadd.xlane.f32.xlu0 %v3809
    %v3811 = vpop.xlane.xlu0 %3810
    %v3812 = vsel %vm3599, %v3757, 0.0
    %v3813 = vadd.f32 %v3756, %v3812
    %3814 = vadd.xlane.f32.xlu0 %v3813
    %v3815 = vpop.xlane.xlu0 %3814
    %v3816 = vsel %vm3599, %v3759, 0.0
    %v3817 = vadd.f32 %v3758, %v3816
    %3818 = vadd.xlane.f32.xlu0 %v3817
    %v3819 = vpop.xlane.xlu0 %3818
    %v3820 = vsel %vm3599, %v3761, 0.0
    %v3821 = vadd.f32 %v3760, %v3820
    %3822 = vadd.xlane.f32.xlu0 %v3821
    %v3823 = vpop.xlane.xlu0 %3822
    %v3824 = vsel %vm3599, %v3763, 0.0
    %v3825 = vadd.f32 %v3762, %v3824
    %3826 = vadd.xlane.f32.xlu0 %v3825
    %v3827 = vpop.xlane.xlu0 %3826
    %v3828 = vsel %vm3599, %v3765, 0.0
    %v3829 = vadd.f32 %v3764, %v3828
    %3830 = vadd.xlane.f32.xlu0 %v3829
    %v3831 = vpop.xlane.xlu0 %3830
    %v3832 = vsel %vm3599, %v3767, 0.0
    %v3833 = vadd.f32 %v3766, %v3832
    %3834 = vadd.xlane.f32.xlu0 %v3833
    %v3835 = vpop.xlane.xlu0 %3834
    %v3836 = vsel %vm3599, %v3769, 0.0
    %v3837 = vadd.f32 %v3768, %v3836
    %3838 = vadd.xlane.f32.xlu0 %v3837
    %v3839 = vpop.xlane.xlu0 %3838
    %v3840 = vsel %vm3599, %v3771, 0.0
    %v3841 = vadd.f32 %v3770, %v3840
    %3842 = vadd.xlane.f32.xlu0 %v3841
    %v3843 = vpop.xlane.xlu0 %3842
    %v3844 = vsel %vm3599, %v3773, 0.0
    %v3845 = vadd.f32 %v3772, %v3844
    %3846 = vadd.xlane.f32.xlu0 %v3845
    %v3847 = vpop.xlane.xlu0 %3846
    %v3848 = vsel %vm3599, %v3775, 0.0
    %v3849 = vadd.f32 %v3774, %v3848
    %3850 = vadd.xlane.f32.xlu0 %v3849
    %v3851 = vpop.xlane.xlu0 %3850
    %v3852 = vsel %vm3599, %v3777, 0.0
    %v3853 = vadd.f32 %v3776, %v3852
    %3854 = vadd.xlane.f32.xlu0 %v3853
    %v3855 = vpop.xlane.xlu0 %3854
    %v3856 = vsel %vm3599, %v3779, 0.0
    %v3857 = vadd.f32 %v3778, %v3856
    %3858 = vadd.xlane.f32.xlu0 %v3857
    %v3859 = vpop.xlane.xlu0 %3858
    %v3860 = vmul.f32 %v3783, 0.0051020407
    %v3861 = vmul.f32 %v3787, 0.0051020407
    %v3862 = vmul.f32 %v3791, 0.0051020407
    %v3863 = vmul.f32 %v3795, 0.0051020407
    %v3864 = vmul.f32 %v3799, 0.0051020407
    %v3865 = vmul.f32 %v3803, 0.0051020407
    %v3866 = vmul.f32 %v3807, 0.0051020407
    %v3867 = vmul.f32 %v3811, 0.0051020407
    %v3868 = vmul.f32 %v3815, 0.0051020407
    %v3869 = vmul.f32 %v3819, 0.0051020407
    %v3870 = vmul.f32 %v3823, 0.0051020407
    %v3871 = vmul.f32 %v3827, 0.0051020407
    %v3872 = vmul.f32 %v3831, 0.0051020407
    %v3873 = vmul.f32 %v3835, 0.0051020407
    %v3874 = vmul.f32 %v3839, 0.0051020407
    %v3875 = vmul.f32 %v3843, 0.0051020407
    %v3876 = vmul.f32 %v3847, 0.0051020407
    %v3877 = vmul.f32 %v3851, 0.0051020407
    %v3878 = vmul.f32 %v3855, 0.0051020407
    %v3879 = vmul.f32 %v3859, 0.0051020407
    %v3880 = vadd.f32 %v3860, 0.001
    %v3881 = vadd.f32 %v3861, 0.001
    %v3882 = vadd.f32 %v3862, 0.001
    %v3883 = vadd.f32 %v3863, 0.001
    %v3884 = vadd.f32 %v3864, 0.001
    %v3885 = vadd.f32 %v3865, 0.001
    %v3886 = vadd.f32 %v3866, 0.001
    %v3887 = vadd.f32 %v3867, 0.001
    %v3888 = vadd.f32 %v3868, 0.001
    %v3889 = vadd.f32 %v3869, 0.001
    %v3890 = vadd.f32 %v3870, 0.001
    %v3891 = vadd.f32 %v3871, 0.001
    %v3892 = vadd.f32 %v3872, 0.001
    %v3893 = vadd.f32 %v3873, 0.001
    %v3894 = vadd.f32 %v3874, 0.001
    %v3895 = vadd.f32 %v3875, 0.001
    %v3896 = vadd.f32 %v3876, 0.001
    %v3897 = vadd.f32 %v3877, 0.001
    %v3898 = vadd.f32 %v3878, 0.001
    %v3899 = vadd.f32 %v3879, 0.001
    %v3900 = vrsqrt.pop %v3880
    %v3901 = vrsqrt.pop %v3881
    %v3902 = vrsqrt.pop %v3882
    %v3903 = vrsqrt.pop %v3883
    %v3904 = vrsqrt.pop %v3884
    %v3905 = vrsqrt.pop %v3885
    %v3906 = vrsqrt.pop %v3886
    %v3907 = vrsqrt.pop %v3887
    %v3908 = vrsqrt.pop %v3888
    %v3909 = vrsqrt.pop %v3889
    %v3910 = vrsqrt.pop %v3890
    %v3911 = vrsqrt.pop %v3891
    %v3912 = vrsqrt.pop %v3892
    %v3913 = vrsqrt.pop %v3893
    %v3914 = vrsqrt.pop %v3894
    %v3915 = vrsqrt.pop %v3895
    %v3916 = vrsqrt.pop %v3896
    %v3917 = vrsqrt.pop %v3897
    %v3918 = vrsqrt.pop %v3898
    %v3919 = vrsqrt.pop %v3899
    %v3920 = vld [vmem:[%s5] sm:$0xff]
    %v3921 = vld [vmem:[%s5 + $0x8] sm:$0xff]
    %v3922 = vld [vmem:[%s5 + $0x10] sm:$0xff]
    %v3923 = vld [vmem:[%s5 + $0x18] sm:$0xff]
    %v3924 = vld [vmem:[%s5 + $0x20] sm:$0xff]
    %v3925 = vld [vmem:[%s5 + $0x28] sm:$0xff]
    %v3926 = vld [vmem:[%s5 + $0x30] sm:$0xff]
    %v3927 = vld [vmem:[%s5 + $0x38] sm:$0xff]
    %v3928 = vld [vmem:[%s5 + $0x40] sm:$0xff]
    %v3929 = vld [vmem:[%s5 + $0x48] sm:$0xff]
    %v3930 = vld [vmem:[%s5 + $0x50] sm:$0xff]
    %v3931 = vld [vmem:[%s5 + $0x58] sm:$0xff]
    %v3932 = vld [vmem:[%s5 + $0x60] sm:$0xff]
    %v3933 = vld [vmem:[%s5 + $0x68] sm:$0xff]
    %v3934 = vld [vmem:[%s5 + $0x70] sm:$0xff]
    %v3935 = vld [vmem:[%s5 + $0x78] sm:$0xff]
    %v3936 = vld [vmem:[%s5 + $0x80] sm:$0xff]
    %v3937 = vld [vmem:[%s5 + $0x88] sm:$0xff]
    %v3938 = vld [vmem:[%s5 + $0x90] sm:$0xff]
    %v3939 = vld [vmem:[%s5 + $0x98] sm:$0xff]
    %v3940 = vmul.f32 %v3900, %v3920
    %v3941 = vmul.f32 %v3901, %v3921
    %v3942 = vmul.f32 %v3902, %v3922
    %v3943 = vmul.f32 %v3903, %v3923
    %v3944 = vmul.f32 %v3904, %v3924
    %v3945 = vmul.f32 %v3905, %v3925
    %v3946 = vmul.f32 %v3906, %v3926
    %v3947 = vmul.f32 %v3907, %v3927
    %v3948 = vmul.f32 %v3908, %v3928
    %v3949 = vmul.f32 %v3909, %v3929
    %v3950 = vmul.f32 %v3910, %v3930
    %v3951 = vmul.f32 %v3911, %v3931
    %v3952 = vmul.f32 %v3912, %v3932
    %v3953 = vmul.f32 %v3913, %v3933
    %v3954 = vmul.f32 %v3914, %v3934
    %v3955 = vmul.f32 %v3915, %v3935
    %v3956 = vmul.f32 %v3916, %v3936
    %v3957 = vmul.f32 %v3917, %v3937
    %v3958 = vmul.f32 %v3918, %v3938
    %v3959 = vmul.f32 %v3919, %v3939
    %3961 = vset.pattern.permute.xlu0 0
    %3962 = vperm.xlu0 %3961, %v3940
    %v3963 = vpop.permute.xlu0 %3962
    %3966 = vset.pattern.permute.xlu0 0
    %3967 = vperm.xlu0 %3966, %v3941
    %v3968 = vpop.permute.xlu0 %3967
    %3971 = vset.pattern.permute.xlu0 0
    %3972 = vperm.xlu0 %3971, %v3942
    %v3973 = vpop.permute.xlu0 %3972
    %3976 = vset.pattern.permute.xlu0 0
    %3977 = vperm.xlu0 %3976, %v3943
    %v3978 = vpop.permute.xlu0 %3977
    %3981 = vset.pattern.permute.xlu0 0
    %3982 = vperm.xlu0 %3981, %v3944
    %v3983 = vpop.permute.xlu0 %3982
    %3986 = vset.pattern.permute.xlu0 0
    %3987 = vperm.xlu0 %3986, %v3945
    %v3988 = vpop.permute.xlu0 %3987
    %3991 = vset.pattern.permute.xlu0 0
    %3992 = vperm.xlu0 %3991, %v3946
    %v3993 = vpop.permute.xlu0 %3992
    %3996 = vset.pattern.permute.xlu0 0
    %3997 = vperm.xlu0 %3996, %v3947
    %v3998 = vpop.permute.xlu0 %3997
    %4001 = vset.pattern.permute.xlu0 0
    %4002 = vperm.xlu0 %4001, %v3948
    %v4003 = vpop.permute.xlu0 %4002
    %4006 = vset.pattern.permute.xlu0 0
    %4007 = vperm.xlu0 %4006, %v3949
    %v4008 = vpop.permute.xlu0 %4007
    %4011 = vset.pattern.permute.xlu0 0
    %4012 = vperm.xlu0 %4011, %v3950
    %v4013 = vpop.permute.xlu0 %4012
    %4016 = vset.pattern.permute.xlu0 0
    %4017 = vperm.xlu0 %4016, %v3951
    %v4018 = vpop.permute.xlu0 %4017
    %4021 = vset.pattern.permute.xlu0 0
    %4022 = vperm.xlu0 %4021, %v3952
    %v4023 = vpop.permute.xlu0 %4022
    %4026 = vset.pattern.permute.xlu0 0
    %4027 = vperm.xlu0 %4026, %v3953
    %v4028 = vpop.permute.xlu0 %4027
    %4031 = vset.pattern.permute.xlu0 0
    %4032 = vperm.xlu0 %4031, %v3954
    %v4033 = vpop.permute.xlu0 %4032
    %4036 = vset.pattern.permute.xlu0 0
    %4037 = vperm.xlu0 %4036, %v3955
    %v4038 = vpop.permute.xlu0 %4037
    %4041 = vset.pattern.permute.xlu0 0
    %4042 = vperm.xlu0 %4041, %v3956
    %v4043 = vpop.permute.xlu0 %4042
    %4046 = vset.pattern.permute.xlu0 0
    %4047 = vperm.xlu0 %4046, %v3957
    %v4048 = vpop.permute.xlu0 %4047
    %4051 = vset.pattern.permute.xlu0 0
    %4052 = vperm.xlu0 %4051, %v3958
    %v4053 = vpop.permute.xlu0 %4052
    %4056 = vset.pattern.permute.xlu0 0
    %4057 = vperm.xlu0 %4056, %v3959
    %v4058 = vpop.permute.xlu0 %4057
    %v4060 = vmul.f32 %v3700, %v3963
    %v4061 = vmul.f32 %v3701, %v3963
    %v4062 = vmul.f32 %v3702, %v3968
    %v4063 = vmul.f32 %v3703, %v3968
    %v4064 = vmul.f32 %v3704, %v3973
    %v4065 = vmul.f32 %v3705, %v3973
    %v4066 = vmul.f32 %v3706, %v3978
    %v4067 = vmul.f32 %v3707, %v3978
    %v4068 = vmul.f32 %v3708, %v3983
    %v4069 = vmul.f32 %v3709, %v3983
    %v4070 = vmul.f32 %v3710, %v3988
    %v4071 = vmul.f32 %v3711, %v3988
    %v4072 = vmul.f32 %v3712, %v3993
    %v4073 = vmul.f32 %v3713, %v3993
    %v4074 = vmul.f32 %v3714, %v3998
    %v4075 = vmul.f32 %v3715, %v3998
    %v4076 = vmul.f32 %v3716, %v4003
    %v4077 = vmul.f32 %v3717, %v4003
    %v4078 = vmul.f32 %v3718, %v4008
    %v4079 = vmul.f32 %v3719, %v4008
    %v4080 = vmul.f32 %v3720, %v4013
    %v4081 = vmul.f32 %v3721, %v4013
    %v4082 = vmul.f32 %v3722, %v4018
    %v4083 = vmul.f32 %v3723, %v4018
    %v4084 = vmul.f32 %v3724, %v4023
    %v4085 = vmul.f32 %v3725, %v4023
    %v4086 = vmul.f32 %v3726, %v4028
    %v4087 = vmul.f32 %v3727, %v4028
    %v4088 = vmul.f32 %v3728, %v4033
    %v4089 = vmul.f32 %v3729, %v4033
    %v4090 = vmul.f32 %v3730, %v4038
    %v4091 = vmul.f32 %v3731, %v4038
    %v4092 = vmul.f32 %v3732, %v4043
    %v4093 = vmul.f32 %v3733, %v4043
    %v4094 = vmul.f32 %v3734, %v4048
    %v4095 = vmul.f32 %v3735, %v4048
    %v4096 = vmul.f32 %v3736, %v4053
    %v4097 = vmul.f32 %v3737, %v4053
    %v4098 = vmul.f32 %v3738, %v4058
    %v4099 = vmul.f32 %v3739, %v4058
    %v4100 = vld [vmem:[%s6] sm:$0xff]
    %v4101 = vld [vmem:[%s6 + $0x8] sm:$0xff]
    %v4102 = vld [vmem:[%s6 + $0x10] sm:$0xff]
    %v4103 = vld [vmem:[%s6 + $0x18] sm:$0xff]
    %v4104 = vld [vmem:[%s6 + $0x20] sm:$0xff]
    %v4105 = vld [vmem:[%s6 + $0x28] sm:$0xff]
    %v4106 = vld [vmem:[%s6 + $0x30] sm:$0xff]
    %v4107 = vld [vmem:[%s6 + $0x38] sm:$0xff]
    %v4108 = vld [vmem:[%s6 + $0x40] sm:$0xff]
    %v4109 = vld [vmem:[%s6 + $0x48] sm:$0xff]
    %v4110 = vld [vmem:[%s6 + $0x50] sm:$0xff]
    %v4111 = vld [vmem:[%s6 + $0x58] sm:$0xff]
    %v4112 = vld [vmem:[%s6 + $0x60] sm:$0xff]
    %v4113 = vld [vmem:[%s6 + $0x68] sm:$0xff]
    %v4114 = vld [vmem:[%s6 + $0x70] sm:$0xff]
    %v4115 = vld [vmem:[%s6 + $0x78] sm:$0xff]
    %v4116 = vld [vmem:[%s6 + $0x80] sm:$0xff]
    %v4117 = vld [vmem:[%s6 + $0x88] sm:$0xff]
    %v4118 = vld [vmem:[%s6 + $0x90] sm:$0xff]
    %v4119 = vld [vmem:[%s6 + $0x98] sm:$0xff]
    %4121 = vset.pattern.permute.xlu0 0
    %4122 = vperm.xlu0 %4121, %v4100
    %v4123 = vpop.permute.xlu0 %4122
    %4126 = vset.pattern.permute.xlu0 0
    %4127 = vperm.xlu0 %4126, %v4101
    %v4128 = vpop.permute.xlu0 %4127
    %4131 = vset.pattern.permute.xlu0 0
    %4132 = vperm.xlu0 %4131, %v4102
    %v4133 = vpop.permute.xlu0 %4132
    %4136 = vset.pattern.permute.xlu0 0
    %4137 = vperm.xlu0 %4136, %v4103
    %v4138 = vpop.permute.xlu0 %4137
    %4141 = vset.pattern.permute.xlu0 0
    %4142 = vperm.xlu0 %4141, %v4104
    %v4143 = vpop.permute.xlu0 %4142
    %4146 = vset.pattern.permute.xlu0 0
    %4147 = vperm.xlu0 %4146, %v4105
    %v4148 = vpop.permute.xlu0 %4147
    %4151 = vset.pattern.permute.xlu0 0
    %4152 = vperm.xlu0 %4151, %v4106
    %v4153 = vpop.permute.xlu0 %4152
    %4156 = vset.pattern.permute.xlu0 0
    %4157 = vperm.xlu0 %4156, %v4107
    %v4158 = vpop.permute.xlu0 %4157
    %4161 = vset.pattern.permute.xlu0 0
    %4162 = vperm.xlu0 %4161, %v4108
    %v4163 = vpop.permute.xlu0 %4162
    %4166 = vset.pattern.permute.xlu0 0
    %4167 = vperm.xlu0 %4166, %v4109
    %v4168 = vpop.permute.xlu0 %4167
    %4171 = vset.pattern.permute.xlu0 0
    %4172 = vperm.xlu0 %4171, %v4110
    %v4173 = vpop.permute.xlu0 %4172
    %4176 = vset.pattern.permute.xlu0 0
    %4177 = vperm.xlu0 %4176, %v4111
    %v4178 = vpop.permute.xlu0 %4177
    %4181 = vset.pattern.permute.xlu0 0
    %4182 = vperm.xlu0 %4181, %v4112
    %v4183 = vpop.permute.xlu0 %4182
    %4186 = vset.pattern.permute.xlu0 0
    %4187 = vperm.xlu0 %4186, %v4113
    %v4188 = vpop.permute.xlu0 %4187
    %4191 = vset.pattern.permute.xlu0 0
    %4192 = vperm.xlu0 %4191, %v4114
    %v4193 = vpop.permute.xlu0 %4192
    %4196 = vset.pattern.permute.xlu0 0
    %4197 = vperm.xlu0 %4196, %v4115
    %v4198 = vpop.permute.xlu0 %4197
    %4201 = vset.pattern.permute.xlu0 0
    %4202 = vperm.xlu0 %4201, %v4116
    %v4203 = vpop.permute.xlu0 %4202
    %4206 = vset.pattern.permute.xlu0 0
    %4207 = vperm.xlu0 %4206, %v4117
    %v4208 = vpop.permute.xlu0 %4207
    %4211 = vset.pattern.permute.xlu0 0
    %4212 = vperm.xlu0 %4211, %v4118
    %v4213 = vpop.permute.xlu0 %4212
    %4216 = vset.pattern.permute.xlu0 0
    %4217 = vperm.xlu0 %4216, %v4119
    %v4218 = vpop.permute.xlu0 %4217
    %v4220 = vadd.f32 %v4060, %v4123
    %v4221 = vadd.f32 %v4061, %v4123
    %v4222 = vadd.f32 %v4062, %v4128
    %v4223 = vadd.f32 %v4063, %v4128
    %v4224 = vadd.f32 %v4064, %v4133
    %v4225 = vadd.f32 %v4065, %v4133
    %v4226 = vadd.f32 %v4066, %v4138
    %v4227 = vadd.f32 %v4067, %v4138
    %v4228 = vadd.f32 %v4068, %v4143
    %v4229 = vadd.f32 %v4069, %v4143
    %v4230 = vadd.f32 %v4070, %v4148
    %v4231 = vadd.f32 %v4071, %v4148
    %v4232 = vadd.f32 %v4072, %v4153
    %v4233 = vadd.f32 %v4073, %v4153
    %v4234 = vadd.f32 %v4074, %v4158
    %v4235 = vadd.f32 %v4075, %v4158
    %v4236 = vadd.f32 %v4076, %v4163
    %v4237 = vadd.f32 %v4077, %v4163
    %v4238 = vadd.f32 %v4078, %v4168
    %v4239 = vadd.f32 %v4079, %v4168
    %v4240 = vadd.f32 %v4080, %v4173
    %v4241 = vadd.f32 %v4081, %v4173
    %v4242 = vadd.f32 %v4082, %v4178
    %v4243 = vadd.f32 %v4083, %v4178
    %v4244 = vadd.f32 %v4084, %v4183
    %v4245 = vadd.f32 %v4085, %v4183
    %v4246 = vadd.f32 %v4086, %v4188
    %v4247 = vadd.f32 %v4087, %v4188
    %v4248 = vadd.f32 %v4088, %v4193
    %v4249 = vadd.f32 %v4089, %v4193
    %v4250 = vadd.f32 %v4090, %v4198
    %v4251 = vadd.f32 %v4091, %v4198
    %v4252 = vadd.f32 %v4092, %v4203
    %v4253 = vadd.f32 %v4093, %v4203
    %v4254 = vadd.f32 %v4094, %v4208
    %v4255 = vadd.f32 %v4095, %v4208
    %v4256 = vadd.f32 %v4096, %v4213
    %v4257 = vadd.f32 %v4097, %v4213
    %v4258 = vadd.f32 %v4098, %v4218
    %v4259 = vadd.f32 %v4099, %v4218
    %4260 = vst [vmem:[#allocation2] sm:$0xff] %v4220
    %4261 = vst.msk [vmem:[#allocation2 + $0x8] sm:$0xff] %vm3599, %v4221
    %4262 = vst [vmem:[#allocation2 + $0x10] sm:$0xff] %v4222
    %4263 = vst.msk [vmem:[#allocation2 + $0x18] sm:$0xff] %vm3599, %v4223
    %4264 = vst [vmem:[#allocation2 + $0x20] sm:$0xff] %v4224
    %4265 = vst.msk [vmem:[#allocation2 + $0x28] sm:$0xff] %vm3599, %v4225
    %4266 = vst [vmem:[#allocation2 + $0x30] sm:$0xff] %v4226
    %4267 = vst.msk [vmem:[#allocation2 + $0x38] sm:$0xff] %vm3599, %v4227
    %4268 = vst [vmem:[#allocation2 + $0x40] sm:$0xff] %v4228
    %4269 = vst.msk [vmem:[#allocation2 + $0x48] sm:$0xff] %vm3599, %v4229
    %4270 = vst [vmem:[#allocation2 + $0x50] sm:$0xff] %v4230
    %4271 = vst.msk [vmem:[#allocation2 + $0x58] sm:$0xff] %vm3599, %v4231
    %4272 = vst [vmem:[#allocation2 + $0x60] sm:$0xff] %v4232
    %4273 = vst.msk [vmem:[#allocation2 + $0x68] sm:$0xff] %vm3599, %v4233
    %4274 = vst [vmem:[#allocation2 + $0x70] sm:$0xff] %v4234
    %4275 = vst.msk [vmem:[#allocation2 + $0x78] sm:$0xff] %vm3599, %v4235
    %4276 = vst [vmem:[#allocation2 + $0x80] sm:$0xff] %v4236
    %4277 = vst.msk [vmem:[#allocation2 + $0x88] sm:$0xff] %vm3599, %v4237
    %4278 = vst [vmem:[#allocation2 + $0x90] sm:$0xff] %v4238
    %4279 = vst.msk [vmem:[#allocation2 + $0x98] sm:$0xff] %vm3599, %v4239
    %4280 = vst [vmem:[#allocation2 + $0xa0] sm:$0xff] %v4240
    %4281 = vst.msk [vmem:[#allocation2 + $0xa8] sm:$0xff] %vm3599, %v4241
    %4282 = vst [vmem:[#allocation2 + $0xb0] sm:$0xff] %v4242
    %4283 = vst.msk [vmem:[#allocation2 + $0xb8] sm:$0xff] %vm3599, %v4243
    %4284 = vst [vmem:[#allocation2 + $0xc0] sm:$0xff] %v4244
    %4285 = vst.msk [vmem:[#allocation2 + $0xc8] sm:$0xff] %vm3599, %v4245
    %4286 = vst [vmem:[#allocation2 + $0xd0] sm:$0xff] %v4246
    %4287 = vst.msk [vmem:[#allocation2 + $0xd8] sm:$0xff] %vm3599, %v4247
    %4288 = vst [vmem:[#allocation2 + $0xe0] sm:$0xff] %v4248
    %4289 = vst.msk [vmem:[#allocation2 + $0xe8] sm:$0xff] %vm3599, %v4249
    %4290 = vst [vmem:[#allocation2 + $0xf0] sm:$0xff] %v4250
    %4291 = vst.msk [vmem:[#allocation2 + $0xf8] sm:$0xff] %vm3599, %v4251
    %4292 = vst [vmem:[#allocation2 + $0x100] sm:$0xff] %v4252
    %4293 = vst.msk [vmem:[#allocation2 + $0x108] sm:$0xff] %vm3599, %v4253
    %4294 = vst [vmem:[#allocation2 + $0x110] sm:$0xff] %v4254
    %4295 = vst.msk [vmem:[#allocation2 + $0x118] sm:$0xff] %vm3599, %v4255
    %4296 = vst [vmem:[#allocation2 + $0x120] sm:$0xff] %v4256
    %4297 = vst.msk [vmem:[#allocation2 + $0x128] sm:$0xff] %vm3599, %v4257
    %4298 = vst [vmem:[#allocation2 + $0x130] sm:$0xff] %v4258
    %4299 = vst.msk [vmem:[#allocation2 + $0x138] sm:$0xff] %vm3599, %v4259
    // Predicated region
    $region30: #{tpu_custom_call.1} parent=1 // pred_check
      _
    $region31: #{tpu_custom_call.1} parent=1 // pred_check_branch
      %4301 = sbr.rel (0) target = $region33
    $region32: #{tpu_custom_call.1} parent=1 // pred_region
      %s4303 = ssub.s32 5120, 5120
      %4304 = vsyncadd [#allocation3], %s4303
      %s4305 = sshll.u32 [#allocation2], 4
      %s4306 = int_to_ptr.vmem [resolvable:$true] %s4305
      %4311 = dma.vmem_to_hbm [thread:$0]  %s4306, 5120, %s7, [#allocation3], 256, 256, 16
    $region33: #{tpu_custom_call.1} parent=1 // pred_fallthru
      _
    // Predicated region
    $region34: #{tpu_custom_call.1} parent=1 // pred_check
      _
    $region35: #{tpu_custom_call.1} parent=1 // pred_check_branch
      %4313 = sbr.rel (0) target = $region37
    $region36: #{tpu_custom_call.1} parent=1 // pred_region
      %4314 = dma.done [#allocation3], 5120
    $region37: #{tpu_custom_call.1} parent=1 // pred_fallthru
      _
    %4315 = vsyncpa [#allocation3], 1

</llo_original>
